<compile_context>
chip_gen: v7x
topology: tpu7x:2x2x1
jax: 0.10.0
libtpu: 0.0.40
codegen_flags: <defaults>
</compile_context>

<pallas_src>
import math
from functools import partial

import jax
import jax.numpy as jnp
from jax.experimental import pallas as pl
from jax.experimental.pallas import tpu as pltpu


# ----------------------------- in-kernel helpers -----------------------------

def _layernorm(x, gamma, beta, eps=1e-5):
    mu = jnp.mean(x, axis=-1, keepdims=True)
    xc = x - mu
    var = jnp.mean(xc * xc, axis=-1, keepdims=True)
    return xc * jax.lax.rsqrt(var + eps) * gamma + beta


def _head_matrices(E, H):
    """Block-diagonal head-sum matrices, built in-kernel (no extra input DMA)."""
    Dh = E // H
    e_i = jax.lax.broadcasted_iota(jnp.int32, (E, H), 0)
    h_i = jax.lax.broadcasted_iota(jnp.int32, (E, H), 1)
    mhead = ((h_i * Dh <= e_i) & (e_i < (h_i + 1) * Dh)).astype(jnp.float32)
    h_t = jax.lax.broadcasted_iota(jnp.int32, (H, E), 0)
    e_t = jax.lax.broadcasted_iota(jnp.int32, (H, E), 1)
    mhead_t = ((h_t * Dh <= e_t) & (e_t < (h_t + 1) * Dh)).astype(jnp.float32)
    return mhead, mhead_t


def _mha(xq, xkv, w_qkv, b_qkv, wo, bo, mhead, mhead_t, scale, B, S, shared):
    """Multi-head attention with PyTorch batch_first=False semantics:
    attention mixes the batch axis (length B); S acts as the batch axis.
    Inputs xq/xkv are (B*S, E) stacked; all B (and B*B pair) blocks stay on the
    sublane axis so each stage is a single matmul."""
    E = xq.shape[-1]
    N = B * S

    if shared:
        # self-attention: one fused QKV projection on (N, E)
        proj = jnp.dot(xq, w_qkv, preferred_element_type=jnp.float32) + b_qkv
        q = proj[:, :E] * scale
        k = proj[:, E:2 * E]
        v = proj[:, 2 * E:]
    else:
        # cross-attention: stack [query-input ; context-input] so the fused QKV
        # projection is still one matmul; take Q from the top half, K/V below.
        both = jnp.concatenate([xq, xkv], axis=0)                    # (2N, E)
        proj = jnp.dot(both, w_qkv, preferred_element_type=jnp.float32) + b_qkv
        q = proj[:N, :E] * scale
        k = proj[N:, E:2 * E]
        v = proj[N:, 2 * E:]

    # All (query-batch i, key-batch j) pairs stacked: rows ordered i-major / j-minor.
    q_rep = jnp.concatenate(
        [q[i * S:(i + 1) * S] for i in range(B) for _ in range(B)], axis=0)
    k_rep = jnp.concatenate([k] * B, axis=0)
    sc = jnp.dot(q_rep * k_rep, mhead, preferred_element_type=jnp.float32)  # (B*B*S, H)

    def blk(a, i, j):
        return a[(i * B + j) * S:(i * B + j + 1) * S]

    # numerically-stable softmax over the key-batch index j
    m_blocks = []
    for i in range(B):
        m = blk(sc, i, 0)
        for j in range(1, B):
            m = jnp.maximum(m, blk(sc, i, j))
        m_blocks.append(m)
    m_rep = jnp.concatenate([m_blocks[i] for i in range(B) for _ in range(B)], axis=0)
    es = jnp.exp(sc - m_rep)                                                # (B*B*S, H)

    inv_blocks = []
    for i in range(B):
        den = blk(es, i, 0)
        for j in range(1, B):
            den = den + blk(es, i, j)
        inv_blocks.append(pl.reciprocal(den, approx=True))
    inv_rep = jnp.concatenate([inv_blocks[i] for i in range(B) for _ in range(B)], axis=0)
    p = es * inv_rep                                                        # (B*B*S, H)

    # broadcast per-head probs back to E lanes and combine with values
    pb = jnp.dot(p, mhead_t, preferred_element_type=jnp.float32)            # (B*B*S, E)
    wv = pb * jnp.concatenate([v] * B, axis=0)
    out_blocks = []
    for i in range(B):
        acc = blk(wv, i, 0)
        for j in range(1, B):
            acc = acc + blk(wv, i, j)
        out_blocks.append(acc)
    ctx = jnp.concatenate(out_blocks, axis=0)                               # (N, E)

    return jnp.dot(ctx, wo, preferred_element_type=jnp.float32) + bo


# --------------------------------- kernel ------------------------------------

def _text_diffusion_kernel(
    scales_ref,                                   # SMEM (2B,): sqrt(a), sqrt(1-a)
    emb_ref, pos_ref, noise_ref,                  # (B*S,E), (S,E), (B*S,E)
    g_wqkv, g_wo, e_wqkv, e_wo,                   # attention weights (fused QKV)
    qkv_b,                                        # (2, 3E): row0 guided, row1 encoder
    vec8,                                         # (8, E): packed bias / LN vectors
    w1, b1, w2,                                   # encoder FFN (weights bf16)
    wp,                                           # noise predictor weight
    out_ref,
    *, num_heads, scale, batch, seq):
    E = emb_ref.shape[-1]

    # packed (1, E) / (1, 3E) parameter vectors
    g_bqkv = qkv_b[0:1, :]
    e_bqkv = qkv_b[1:2, :]
    g_bo = vec8[0:1, :]
    e_bo = vec8[1:2, :]
    ln1_g = vec8[2:3, :]
    ln1_b = vec8[3:4, :]
    ln2_g = vec8[4:5, :]
    ln2_b = vec8[5:6, :]
    b2 = vec8[6:7, :]
    bp = vec8[7:8, :]

    # original_embed = embedding + positional encoding (pos tiled over batch blocks)
    pos = jnp.concatenate([pos_ref[...]] * batch, axis=0)            # (B*S, E)
    orig = emb_ref[...] + pos

    # add_noise: sqrt(alpha)*x + sqrt(1-alpha)*noise, per-batch scalars from SMEM
    noise = noise_ref[...]
    noised_blocks = []
    for b in range(batch):
        ob = orig[b * seq:(b + 1) * seq]
        nb = noise[b * seq:(b + 1) * seq]
        noised_blocks.append(scales_ref[b] * ob + scales_ref[batch + b] * nb)
    noised = jnp.concatenate(noised_blocks, axis=0)                  # (B*S, E)

    mhead, mhead_t = _head_matrices(E, num_heads)

    # guided attention: query = noised_x, key/value = original_embed, residual
    attn = _mha(noised, orig, g_wqkv[...], g_bqkv, g_wo[...], g_bo,
                mhead, mhead_t, scale, batch, seq, shared=False)
    x = noised + attn

    # TransformerEncoderLayer (norm_first=False, relu, dropout = identity/eval)
    sa = _mha(x, x, e_wqkv[...], e_bqkv, e_wo[...], e_bo,
              mhead, mhead_t, scale, batch, seq, shared=True)
    x = _layernorm(x + sa, ln1_g, ln1_b)

    # FFN: bf16 MXU operands, f32 accumulation; elementwise (bias/relu) in f32
    h = jnp.dot(x.astype(jnp.bfloat16), w1[...],
                preferred_element_type=jnp.float32) + b1[...]
    h = jnp.maximum(h, 0.0)
    ff = jnp.dot(h.astype(jnp.bfloat16), w2[...],
                 preferred_element_type=jnp.float32) + b2
    x = _layernorm(x + ff, ln2_g, ln2_b)

    # noise predictor — single stacked store
    out_ref[...] = jnp.dot(x, wp[...], preferred_element_type=jnp.float32) + bp


# --------------------------------- wrapper ------------------------------------

@partial(jax.jit, static_argnames=("num_steps", "num_heads"))
def text_diffusion_forward(params, tokens, t, noise, num_steps, num_heads):
    B, S = tokens.shape
    E = params["embed"].shape[1]
    Dh = E // num_heads
    scale = 1.0 / math.sqrt(Dh)

    # glue: embedding gather + noise-schedule scalars (scalars go to SMEM)
    emb = params["embed"][tokens].reshape(B * S, E)                  # (B*S, E)
    pos = params["pos"][0, :S, :]                                    # (S, E)
    alphas = (1.0 - t / float(num_steps)).astype(jnp.float32)        # (B,)
    scales = jnp.concatenate([jnp.sqrt(alphas), jnp.sqrt(1.0 - alphas)])  # (2B,)
    noise_flat = noise.reshape(B * S, E)

    # fused QKV weights/biases (column order: Q | K | V — kernel slices in the same order)
    g_wqkv = jnp.concatenate([params["gwq"], params["gwk"], params["gwv"]], axis=1)
    e_wqkv = jnp.concatenate([params["ewq"], params["ewk"], params["ewv"]], axis=1)
    qkv_b = jnp.concatenate(
        [jnp.concatenate([params["gbq"], params["gbk"], params["gbv"]], axis=1),
         jnp.concatenate([params["ebq"], params["ebk"], params["ebv"]], axis=1)],
        axis=0)                                                      # (2, 3E)
    # pack all (1, E) vectors into one (8, E) slab (one DMA instead of eight)
    vec8 = jnp.concatenate(
        [params["gbo"], params["ebo"], params["ln1_g"], params["ln1_b"],
         params["ln2_g"], params["ln2_b"], params["b2"], params["bp"]], axis=0)
    # FFN weights pre-cast to bf16 (halves VMEM/DMA for the only FLOP-heavy weights)
    w1_bf16 = params["w1"].astype(jnp.bfloat16)
    w2_bf16 = params["w2"].astype(jnp.bfloat16)

    vmem = pl.BlockSpec(memory_space=pltpu.MemorySpace.VMEM)
    smem = pl.BlockSpec(memory_space=pltpu.MemorySpace.SMEM)

    args = (scales,
            emb, pos, noise_flat,
            g_wqkv, params["gwo"], e_wqkv, params["ewo"],
            qkv_b, vec8,
            w1_bf16, params["b1"], w2_bf16,
            params["wp"])

    # No grid: everything is VMEM-resident at these toy shapes (<< 1 MiB).
    # TODO(synk): on v7x with larger B/S/E, add a grid over B with
    # dimension_semantics=("parallel",) so both TensorCores are used, and tile
    # the 2048-wide FFN dim to respect v7x's smaller (64 MiB) VMEM.
    pred = pl.pallas_call(
        partial(_text_diffusion_kernel, num_heads=num_heads, scale=scale,
                batch=B, seq=S),
        out_shape=jax.ShapeDtypeStruct((B * S, E), jnp.float32),
        in_specs=[smem] + [vmem] * (len(args) - 1),
        out_specs=vmem,
    )(*args)
    return pred.reshape(B, S, E), noise


# ------------------------------ params & reference ----------------------------

def init_params(key, vocab_size, embed_dim, max_seq_length, num_heads, ffn_dim):
    ks = iter(jax.random.split(key, 24))

    def nrm(shape, std):
        return (std * jax.random.normal(next(ks), shape)).astype(jnp.float32)

    E, F = embed_dim, ffn_dim
    p = {}
    p["embed"] = nrm((vocab_size, E), 1.0)
    p["pos"] = nrm((1, max_seq_length, E), 1.0)
    for prefix in ("g", "e"):                    # guided / encoder attention
        for name in ("wq", "wk", "wv", "wo"):
            p[prefix + name] = nrm((E, E), 0.05)  # stored as (in, out)
        for name in ("bq", "bk", "bv", "bo"):
            p[prefix + name] = nrm((1, E), 0.05)
    p["ln1_g"] = jnp.ones((1, E), jnp.float32)
    p["ln1_b"] = jnp.zeros((1, E), jnp.float32)
    p["ln2_g"] = jnp.ones((1, E), jnp.float32)
    p["ln2_b"] = jnp.zeros((1, E), jnp.float32)
    p["w1"] = nrm((E, F), 0.05)
    p["b1"] = nrm((1, F), 0.05)
    p["w2"] = nrm((F, E), 0.02)
    p["b2"] = nrm((1, E), 0.05)
    p["wp"] = nrm((E, E), 0.05)
    p["bp"] = nrm((1, E), 0.05)
    return p


def reference_forward(params, tokens, t, noise, num_steps, num_heads):
    hp = jax.lax.Precision.HIGHEST
    B, S = tokens.shape
    E = params["embed"].shape[1]
    emb = params["embed"][tokens] + params["pos"][:, :S, :]
    alphas = (1.0 - t / float(num_steps)).reshape(B, 1, 1)
    noised = jnp.sqrt(alphas) * emb + jnp.sqrt(1.0 - alphas) * noise

    def lin(x, w, b):
        return jnp.einsum("bse,ef->bsf", x, w, precision=hp) + b[0]

    def mha(xq, xkv, pre):
        Dh = E // num_heads
        scale = 1.0 / math.sqrt(Dh)
        q = (lin(xq, params[pre + "wq"], params[pre + "bq"]) * scale
             ).reshape(B, S, num_heads, Dh)
        k = lin(xkv, params[pre + "wk"], params[pre + "bk"]).reshape(B, S, num_heads, Dh)
        v = lin(xkv, params[pre + "wv"], params[pre + "bv"]).reshape(B, S, num_heads, Dh)
        sc = jnp.einsum("ishd,jshd->shij", q, k, precision=hp)
        p = jax.nn.softmax(sc, axis=-1)
        o = jnp.einsum("shij,jshd->ishd", p, v, precision=hp).reshape(B, S, E)
        return lin(o, params[pre + "wo"], params[pre + "bo"])

    def ln(x, g, b):
        mu = jnp.mean(x, axis=-1, keepdims=True)
        var = jnp.mean((x - mu) ** 2, axis=-1, keepdims=True)
        return (x - mu) / jnp.sqrt(var + 1e-5) * g[0] + b[0]

    x = noised + mha(noised, emb, "g")
    x = ln(x + mha(x, x, "e"), params["ln1_g"], params["ln1_b"])
    ff = lin(jnp.maximum(lin(x, params["w1"], params["b1"]), 0.0),
             params["w2"], params["b2"])
    x = ln(x + ff, params["ln2_g"], params["ln2_b"])
    return lin(x, params["wp"], params["bp"])


# ----------------------------------- main --------------------------------------

if __name__ == "__main__":
    vocab_size, embed_dim, max_seq_length = 64, 32, 16
    num_steps, num_heads = 100, 8
    batch, seq_len = 2, 8
    ffn_dim = 2048   # PyTorch TransformerEncoderLayer default dim_feedforward

    key = jax.random.PRNGKey(0)
    k_tok, k_t, k_noise, k_param = jax.random.split(key, 4)
    tokens = jax.random.randint(k_tok, (batch, seq_len), 0, vocab_size)
    t = jax.random.randint(k_t, (batch,), 1, num_steps).astype(jnp.float32)
    # TODO(synk): torch.randn_like has no in-kernel equivalent tied to torch RNG;
    # the Gaussian noise is drawn deterministically here and fed into the kernel.
    noise = jax.random.normal(k_noise, (batch, seq_len, embed_dim), jnp.float32)

    params = init_params(k_param, vocab_size, embed_dim, max_seq_length,
                         num_heads, ffn_dim)

    pred, noise_out = text_diffusion_forward(params, tokens, t, noise,
                                             num_steps=num_steps,
                                             num_heads=num_heads)
    pred = jax.block_until_ready(pred)

    ref = reference_forward(params, tokens, t, noise, num_steps, num_heads)
    err = float(jnp.max(jnp.abs(pred - ref)))
    assert jnp.allclose(pred, ref, atol=5e-3, rtol=5e-3), f"max abs err {err}"
    print("KERNEL_OK")
</pallas_src>

<mosaic_0001>
module attributes {stable_mosaic.version = 11 : i64} {
  func.func @_text_diffusion_kernel(%arg0: memref<4xf32, #tpu.memory_space<smem>>, %arg1: memref<16x32xf32, #tpu.memory_space<vmem>>, %arg2: memref<8x32xf32, #tpu.memory_space<vmem>>, %arg3: memref<16x32xf32, #tpu.memory_space<vmem>>, %arg4: memref<32x96xf32, #tpu.memory_space<vmem>>, %arg5: memref<32x32xf32, #tpu.memory_space<vmem>>, %arg6: memref<32x96xf32, #tpu.memory_space<vmem>>, %arg7: memref<32x32xf32, #tpu.memory_space<vmem>>, %arg8: memref<2x96xf32, #tpu.memory_space<vmem>>, %arg9: memref<8x32xf32, #tpu.memory_space<vmem>>, %arg10: memref<32x2048xbf16, #tpu.memory_space<vmem>>, %arg11: memref<1x2048xf32, #tpu.memory_space<vmem>>, %arg12: memref<2048x32xbf16, #tpu.memory_space<vmem>>, %arg13: memref<32x32xf32, #tpu.memory_space<vmem>>, %arg14: memref<16x32xf32, #tpu.memory_space<vmem>>) attributes {dimension_semantics = [], scalar_prefetch = 0 : i64, scratch_operands = 0 : i64, tpu.core_type = #tpu.core_type<tc>} {
    %c0 = arith.constant 0 : index
    %c0_0 = arith.constant 0 : index
    %0 = vector.load %arg8[%c0, %c0_0] : memref<2x96xf32, #tpu.memory_space<vmem>>, vector<1x96xf32>
    %c1 = arith.constant 1 : index
    %c0_1 = arith.constant 0 : index
    %1 = vector.load %arg8[%c1, %c0_1] : memref<2x96xf32, #tpu.memory_space<vmem>>, vector<1x96xf32>
    %c0_2 = arith.constant 0 : index
    %c0_3 = arith.constant 0 : index
    %2 = vector.load %arg9[%c0_2, %c0_3] : memref<8x32xf32, #tpu.memory_space<vmem>>, vector<1x32xf32>
    %c1_4 = arith.constant 1 : index
    %c0_5 = arith.constant 0 : index
    %3 = vector.load %arg9[%c1_4, %c0_5] : memref<8x32xf32, #tpu.memory_space<vmem>>, vector<1x32xf32>
    %c2 = arith.constant 2 : index
    %c0_6 = arith.constant 0 : index
    %4 = vector.load %arg9[%c2, %c0_6] : memref<8x32xf32, #tpu.memory_space<vmem>>, vector<1x32xf32>
    %c3 = arith.constant 3 : index
    %c0_7 = arith.constant 0 : index
    %5 = vector.load %arg9[%c3, %c0_7] : memref<8x32xf32, #tpu.memory_space<vmem>>, vector<1x32xf32>
    %c4 = arith.constant 4 : index
    %c0_8 = arith.constant 0 : index
    %6 = vector.load %arg9[%c4, %c0_8] : memref<8x32xf32, #tpu.memory_space<vmem>>, vector<1x32xf32>
    %c5 = arith.constant 5 : index
    %c0_9 = arith.constant 0 : index
    %7 = vector.load %arg9[%c5, %c0_9] : memref<8x32xf32, #tpu.memory_space<vmem>>, vector<1x32xf32>
    %c6 = arith.constant 6 : index
    %c0_10 = arith.constant 0 : index
    %8 = vector.load %arg9[%c6, %c0_10] : memref<8x32xf32, #tpu.memory_space<vmem>>, vector<1x32xf32>
    %c7 = arith.constant 7 : index
    %c0_11 = arith.constant 0 : index
    %9 = vector.load %arg9[%c7, %c0_11] : memref<8x32xf32, #tpu.memory_space<vmem>>, vector<1x32xf32>
    %c0_12 = arith.constant 0 : index
    %c0_13 = arith.constant 0 : index
    %10 = vector.load %arg2[%c0_12, %c0_13] : memref<8x32xf32, #tpu.memory_space<vmem>>, vector<8x32xf32>
    %11 = tpu.concatenate %10, %10 in 0 : vector<8x32xf32>, vector<8x32xf32> -> vector<16x32xf32>
    %c0_14 = arith.constant 0 : index
    %c0_15 = arith.constant 0 : index
    %12 = vector.load %arg1[%c0_14, %c0_15] : memref<16x32xf32, #tpu.memory_space<vmem>>, vector<16x32xf32>
    %13 = arith.addf %12, %11 : vector<16x32xf32>
    %c0_16 = arith.constant 0 : index
    %c0_17 = arith.constant 0 : index
    %14 = vector.load %arg3[%c0_16, %c0_17] : memref<16x32xf32, #tpu.memory_space<vmem>>, vector<16x32xf32>
    %15 = vector.extract_strided_slice %13 {offsets = [0, 0], sizes = [8, 32], strides = [1, 1]} : vector<16x32xf32> to vector<8x32xf32>
    %16 = vector.extract_strided_slice %14 {offsets = [0, 0], sizes = [8, 32], strides = [1, 1]} : vector<16x32xf32> to vector<8x32xf32>
    %c0_18 = arith.constant 0 : index
    %17 = memref.load %arg0[%c0_18] : memref<4xf32, #tpu.memory_space<smem>>
    %18 = vector.broadcast %17 : f32 to vector<8x32xf32>
    %19 = arith.mulf %18, %15 : vector<8x32xf32>
    %c2_19 = arith.constant 2 : index
    %20 = memref.load %arg0[%c2_19] : memref<4xf32, #tpu.memory_space<smem>>
    %21 = vector.broadcast %20 : f32 to vector<8x32xf32>
    %22 = arith.mulf %21, %16 : vector<8x32xf32>
    %23 = arith.addf %19, %22 : vector<8x32xf32>
    %24 = vector.extract_strided_slice %13 {offsets = [8, 0], sizes = [8, 32], strides = [1, 1]} : vector<16x32xf32> to vector<8x32xf32>
    %25 = vector.extract_strided_slice %14 {offsets = [8, 0], sizes = [8, 32], strides = [1, 1]} : vector<16x32xf32> to vector<8x32xf32>
    %c1_20 = arith.constant 1 : index
    %26 = memref.load %arg0[%c1_20] : memref<4xf32, #tpu.memory_space<smem>>
    %27 = vector.broadcast %26 : f32 to vector<8x32xf32>
    %28 = arith.mulf %27, %24 : vector<8x32xf32>
    %c3_21 = arith.constant 3 : index
    %29 = memref.load %arg0[%c3_21] : memref<4xf32, #tpu.memory_space<smem>>
    %30 = vector.broadcast %29 : f32 to vector<8x32xf32>
    %31 = arith.mulf %30, %25 : vector<8x32xf32>
    %32 = arith.addf %28, %31 : vector<8x32xf32>
    %33 = tpu.concatenate %23, %32 in 0 : vector<8x32xf32>, vector<8x32xf32> -> vector<16x32xf32>
    %34 = tpu.iota {dimensions = array<i32: 0>} : vector<32x8xi32>
    %35 = tpu.iota {dimensions = array<i32: 1>} : vector<32x8xi32>
    %c4_i32 = arith.constant 4 : i32
    %36 = vector.broadcast %c4_i32 : i32 to vector<32x8xi32>
    %37 = arith.muli %35, %36 : vector<32x8xi32>
    %38 = arith.cmpi sle, %37, %34 : vector<32x8xi32>
    %c1_i32 = arith.constant 1 : i32
    %39 = vector.broadcast %c1_i32 : i32 to vector<32x8xi32>
    %40 = arith.addi %35, %39 : vector<32x8xi32>
    %c4_i32_22 = arith.constant 4 : i32
    %41 = vector.broadcast %c4_i32_22 : i32 to vector<32x8xi32>
    %42 = arith.muli %40, %41 : vector<32x8xi32>
    %43 = arith.cmpi slt, %34, %42 : vector<32x8xi32>
    %44 = arith.andi %38, %43 : vector<32x8xi1>
    %45 = arith.extui %44 : vector<32x8xi1> to vector<32x8xi32>
    %46 = arith.sitofp %45 : vector<32x8xi32> to vector<32x8xf32>
    %47 = tpu.iota {dimensions = array<i32: 0>} : vector<8x32xi32>
    %48 = tpu.iota {dimensions = array<i32: 1>} : vector<8x32xi32>
    %c4_i32_23 = arith.constant 4 : i32
    %49 = vector.broadcast %c4_i32_23 : i32 to vector<8x32xi32>
    %50 = arith.muli %47, %49 : vector<8x32xi32>
    %51 = arith.cmpi sle, %50, %48 : vector<8x32xi32>
    %c1_i32_24 = arith.constant 1 : i32
    %52 = vector.broadcast %c1_i32_24 : i32 to vector<8x32xi32>
    %53 = arith.addi %47, %52 : vector<8x32xi32>
    %c4_i32_25 = arith.constant 4 : i32
    %54 = vector.broadcast %c4_i32_25 : i32 to vector<8x32xi32>
    %55 = arith.muli %53, %54 : vector<8x32xi32>
    %56 = arith.cmpi slt, %48, %55 : vector<8x32xi32>
    %57 = arith.andi %51, %56 : vector<8x32xi1>
    %58 = arith.extui %57 : vector<8x32xi1> to vector<8x32xi32>
    %59 = arith.sitofp %58 : vector<8x32xi32> to vector<8x32xf32>
    %c0_26 = arith.constant 0 : index
    %c0_27 = arith.constant 0 : index
    %60 = vector.load %arg4[%c0_26, %c0_27] : memref<32x96xf32, #tpu.memory_space<vmem>>, vector<32x96xf32>
    %c0_28 = arith.constant 0 : index
    %c0_29 = arith.constant 0 : index
    %61 = vector.load %arg5[%c0_28, %c0_29] : memref<32x32xf32, #tpu.memory_space<vmem>>, vector<32x32xf32>
    %62 = tpu.concatenate %33, %13 in 0 : vector<16x32xf32>, vector<16x32xf32> -> vector<32x32xf32>
    %cst = arith.constant dense<0.000000e+00> : vector<32x96xf32>
    %63 = tpu.matmul %62, %60, %cst {dimension_numbers = #tpu.dot_dimension_numbers<[1], [0], [0], [1], [0, 0, 1, 1], [], []>} : vector<32x32xf32>, vector<32x96xf32>, vector<32x96xf32> -> vector<32x96xf32>
    %64 = vector.broadcast %0 : vector<1x96xf32> to vector<32x96xf32>
    %65 = arith.addf %63, %64 : vector<32x96xf32>
    %66 = vector.extract_strided_slice %65 {offsets = [0, 0], sizes = [16, 32], strides = [1, 1]} : vector<32x96xf32> to vector<16x32xf32>
    %cst_30 = arith.constant 5.000000e-01 : f32
    %67 = vector.broadcast %cst_30 : f32 to vector<16x32xf32>
    %68 = arith.mulf %66, %67 : vector<16x32xf32>
    %69 = vector.extract_strided_slice %65 {offsets = [16, 32], sizes = [16, 32], strides = [1, 1]} : vector<32x96xf32> to vector<16x32xf32>
    %70 = vector.extract_strided_slice %65 {offsets = [16, 64], sizes = [16, 32], strides = [1, 1]} : vector<32x96xf32> to vector<16x32xf32>
    %71 = vector.extract_strided_slice %68 {offsets = [0, 0], sizes = [8, 32], strides = [1, 1]} : vector<16x32xf32> to vector<8x32xf32>
    %72 = vector.extract_strided_slice %68 {offsets = [0, 0], sizes = [8, 32], strides = [1, 1]} : vector<16x32xf32> to vector<8x32xf32>
    %73 = vector.extract_strided_slice %68 {offsets = [8, 0], sizes = [8, 32], strides = [1, 1]} : vector<16x32xf32> to vector<8x32xf32>
    %74 = vector.extract_strided_slice %68 {offsets = [8, 0], sizes = [8, 32], strides = [1, 1]} : vector<16x32xf32> to vector<8x32xf32>
    %75 = tpu.concatenate %71, %72, %73, %74 in 0 : vector<8x32xf32>, vector<8x32xf32>, vector<8x32xf32>, vector<8x32xf32> -> vector<32x32xf32>
    %76 = tpu.concatenate %69, %69 in 0 : vector<16x32xf32>, vector<16x32xf32> -> vector<32x32xf32>
    %77 = arith.mulf %75, %76 : vector<32x32xf32>
    %cst_31 = arith.constant dense<0.000000e+00> : vector<32x8xf32>
    %78 = tpu.matmul %77, %46, %cst_31 {dimension_numbers = #tpu.dot_dimension_numbers<[1], [0], [0], [1], [0, 0, 1, 1], [], []>} : vector<32x32xf32>, vector<32x8xf32>, vector<32x8xf32> -> vector<32x8xf32>
    %79 = vector.extract_strided_slice %78 {offsets = [0, 0], sizes = [8, 8], strides = [1, 1]} : vector<32x8xf32> to vector<8x8xf32>
    %80 = vector.extract_strided_slice %78 {offsets = [8, 0], sizes = [8, 8], strides = [1, 1]} : vector<32x8xf32> to vector<8x8xf32>
    %81 = arith.maximumf %79, %80 : vector<8x8xf32>
    %82 = vector.extract_strided_slice %78 {offsets = [16, 0], sizes = [8, 8], strides = [1, 1]} : vector<32x8xf32> to vector<8x8xf32>
    %83 = vector.extract_strided_slice %78 {offsets = [24, 0], sizes = [8, 8], strides = [1, 1]} : vector<32x8xf32> to vector<8x8xf32>
    %84 = arith.maximumf %82, %83 : vector<8x8xf32>
    %85 = tpu.concatenate %81, %81, %84, %84 in 0 : vector<8x8xf32>, vector<8x8xf32>, vector<8x8xf32>, vector<8x8xf32> -> vector<32x8xf32>
    %86 = arith.subf %78, %85 : vector<32x8xf32>
    %87 = math.exp %86 : vector<32x8xf32>
    %88 = vector.extract_strided_slice %87 {offsets = [0, 0], sizes = [8, 8], strides = [1, 1]} : vector<32x8xf32> to vector<8x8xf32>
    %89 = vector.extract_strided_slice %87 {offsets = [8, 0], sizes = [8, 8], strides = [1, 1]} : vector<32x8xf32> to vector<8x8xf32>
    %90 = arith.addf %88, %89 : vector<8x8xf32>
    %91 = tpu.reciprocal %90 {approx = true} : vector<8x8xf32> -> vector<8x8xf32>
    %92 = vector.extract_strided_slice %87 {offsets = [16, 0], sizes = [8, 8], strides = [1, 1]} : vector<32x8xf32> to vector<8x8xf32>
    %93 = vector.extract_strided_slice %87 {offsets = [24, 0], sizes = [8, 8], strides = [1, 1]} : vector<32x8xf32> to vector<8x8xf32>
    %94 = arith.addf %92, %93 : vector<8x8xf32>
    %95 = tpu.reciprocal %94 {approx = true} : vector<8x8xf32> -> vector<8x8xf32>
    %96 = tpu.concatenate %91, %91, %95, %95 in 0 : vector<8x8xf32>, vector<8x8xf32>, vector<8x8xf32>, vector<8x8xf32> -> vector<32x8xf32>
    %97 = arith.mulf %87, %96 : vector<32x8xf32>
    %cst_32 = arith.constant dense<0.000000e+00> : vector<32x32xf32>
    %98 = tpu.matmul %97, %59, %cst_32 {dimension_numbers = #tpu.dot_dimension_numbers<[1], [0], [0], [1], [0, 0, 1, 1], [], []>} : vector<32x8xf32>, vector<8x32xf32>, vector<32x32xf32> -> vector<32x32xf32>
    %99 = tpu.concatenate %70, %70 in 0 : vector<16x32xf32>, vector<16x32xf32> -> vector<32x32xf32>
    %100 = arith.mulf %98, %99 : vector<32x32xf32>
    %101 = vector.extract_strided_slice %100 {offsets = [0, 0], sizes = [8, 32], strides = [1, 1]} : vector<32x32xf32> to vector<8x32xf32>
    %102 = vector.extract_strided_slice %100 {offsets = [8, 0], sizes = [8, 32], strides = [1, 1]} : vector<32x32xf32> to vector<8x32xf32>
    %103 = arith.addf %101, %102 : vector<8x32xf32>
    %104 = vector.extract_strided_slice %100 {offsets = [16, 0], sizes = [8, 32], strides = [1, 1]} : vector<32x32xf32> to vector<8x32xf32>
    %105 = vector.extract_strided_slice %100 {offsets = [24, 0], sizes = [8, 32], strides = [1, 1]} : vector<32x32xf32> to vector<8x32xf32>
    %106 = arith.addf %104, %105 : vector<8x32xf32>
    %107 = tpu.concatenate %103, %106 in 0 : vector<8x32xf32>, vector<8x32xf32> -> vector<16x32xf32>
    %cst_33 = arith.constant dense<0.000000e+00> : vector<16x32xf32>
    %108 = tpu.matmul %107, %61, %cst_33 {dimension_numbers = #tpu.dot_dimension_numbers<[1], [0], [0], [1], [0, 0, 1, 1], [], []>} : vector<16x32xf32>, vector<32x32xf32>, vector<16x32xf32> -> vector<16x32xf32>
    %109 = vector.broadcast %2 : vector<1x32xf32> to vector<16x32xf32>
    %110 = arith.addf %108, %109 : vector<16x32xf32>
    %111 = arith.addf %33, %110 : vector<16x32xf32>
    %c0_34 = arith.constant 0 : index
    %c0_35 = arith.constant 0 : index
    %112 = vector.load %arg6[%c0_34, %c0_35] : memref<32x96xf32, #tpu.memory_space<vmem>>, vector<32x96xf32>
    %c0_36 = arith.constant 0 : index
    %c0_37 = arith.constant 0 : index
    %113 = vector.load %arg7[%c0_36, %c0_37] : memref<32x32xf32, #tpu.memory_space<vmem>>, vector<32x32xf32>
    %cst_38 = arith.constant dense<0.000000e+00> : vector<16x96xf32>
    %114 = tpu.matmul %111, %112, %cst_38 {dimension_numbers = #tpu.dot_dimension_numbers<[1], [0], [0], [1], [0, 0, 1, 1], [], []>} : vector<16x32xf32>, vector<32x96xf32>, vector<16x96xf32> -> vector<16x96xf32>
    %115 = vector.broadcast %1 : vector<1x96xf32> to vector<16x96xf32>
    %116 = arith.addf %114, %115 : vector<16x96xf32>
    %117 = vector.extract_strided_slice %116 {offsets = [0, 0], sizes = [16, 32], strides = [1, 1]} : vector<16x96xf32> to vector<16x32xf32>
    %cst_39 = arith.constant 5.000000e-01 : f32
    %118 = vector.broadcast %cst_39 : f32 to vector<16x32xf32>
    %119 = arith.mulf %117, %118 : vector<16x32xf32>
    %120 = vector.extract_strided_slice %116 {offsets = [0, 32], sizes = [16, 32], strides = [1, 1]} : vector<16x96xf32> to vector<16x32xf32>
    %121 = vector.extract_strided_slice %116 {offsets = [0, 64], sizes = [16, 32], strides = [1, 1]} : vector<16x96xf32> to vector<16x32xf32>
    %122 = vector.extract_strided_slice %119 {offsets = [0, 0], sizes = [8, 32], strides = [1, 1]} : vector<16x32xf32> to vector<8x32xf32>
    %123 = vector.extract_strided_slice %119 {offsets = [0, 0], sizes = [8, 32], strides = [1, 1]} : vector<16x32xf32> to vector<8x32xf32>
    %124 = vector.extract_strided_slice %119 {offsets = [8, 0], sizes = [8, 32], strides = [1, 1]} : vector<16x32xf32> to vector<8x32xf32>
    %125 = vector.extract_strided_slice %119 {offsets = [8, 0], sizes = [8, 32], strides = [1, 1]} : vector<16x32xf32> to vector<8x32xf32>
    %126 = tpu.concatenate %122, %123, %124, %125 in 0 : vector<8x32xf32>, vector<8x32xf32>, vector<8x32xf32>, vector<8x32xf32> -> vector<32x32xf32>
    %127 = tpu.concatenate %120, %120 in 0 : vector<16x32xf32>, vector<16x32xf32> -> vector<32x32xf32>
    %128 = arith.mulf %126, %127 : vector<32x32xf32>
    %cst_40 = arith.constant dense<0.000000e+00> : vector<32x8xf32>
    %129 = tpu.matmul %128, %46, %cst_40 {dimension_numbers = #tpu.dot_dimension_numbers<[1], [0], [0], [1], [0, 0, 1, 1], [], []>} : vector<32x32xf32>, vector<32x8xf32>, vector<32x8xf32> -> vector<32x8xf32>
    %130 = vector.extract_strided_slice %129 {offsets = [0, 0], sizes = [8, 8], strides = [1, 1]} : vector<32x8xf32> to vector<8x8xf32>
    %131 = vector.extract_strided_slice %129 {offsets = [8, 0], sizes = [8, 8], strides = [1, 1]} : vector<32x8xf32> to vector<8x8xf32>
    %132 = arith.maximumf %130, %131 : vector<8x8xf32>
    %133 = vector.extract_strided_slice %129 {offsets = [16, 0], sizes = [8, 8], strides = [1, 1]} : vector<32x8xf32> to vector<8x8xf32>
    %134 = vector.extract_strided_slice %129 {offsets = [24, 0], sizes = [8, 8], strides = [1, 1]} : vector<32x8xf32> to vector<8x8xf32>
    %135 = arith.maximumf %133, %134 : vector<8x8xf32>
    %136 = tpu.concatenate %132, %132, %135, %135 in 0 : vector<8x8xf32>, vector<8x8xf32>, vector<8x8xf32>, vector<8x8xf32> -> vector<32x8xf32>
    %137 = arith.subf %129, %136 : vector<32x8xf32>
    %138 = math.exp %137 : vector<32x8xf32>
    %139 = vector.extract_strided_slice %138 {offsets = [0, 0], sizes = [8, 8], strides = [1, 1]} : vector<32x8xf32> to vector<8x8xf32>
    %140 = vector.extract_strided_slice %138 {offsets = [8, 0], sizes = [8, 8], strides = [1, 1]} : vector<32x8xf32> to vector<8x8xf32>
    %141 = arith.addf %139, %140 : vector<8x8xf32>
    %142 = tpu.reciprocal %141 {approx = true} : vector<8x8xf32> -> vector<8x8xf32>
    %143 = vector.extract_strided_slice %138 {offsets = [16, 0], sizes = [8, 8], strides = [1, 1]} : vector<32x8xf32> to vector<8x8xf32>
    %144 = vector.extract_strided_slice %138 {offsets = [24, 0], sizes = [8, 8], strides = [1, 1]} : vector<32x8xf32> to vector<8x8xf32>
    %145 = arith.addf %143, %144 : vector<8x8xf32>
    %146 = tpu.reciprocal %145 {approx = true} : vector<8x8xf32> -> vector<8x8xf32>
    %147 = tpu.concatenate %142, %142, %146, %146 in 0 : vector<8x8xf32>, vector<8x8xf32>, vector<8x8xf32>, vector<8x8xf32> -> vector<32x8xf32>
    %148 = arith.mulf %138, %147 : vector<32x8xf32>
    %cst_41 = arith.constant dense<0.000000e+00> : vector<32x32xf32>
    %149 = tpu.matmul %148, %59, %cst_41 {dimension_numbers = #tpu.dot_dimension_numbers<[1], [0], [0], [1], [0, 0, 1, 1], [], []>} : vector<32x8xf32>, vector<8x32xf32>, vector<32x32xf32> -> vector<32x32xf32>
    %150 = tpu.concatenate %121, %121 in 0 : vector<16x32xf32>, vector<16x32xf32> -> vector<32x32xf32>
    %151 = arith.mulf %149, %150 : vector<32x32xf32>
    %152 = vector.extract_strided_slice %151 {offsets = [0, 0], sizes = [8, 32], strides = [1, 1]} : vector<32x32xf32> to vector<8x32xf32>
    %153 = vector.extract_strided_slice %151 {offsets = [8, 0], sizes = [8, 32], strides = [1, 1]} : vector<32x32xf32> to vector<8x32xf32>
    %154 = arith.addf %152, %153 : vector<8x32xf32>
    %155 = vector.extract_strided_slice %151 {offsets = [16, 0], sizes = [8, 32], strides = [1, 1]} : vector<32x32xf32> to vector<8x32xf32>
    %156 = vector.extract_strided_slice %151 {offsets = [24, 0], sizes = [8, 32], strides = [1, 1]} : vector<32x32xf32> to vector<8x32xf32>
    %157 = arith.addf %155, %156 : vector<8x32xf32>
    %158 = tpu.concatenate %154, %157 in 0 : vector<8x32xf32>, vector<8x32xf32> -> vector<16x32xf32>
    %cst_42 = arith.constant dense<0.000000e+00> : vector<16x32xf32>
    %159 = tpu.matmul %158, %113, %cst_42 {dimension_numbers = #tpu.dot_dimension_numbers<[1], [0], [0], [1], [0, 0, 1, 1], [], []>} : vector<16x32xf32>, vector<32x32xf32>, vector<16x32xf32> -> vector<16x32xf32>
    %160 = vector.broadcast %3 : vector<1x32xf32> to vector<16x32xf32>
    %161 = arith.addf %159, %160 : vector<16x32xf32>
    %162 = arith.addf %111, %161 : vector<16x32xf32>
    %cst_43 = arith.constant dense<0.000000e+00> : vector<16xf32>
    %163 = vector.multi_reduction <add>, %162, %cst_43 [1] : vector<16x32xf32> to vector<16xf32>
    %164 = vector.shape_cast %163 : vector<16xf32> to vector<16x1xf32>
    %cst_44 = arith.constant 3.200000e+01 : f32
    %165 = vector.broadcast %cst_44 : f32 to vector<16x1xf32>
    %166 = arith.divf %164, %165 : vector<16x1xf32>
    %167 = vector.broadcast %166 : vector<16x1xf32> to vector<16x32xf32>
    %168 = arith.subf %162, %167 : vector<16x32xf32>
    %169 = arith.mulf %168, %168 : vector<16x32xf32>
    %cst_45 = arith.constant dense<0.000000e+00> : vector<16xf32>
    %170 = vector.multi_reduction <add>, %169, %cst_45 [1] : vector<16x32xf32> to vector<16xf32>
    %171 = vector.shape_cast %170 : vector<16xf32> to vector<16x1xf32>
    %cst_46 = arith.constant 3.200000e+01 : f32
    %172 = vector.broadcast %cst_46 : f32 to vector<16x1xf32>
    %173 = arith.divf %171, %172 : vector<16x1xf32>
    %cst_47 = arith.constant 9.99999974E-6 : f32
    %174 = vector.broadcast %cst_47 : f32 to vector<16x1xf32>
    %175 = arith.addf %173, %174 : vector<16x1xf32>
    %176 = math.rsqrt %175 : vector<16x1xf32>
    %177 = vector.broadcast %176 : vector<16x1xf32> to vector<16x32xf32>
    %178 = arith.mulf %168, %177 : vector<16x32xf32>
    %179 = vector.broadcast %4 : vector<1x32xf32> to vector<16x32xf32>
    %180 = arith.mulf %178, %179 : vector<16x32xf32>
    %181 = vector.broadcast %5 : vector<1x32xf32> to vector<16x32xf32>
    %182 = arith.addf %180, %181 : vector<16x32xf32>
    %183 = arith.truncf %182 : vector<16x32xf32> to vector<16x32xbf16>
    %c0_48 = arith.constant 0 : index
    %c0_49 = arith.constant 0 : index
    %184 = vector.load %arg10[%c0_48, %c0_49] : memref<32x2048xbf16, #tpu.memory_space<vmem>>, vector<32x2048xbf16>
    %cst_50 = arith.constant dense<0.000000e+00> : vector<16x2048xf32>
    %185 = tpu.matmul %183, %184, %cst_50 {dimension_numbers = #tpu.dot_dimension_numbers<[1], [0], [0], [1], [0, 0, 1, 1], [], []>} : vector<16x32xbf16>, vector<32x2048xbf16>, vector<16x2048xf32> -> vector<16x2048xf32>
    %c0_51 = arith.constant 0 : index
    %c0_52 = arith.constant 0 : index
    %186 = vector.load %arg11[%c0_51, %c0_52] : memref<1x2048xf32, #tpu.memory_space<vmem>>, vector<1x2048xf32>
    %187 = vector.broadcast %186 : vector<1x2048xf32> to vector<16x2048xf32>
    %188 = arith.addf %185, %187 : vector<16x2048xf32>
    %cst_53 = arith.constant 0.000000e+00 : f32
    %189 = vector.broadcast %cst_53 : f32 to vector<16x2048xf32>
    %190 = arith.maximumf %188, %189 : vector<16x2048xf32>
    %191 = arith.truncf %190 : vector<16x2048xf32> to vector<16x2048xbf16>
    %c0_54 = arith.constant 0 : index
    %c0_55 = arith.constant 0 : index
    %192 = vector.load %arg12[%c0_54, %c0_55] : memref<2048x32xbf16, #tpu.memory_space<vmem>>, vector<2048x32xbf16>
    %cst_56 = arith.constant dense<0.000000e+00> : vector<16x32xf32>
    %193 = tpu.matmul %191, %192, %cst_56 {dimension_numbers = #tpu.dot_dimension_numbers<[1], [0], [0], [1], [0, 0, 1, 1], [], []>} : vector<16x2048xbf16>, vector<2048x32xbf16>, vector<16x32xf32> -> vector<16x32xf32>
    %194 = vector.broadcast %8 : vector<1x32xf32> to vector<16x32xf32>
    %195 = arith.addf %193, %194 : vector<16x32xf32>
    %196 = arith.addf %182, %195 : vector<16x32xf32>
    %cst_57 = arith.constant dense<0.000000e+00> : vector<16xf32>
    %197 = vector.multi_reduction <add>, %196, %cst_57 [1] : vector<16x32xf32> to vector<16xf32>
    %198 = vector.shape_cast %197 : vector<16xf32> to vector<16x1xf32>
    %cst_58 = arith.constant 3.200000e+01 : f32
    %199 = vector.broadcast %cst_58 : f32 to vector<16x1xf32>
    %200 = arith.divf %198, %199 : vector<16x1xf32>
    %201 = vector.broadcast %200 : vector<16x1xf32> to vector<16x32xf32>
    %202 = arith.subf %196, %201 : vector<16x32xf32>
    %203 = arith.mulf %202, %202 : vector<16x32xf32>
    %cst_59 = arith.constant dense<0.000000e+00> : vector<16xf32>
    %204 = vector.multi_reduction <add>, %203, %cst_59 [1] : vector<16x32xf32> to vector<16xf32>
    %205 = vector.shape_cast %204 : vector<16xf32> to vector<16x1xf32>
    %cst_60 = arith.constant 3.200000e+01 : f32
    %206 = vector.broadcast %cst_60 : f32 to vector<16x1xf32>
    %207 = arith.divf %205, %206 : vector<16x1xf32>
    %cst_61 = arith.constant 9.99999974E-6 : f32
    %208 = vector.broadcast %cst_61 : f32 to vector<16x1xf32>
    %209 = arith.addf %207, %208 : vector<16x1xf32>
    %210 = math.rsqrt %209 : vector<16x1xf32>
    %211 = vector.broadcast %210 : vector<16x1xf32> to vector<16x32xf32>
    %212 = arith.mulf %202, %211 : vector<16x32xf32>
    %213 = vector.broadcast %6 : vector<1x32xf32> to vector<16x32xf32>
    %214 = arith.mulf %212, %213 : vector<16x32xf32>
    %215 = vector.broadcast %7 : vector<1x32xf32> to vector<16x32xf32>
    %216 = arith.addf %214, %215 : vector<16x32xf32>
    %c0_62 = arith.constant 0 : index
    %c0_63 = arith.constant 0 : index
    %217 = vector.load %arg13[%c0_62, %c0_63] : memref<32x32xf32, #tpu.memory_space<vmem>>, vector<32x32xf32>
    %cst_64 = arith.constant dense<0.000000e+00> : vector<16x32xf32>
    %218 = tpu.matmul %216, %217, %cst_64 {dimension_numbers = #tpu.dot_dimension_numbers<[1], [0], [0], [1], [0, 0, 1, 1], [], []>} : vector<16x32xf32>, vector<32x32xf32>, vector<16x32xf32> -> vector<16x32xf32>
    %219 = vector.broadcast %9 : vector<1x32xf32> to vector<16x32xf32>
    %220 = arith.addf %218, %219 : vector<16x32xf32>
    %c0_65 = arith.constant 0 : index
    %c0_66 = arith.constant 0 : index
    %221 = vector.load %arg14[%c0_65, %c0_66] : memref<16x32xf32, #tpu.memory_space<vmem>>, vector<16x32xf32>
    tpu.vector_store %arg14[%c0_65, %c0_66], %220 {strides = array<i32>} : memref<16x32xf32, #tpu.memory_space<vmem>>, vector<16x32xf32>,
    return
  }
}

</mosaic_0001>

<llo_original>
// kernel: text_diffusion_forward.1
$region0: #{text_diffusion_forward.1}
  #allocation0 [shape = 'u32[]', space=smem, size = 0x4, offset = 0x4, fixed_abs, tag = 'smem constant byte address 0x4 - core index']
  #allocation1 [shape = 'u32[144,128]{1,0:T(1,128)}', space=vmem, size = 0x12000, scoped, tag = 'internal scratch']
  %s0 = inlined_call_operand.vmem [shape: f32[4], index: 0, kind: input, shape index: {}]
  %s1 = inlined_call_operand.vmem [shape: f32[16,32], index: 1, kind: input, shape index: {}]
  %s2 = inlined_call_operand.vmem [shape: f32[8,32], index: 2, kind: input, shape index: {}]
  %s3 = inlined_call_operand.vmem [shape: f32[16,32], index: 3, kind: input, shape index: {}]
  %s4 = inlined_call_operand.vmem [shape: f32[32,96], index: 4, kind: input, shape index: {}]
  %s5 = inlined_call_operand.vmem [shape: f32[32,32], index: 5, kind: input, shape index: {}]
  %s6 = inlined_call_operand.vmem [shape: f32[32,96], index: 6, kind: input, shape index: {}]
  %s7 = inlined_call_operand.vmem [shape: f32[32,32], index: 7, kind: input, shape index: {}]
  %s8 = inlined_call_operand.vmem [shape: f32[2,96], index: 8, kind: input, shape index: {}]
  %s9 = inlined_call_operand.vmem [shape: f32[8,32], index: 9, kind: input, shape index: {}]
  %s10 = inlined_call_operand.vmem [shape: bf16[32,2048], index: 10, kind: input, shape index: {}]
  %s11 = inlined_call_operand.vmem [shape: f32[1,2048], index: 11, kind: input, shape index: {}]
  %s12 = inlined_call_operand.vmem [shape: bf16[2048,32], index: 12, kind: input, shape index: {}]
  %s13 = inlined_call_operand.vmem [shape: f32[32,32], index: 13, kind: input, shape index: {}]
  %s14 = inlined_call_operand.hbm [shape: f32[16,32], index: 14, kind: output, shape index: {}]
  %s15 = sld [smem:[#allocation0]]
  $region70: #{text_diffusion_forward.1} parent=0
    _
  %s17 = ssub.s32 1, %s15
  %s18 = scalar_select 0, %s17, %s15
  $region1: #{text_diffusion_forward.1} parent=0
    #allocation2 [shape = 'u8[512]{0}', space=smem, size = 0x200, scoped, tag = 'input window, operand 0, single buffered']
    #allocation3 [shape = 's32[1]{0}', space=sflag, size = 0x4, scoped, tag = 'scoped memory for text_diffusion_forward.1']
    #allocation4 [shape = 's32[1]{0}', space=sflag, size = 0x4, scoped, tag = 'scoped memory for text_diffusion_forward.1']
    #allocation5 [shape = 'u8[8192]{0}', space=vmem, size = 0x2000, scoped, tag = 'output window, operand 0, single buffered']
    %19 = vsyncpa [#allocation4], 0
    %20 = vsyncpa [#allocation3], 0
    // Predicated region
    $region2: #{text_diffusion_forward.1} parent=1 // pred_check
      _
    $region3: #{text_diffusion_forward.1} parent=1 // pred_check_branch
      %22 = sbr.rel (0) target = $region5
    $region4: #{text_diffusion_forward.1} parent=1 // pred_region
      %s24 = ssub.s32 16, 16
      %25 = vsyncadd [#allocation4], %s24
      %s27 = sshll.u32 %s0, 4
      %s28 = int_to_ptr.vmem [resolvable:$true] %s27
      %30 = dma.vmem_to_smem %s28, 16, [#allocation2], [#allocation4]
    $region5: #{text_diffusion_forward.1} parent=1 // pred_fallthru
      _
    // Predicated region
    $region6: #{text_diffusion_forward.1} parent=1 // pred_check
      _
    $region7: #{text_diffusion_forward.1} parent=1 // pred_check_branch
      %32 = sbr.rel (0) target = $region9
    $region8: #{text_diffusion_forward.1} parent=1 // pred_region
      _
    $region9: #{text_diffusion_forward.1} parent=1 // pred_fallthru
      _
    // Predicated region
    $region10: #{text_diffusion_forward.1} parent=1 // pred_check
      _
    $region11: #{text_diffusion_forward.1} parent=1 // pred_check_branch
      %34 = sbr.rel (0) target = $region13
    $region12: #{text_diffusion_forward.1} parent=1 // pred_region
      _
    $region13: #{text_diffusion_forward.1} parent=1 // pred_fallthru
      _
    // Predicated region
    $region14: #{text_diffusion_forward.1} parent=1 // pred_check
      _
    $region15: #{text_diffusion_forward.1} parent=1 // pred_check_branch
      %36 = sbr.rel (0) target = $region17
    $region16: #{text_diffusion_forward.1} parent=1 // pred_region
      _
    $region17: #{text_diffusion_forward.1} parent=1 // pred_fallthru
      _
    // Predicated region
    $region18: #{text_diffusion_forward.1} parent=1 // pred_check
      _
    $region19: #{text_diffusion_forward.1} parent=1 // pred_check_branch
      %38 = sbr.rel (0) target = $region21
    $region20: #{text_diffusion_forward.1} parent=1 // pred_region
      _
    $region21: #{text_diffusion_forward.1} parent=1 // pred_fallthru
      _
    // Predicated region
    $region22: #{text_diffusion_forward.1} parent=1 // pred_check
      _
    $region23: #{text_diffusion_forward.1} parent=1 // pred_check_branch
      %40 = sbr.rel (0) target = $region25
    $region24: #{text_diffusion_forward.1} parent=1 // pred_region
      _
    $region25: #{text_diffusion_forward.1} parent=1 // pred_fallthru
      _
    // Predicated region
    $region26: #{text_diffusion_forward.1} parent=1 // pred_check
      _
    $region27: #{text_diffusion_forward.1} parent=1 // pred_check_branch
      %42 = sbr.rel (0) target = $region29
    $region28: #{text_diffusion_forward.1} parent=1 // pred_region
      _
    $region29: #{text_diffusion_forward.1} parent=1 // pred_fallthru
      _
    // Predicated region
    $region30: #{text_diffusion_forward.1} parent=1 // pred_check
      _
    $region31: #{text_diffusion_forward.1} parent=1 // pred_check_branch
      %44 = sbr.rel (0) target = $region33
    $region32: #{text_diffusion_forward.1} parent=1 // pred_region
      _
    $region33: #{text_diffusion_forward.1} parent=1 // pred_fallthru
      _
    // Predicated region
    $region34: #{text_diffusion_forward.1} parent=1 // pred_check
      _
    $region35: #{text_diffusion_forward.1} parent=1 // pred_check_branch
      %46 = sbr.rel (0) target = $region37
    $region36: #{text_diffusion_forward.1} parent=1 // pred_region
      _
    $region37: #{text_diffusion_forward.1} parent=1 // pred_fallthru
      _
    // Predicated region
    $region38: #{text_diffusion_forward.1} parent=1 // pred_check
      _
    $region39: #{text_diffusion_forward.1} parent=1 // pred_check_branch
      %48 = sbr.rel (0) target = $region41
    $region40: #{text_diffusion_forward.1} parent=1 // pred_region
      _
    $region41: #{text_diffusion_forward.1} parent=1 // pred_fallthru
      _
    // Predicated region
    $region42: #{text_diffusion_forward.1} parent=1 // pred_check
      _
    $region43: #{text_diffusion_forward.1} parent=1 // pred_check_branch
      %50 = sbr.rel (0) target = $region45
    $region44: #{text_diffusion_forward.1} parent=1 // pred_region
      _
    $region45: #{text_diffusion_forward.1} parent=1 // pred_fallthru
      _
    // Predicated region
    $region46: #{text_diffusion_forward.1} parent=1 // pred_check
      _
    $region47: #{text_diffusion_forward.1} parent=1 // pred_check_branch
      %52 = sbr.rel (0) target = $region49
    $region48: #{text_diffusion_forward.1} parent=1 // pred_region
      _
    $region49: #{text_diffusion_forward.1} parent=1 // pred_fallthru
      _
    // Predicated region
    $region50: #{text_diffusion_forward.1} parent=1 // pred_check
      _
    $region51: #{text_diffusion_forward.1} parent=1 // pred_check_branch
      %54 = sbr.rel (0) target = $region53
    $region52: #{text_diffusion_forward.1} parent=1 // pred_region
      _
    $region53: #{text_diffusion_forward.1} parent=1 // pred_fallthru
      _
    // Predicated region
    $region54: #{text_diffusion_forward.1} parent=1 // pred_check
      _
    $region55: #{text_diffusion_forward.1} parent=1 // pred_check_branch
      %56 = sbr.rel (0) target = $region57
    $region56: #{text_diffusion_forward.1} parent=1 // pred_region
      _
    $region57: #{text_diffusion_forward.1} parent=1 // pred_fallthru
      _
    // Predicated region
    $region58: #{text_diffusion_forward.1} parent=1 // pred_check
      _
    $region59: #{text_diffusion_forward.1} parent=1 // pred_check_branch
      %58 = sbr.rel (0) target = $region61
    $region60: #{text_diffusion_forward.1} parent=1 // pred_region
      %59 = dma.done [#allocation4], 16
    $region61: #{text_diffusion_forward.1} parent=1 // pred_fallthru
      _
    %60 = sfence
    %v62 = vld [vmem:[%s8] sm:$0x1]
    %v63 = vld [vmem:[%s8 + $0x1] sm:$0x1]
    %v64 = vld [vmem:[%s9] sm:$0x1]
    %v65 = vld [vmem:[%s9 + $0x1] sm:$0x1]
    %v66 = vld [vmem:[%s9 + $0x2] sm:$0x1]
    %v67 = vld [vmem:[%s9 + $0x3] sm:$0x1]
    %v68 = vld [vmem:[%s9 + $0x4] sm:$0x1]
    %v69 = vld [vmem:[%s9 + $0x5] sm:$0x1]
    %v70 = vld [vmem:[%s9 + $0x6] sm:$0x1]
    %v71 = vld [vmem:[%s9 + $0x7] sm:$0x1]
    %v72 = vld [vmem:[%s2] sm:$0xff]
    %v73 = vld [vmem:[%s1] sm:$0xff]
    %v74 = vld [vmem:[%s1 + $0x8] sm:$0xff]
    %v75 = vadd.f32 %v73, %v72
    %v76 = vadd.f32 %v74, %v72
    %v77 = vld [vmem:[%s3] sm:$0xff]
    %v78 = vld [vmem:[%s3 + $0x8] sm:$0xff]
    %s79 = sld [smem:[#allocation2]]
    %v80 = vstv %s79
    %v81 = vmul.f32 %v80, %v75
    %s82 = sld [smem:[#allocation2 + $0x2]]
    %v83 = vstv %s82
    %v84 = vmul.f32 %v83, %v77
    %v85 = vadd.f32 %v81, %v84
    %s86 = sld [smem:[#allocation2 + $0x1]]
    %v87 = vstv %s86
    %v88 = vmul.f32 %v87, %v76
    %s89 = sld [smem:[#allocation2 + $0x3]]
    %v90 = vstv %s89
    %v91 = vmul.f32 %v90, %v78
    %v92 = vadd.f32 %v88, %v91
    %v93 = vlaneseq
    %v94 = vshrl.u32 %v93, 7
    %v95 = vadd.s32 %v94, 8
    %v96 = vadd.s32 %v94, 16
    %v97 = vadd.s32 %v94, 24
    %v98 = vlaneseq
    %v99 = vand.u32 %v98, 127
    %v100 = vmul.u32 %v99, 4
    %vm101 = vcmp.le.s32.totalorder %v100, %v94
    %vm102 = vcmp.le.s32.totalorder %v100, %v95
    %vm103 = vcmp.le.s32.totalorder %v100, %v96
    %vm104 = vcmp.le.s32.totalorder %v100, %v97
    %v105 = vadd.s32 %v99, 1
    %v106 = vmul.u32 %v105, 4
    %vm107 = vcmp.lt.s32.totalorder %v94, %v106
    %vm108 = vcmp.lt.s32.totalorder %v95, %v106
    %vm109 = vcmp.lt.s32.totalorder %v96, %v106
    %vm110 = vcmp.lt.s32.totalorder %v97, %v106
    %vm111 = vmand %vm101, %vm107
    %vm112 = vmand %vm102, %vm108
    %vm113 = vmand %vm103, %vm109
    %vm114 = vmand %vm104, %vm110
    %v115 = vsel %vm111, 1, 0
    %v116 = vsel %vm112, 1, 0
    %v117 = vsel %vm113, 1, 0
    %v118 = vsel %vm114, 1, 0
    %v119 = vcvt.s32.f32 %v115
    %v120 = vcvt.s32.f32 %v116
    %v121 = vcvt.s32.f32 %v117
    %v122 = vcvt.s32.f32 %v118
    %v123 = vmul.u32 %v94, 4
    %vm124 = vcmp.le.s32.totalorder %v123, %v99
    %v125 = vadd.s32 %v94, 1
    %v126 = vmul.u32 %v125, 4
    %vm127 = vcmp.lt.s32.totalorder %v99, %v126
    %vm128 = vmand %vm124, %vm127
    %v129 = vsel %vm128, 1, 0
    %v130 = vcvt.s32.f32 %v129
    %v131 = vld [vmem:[%s4] sm:$0xff]
    %v132 = vld [vmem:[%s4 + $0x8] sm:$0xff]
    %v133 = vld [vmem:[%s4 + $0x10] sm:$0xff]
    %v134 = vld [vmem:[%s4 + $0x18] sm:$0xff]
    %v135 = vld [vmem:[%s5] sm:$0xff]
    %v136 = vld [vmem:[%s5 + $0x8] sm:$0xff]
    %v137 = vld [vmem:[%s5 + $0x10] sm:$0xff]
    %v138 = vld [vmem:[%s5 + $0x18] sm:$0xff]
    %v139 = vlaneseq
    %v140 = vshrl.u32 %v139, 7
    %v141 = vsub.s32 0, %v140
    %v142 = vrot.slane %v62, %v141
    %vm143 = vcmask 261120
    %v145 = vsel %vm143, %v85, 0
    %v148 = vsel %vm143, %v92, 0
    %v151 = vsel %vm143, %v75, 0
    %v154 = vsel %vm143, %v76, 0
    %156 = vmatprep.subr.mxu0 0.0
    %157 = vmatpush1.msra.mxu0 %v131
    %158 = vmatprep.subr.mxu0 0.0
    %159 = vmatpush1.msra.mxu0 %v132
    %160 = vmatprep.subr.mxu0 0.0
    %161 = vmatpush1.msra.mxu0 %v133
    %162 = vmatprep.subr.mxu0 0.0
    %163 = vmatpush1.msra.mxu0 %v134
    %164 = vmatprep.subr.mxu0 0.0
    %165 = vmatpush1.msra.mxu0 0.0
    %166 = vmatprep.subr.mxu0 0.0
    %167 = vmatpush1.msra.mxu0 0.0
    %168 = vmatprep.subr.mxu0 0.0
    %169 = vmatpush1.msra.mxu0 0.0
    %170 = vmatprep.subr.mxu0 0.0
    %171 = vmatpush1.msra.mxu0 0.0
    %172 = vmatprep.subr.mxu0 0.0
    %173 = vmatpush1.msra.mxu0 0.0
    %174 = vmatprep.subr.mxu0 0.0
    %175 = vmatpush1.msra.mxu0 0.0
    %176 = vmatprep.subr.mxu0 0.0
    %177 = vmatpush1.msra.mxu0 0.0
    %178 = vmatprep.subr.mxu0 0.0
    %179 = vmatpush1.msra.mxu0 0.0
    %180 = vmatprep.subr.mxu0 0.0
    %181 = vmatpush1.msra.mxu0 0.0
    %182 = vmatprep.subr.mxu0 0.0
    %183 = vmatpush1.msra.mxu0 0.0
    %184 = vmatprep.subr.mxu0 0.0
    %185 = vmatpush1.msra.mxu0 0.0
    %186 = vmatprep.subr.mxu0 0.0
    %187 = vmatpush1.msra.mxu0 0.0
    %188 = vmatprep.subr.mxu0 0.0
    %189 = vmatpush1.msra.mxu0 0.0
    %190 = vmatprep.subr.mxu0 0.0
    %191 = vmatpush1.msra.mxu0 0.0
    %192 = vmatprep.subr.mxu0 0.0
    %193 = vmatpush1.msra.mxu0 0.0
    %194 = vmatprep.subr.mxu0 0.0
    %195 = vmatpush1.msra.mxu0 0.0
    %196 = vmatprep.subr.mxu0 0.0
    %197 = vmatpush1.msra.mxu0 0.0
    %198 = vmatprep.subr.mxu0 0.0
    %199 = vmatpush1.msra.mxu0 0.0
    %200 = vmatprep.subr.mxu0 0.0
    %201 = vmatpush1.msra.mxu0 0.0
    %202 = vmatprep.subr.mxu0 0.0
    %203 = vmatpush1.msra.mxu0 0.0
    %204 = vmatprep.subr.mxu0 0.0
    %205 = vmatpush1.msra.mxu0 0.0
    %206 = vmatprep.subr.mxu0 0.0
    %207 = vmatpush1.msra.mxu0 0.0
    %208 = vmatprep.subr.mxu0 0.0
    %209 = vmatpush1.msra.mxu0 0.0
    %210 = vmatprep.subr.mxu0 0.0
    %211 = vmatpush1.msra.mxu0 0.0
    %212 = vmatprep.subr.mxu0 0.0
    %213 = vmatpush1.msra.mxu0 0.0
    %214 = vmatprep.subr.mxu0 0.0
    %215 = vmatpush1.msra.mxu0 0.0
    %216 = vmatprep.subr.mxu0 0.0
    %217 = vmatpush1.msra.mxu0 0.0
    %218 = vmatprep.subr.mxu0 0.0
    %219 = vmatpush1.msra.mxu0 0.0
    %220 = vmatprep.mubr.f32.mxu0 0.0
    %221 = vmatmul.mubr.f32.gmra.mrb[0].mxu0 %v145
    %v222 = vpop.f32.mrb[0].mxu0
    %v223 = vadd.f32 %v142, %v222
    %v224 = vpop.f32.mrb[0].mxu0
    %225 = vmatprep.mubr.f32.mxu0 0.0
    %226 = vmatmul.mubr.f32.gmra.mrb[0].mxu0 %v148
    %v227 = vpop.f32.mrb[0].mxu0
    %v228 = vadd.f32 %v142, %v227
    %v229 = vpop.f32.mrb[0].mxu0
    %230 = vmatprep.mubr.f32.mxu0 0.0
    %231 = vmatmul.mubr.f32.gmra.mrb[0].mxu0 %v151
    %v232 = vpop.f32.mrb[0].mxu0
    %v233 = vadd.f32 %v142, %v232
    %v234 = vpop.f32.mrb[0].mxu0
    %235 = vmatprep.mubr.f32.mxu0 0.0
    %236 = vmatmul.mubr.f32.gmra.mrb[0].mxu0 %v154
    %v237 = vpop.f32.mrb[0].mxu0
    %v238 = vadd.f32 %v142, %v237
    %v239 = vpop.f32.mrb[0].mxu0
    %240 = vdwg.mxu0
    %v241 = vmul.f32 %v223, 0.5
    %v242 = vmul.f32 %v228, 0.5
    %245 = vrot.lane.b32.xlu0 %v233, 96
    %v246 = vpop.permute.xlu0 %245
    %247 = vrot.lane.b32.xlu0 %v238, 96
    %v248 = vpop.permute.xlu0 %247
    %v251 = vmul.f32 %v241, %v246
    %v252 = vmul.f32 %v241, %v248
    %v253 = vmul.f32 %v242, %v246
    %v254 = vmul.f32 %v242, %v248
    %v256 = vsel %vm143, %v251, 0
    %v259 = vsel %vm143, %v252, 0
    %v262 = vsel %vm143, %v253, 0
    %v265 = vsel %vm143, %v254, 0
    %267 = vmatprep.subr.mxu0 0.0
    %268 = vmatpush1.msra.mxu0 %v119
    %269 = vmatprep.subr.mxu0 0.0
    %270 = vmatpush1.msra.mxu0 %v120
    %271 = vmatprep.subr.mxu0 0.0
    %272 = vmatpush1.msra.mxu0 %v121
    %273 = vmatprep.subr.mxu0 0.0
    %274 = vmatpush1.msra.mxu0 %v122
    %275 = vmatprep.subr.mxu0 0.0
    %276 = vmatpush1.msra.mxu0 0.0
    %277 = vmatprep.subr.mxu0 0.0
    %278 = vmatpush1.msra.mxu0 0.0
    %279 = vmatprep.subr.mxu0 0.0
    %280 = vmatpush1.msra.mxu0 0.0
    %281 = vmatprep.subr.mxu0 0.0
    %282 = vmatpush1.msra.mxu0 0.0
    %283 = vmatprep.subr.mxu0 0.0
    %284 = vmatpush1.msra.mxu0 0.0
    %285 = vmatprep.subr.mxu0 0.0
    %286 = vmatpush1.msra.mxu0 0.0
    %287 = vmatprep.subr.mxu0 0.0
    %288 = vmatpush1.msra.mxu0 0.0
    %289 = vmatprep.subr.mxu0 0.0
    %290 = vmatpush1.msra.mxu0 0.0
    %291 = vmatprep.subr.mxu0 0.0
    %292 = vmatpush1.msra.mxu0 0.0
    %293 = vmatprep.subr.mxu0 0.0
    %294 = vmatpush1.msra.mxu0 0.0
    %295 = vmatprep.subr.mxu0 0.0
    %296 = vmatpush1.msra.mxu0 0.0
    %297 = vmatprep.subr.mxu0 0.0
    %298 = vmatpush1.msra.mxu0 0.0
    %299 = vmatprep.subr.mxu0 0.0
    %300 = vmatpush1.msra.mxu0 0.0
    %301 = vmatprep.subr.mxu0 0.0
    %302 = vmatpush1.msra.mxu0 0.0
    %303 = vmatprep.subr.mxu0 0.0
    %304 = vmatpush1.msra.mxu0 0.0
    %305 = vmatprep.subr.mxu0 0.0
    %306 = vmatpush1.msra.mxu0 0.0
    %307 = vmatprep.subr.mxu0 0.0
    %308 = vmatpush1.msra.mxu0 0.0
    %309 = vmatprep.subr.mxu0 0.0
    %310 = vmatpush1.msra.mxu0 0.0
    %311 = vmatprep.subr.mxu0 0.0
    %312 = vmatpush1.msra.mxu0 0.0
    %313 = vmatprep.subr.mxu0 0.0
    %314 = vmatpush1.msra.mxu0 0.0
    %315 = vmatprep.subr.mxu0 0.0
    %316 = vmatpush1.msra.mxu0 0.0
    %317 = vmatprep.subr.mxu0 0.0
    %318 = vmatpush1.msra.mxu0 0.0
    %319 = vmatprep.subr.mxu0 0.0
    %320 = vmatpush1.msra.mxu0 0.0
    %321 = vmatprep.subr.mxu0 0.0
    %322 = vmatpush1.msra.mxu0 0.0
    %323 = vmatprep.subr.mxu0 0.0
    %324 = vmatpush1.msra.mxu0 0.0
    %325 = vmatprep.subr.mxu0 0.0
    %326 = vmatpush1.msra.mxu0 0.0
    %327 = vmatprep.subr.mxu0 0.0
    %328 = vmatpush1.msra.mxu0 0.0
    %329 = vmatprep.subr.mxu0 0.0
    %330 = vmatpush1.msra.mxu0 0.0
    %331 = vmatprep.mubr.f32.mxu0 0.0
    %332 = vmatmul.mubr.f32.gmra.mrb[0].mxu0 %v256
    %v333 = vpop.f32.mrb[0].mxu0
    %v334 = vadd.f32 0.0, %v333
    %v335 = vpop.f32.mrb[0].mxu0
    %336 = vmatprep.mubr.f32.mxu0 0.0
    %337 = vmatmul.mubr.f32.gmra.mrb[0].mxu0 %v259
    %v338 = vpop.f32.mrb[0].mxu0
    %v339 = vadd.f32 0.0, %v338
    %v340 = vpop.f32.mrb[0].mxu0
    %341 = vmatprep.mubr.f32.mxu0 0.0
    %342 = vmatmul.mubr.f32.gmra.mrb[0].mxu0 %v262
    %v343 = vpop.f32.mrb[0].mxu0
    %v344 = vadd.f32 0.0, %v343
    %v345 = vpop.f32.mrb[0].mxu0
    %346 = vmatprep.mubr.f32.mxu0 0.0
    %347 = vmatmul.mubr.f32.gmra.mrb[0].mxu0 %v265
    %v348 = vpop.f32.mrb[0].mxu0
    %v349 = vadd.f32 0.0, %v348
    %v350 = vpop.f32.mrb[0].mxu0
    %351 = vdwg.mxu0
    %v352 = vmax.f32 %v334, %v339
    %v353 = vmax.f32 %v344, %v349
    %v354 = vsub.f32 %v334, %v352
    %v355 = vsub.f32 %v339, %v352
    %v356 = vsub.f32 %v344, %v353
    %v357 = vsub.f32 %v349, %v353
    %v358 = vmul.f32 %v354, 1.442695
    %v359 = vpow.pop %v358
    %v360 = vmul.f32 %v355, 1.442695
    %v361 = vpow.pop %v360
    %v362 = vmul.f32 %v356, 1.442695
    %v363 = vpow.pop %v362
    %v364 = vmul.f32 %v357, 1.442695
    %v365 = vpow.pop %v364
    %v366 = vadd.f32 %v359, %v361
    %v367 = vrcp.pop %v366
    %v368 = vadd.f32 %v363, %v365
    %v369 = vrcp.pop %v368
    %v370 = vmul.f32 %v359, %v367
    %v371 = vmul.f32 %v361, %v367
    %v372 = vmul.f32 %v363, %v369
    %v373 = vmul.f32 %v365, %v369
    %vm374 = vcmask 64512
    %v376 = vsel %vm374, %v370, 0
    %v379 = vsel %vm374, %v371, 0
    %v382 = vsel %vm374, %v372, 0
    %v385 = vsel %vm374, %v373, 0
    %387 = vmatprep.subr.mxu0 0.0
    %388 = vmatpush1.msra.mxu0 %v130
    %389 = vmatprep.subr.mxu0 0.0
    %390 = vmatpush1.msra.mxu0 0.0
    %391 = vmatprep.subr.mxu0 0.0
    %392 = vmatpush1.msra.mxu0 0.0
    %393 = vmatprep.subr.mxu0 0.0
    %394 = vmatpush1.msra.mxu0 0.0
    %395 = vmatprep.subr.mxu0 0.0
    %396 = vmatpush1.msra.mxu0 0.0
    %397 = vmatprep.subr.mxu0 0.0
    %398 = vmatpush1.msra.mxu0 0.0
    %399 = vmatprep.subr.mxu0 0.0
    %400 = vmatpush1.msra.mxu0 0.0
    %401 = vmatprep.subr.mxu0 0.0
    %402 = vmatpush1.msra.mxu0 0.0
    %403 = vmatprep.subr.mxu0 0.0
    %404 = vmatpush1.msra.mxu0 0.0
    %405 = vmatprep.subr.mxu0 0.0
    %406 = vmatpush1.msra.mxu0 0.0
    %407 = vmatprep.subr.mxu0 0.0
    %408 = vmatpush1.msra.mxu0 0.0
    %409 = vmatprep.subr.mxu0 0.0
    %410 = vmatpush1.msra.mxu0 0.0
    %411 = vmatprep.subr.mxu0 0.0
    %412 = vmatpush1.msra.mxu0 0.0
    %413 = vmatprep.subr.mxu0 0.0
    %414 = vmatpush1.msra.mxu0 0.0
    %415 = vmatprep.subr.mxu0 0.0
    %416 = vmatpush1.msra.mxu0 0.0
    %417 = vmatprep.subr.mxu0 0.0
    %418 = vmatpush1.msra.mxu0 0.0
    %419 = vmatprep.subr.mxu0 0.0
    %420 = vmatpush1.msra.mxu0 0.0
    %421 = vmatprep.subr.mxu0 0.0
    %422 = vmatpush1.msra.mxu0 0.0
    %423 = vmatprep.subr.mxu0 0.0
    %424 = vmatpush1.msra.mxu0 0.0
    %425 = vmatprep.subr.mxu0 0.0
    %426 = vmatpush1.msra.mxu0 0.0
    %427 = vmatprep.subr.mxu0 0.0
    %428 = vmatpush1.msra.mxu0 0.0
    %429 = vmatprep.subr.mxu0 0.0
    %430 = vmatpush1.msra.mxu0 0.0
    %431 = vmatprep.subr.mxu0 0.0
    %432 = vmatpush1.msra.mxu0 0.0
    %433 = vmatprep.subr.mxu0 0.0
    %434 = vmatpush1.msra.mxu0 0.0
    %435 = vmatprep.subr.mxu0 0.0
    %436 = vmatpush1.msra.mxu0 0.0
    %437 = vmatprep.subr.mxu0 0.0
    %438 = vmatpush1.msra.mxu0 0.0
    %439 = vmatprep.subr.mxu0 0.0
    %440 = vmatpush1.msra.mxu0 0.0
    %441 = vmatprep.subr.mxu0 0.0
    %442 = vmatpush1.msra.mxu0 0.0
    %443 = vmatprep.subr.mxu0 0.0
    %444 = vmatpush1.msra.mxu0 0.0
    %445 = vmatprep.subr.mxu0 0.0
    %446 = vmatpush1.msra.mxu0 0.0
    %447 = vmatprep.subr.mxu0 0.0
    %448 = vmatpush1.msra.mxu0 0.0
    %449 = vmatprep.subr.mxu0 0.0
    %450 = vmatpush1.msra.mxu0 0.0
    %451 = vmatprep.mubr.f32.mxu0 0.0
    %452 = vmatmul.mubr.f32.gmra.mrb[0].mxu0 %v376
    %v453 = vpop.f32.mrb[0].mxu0
    %v454 = vadd.f32 0.0, %v453
    %v455 = vpop.f32.mrb[0].mxu0
    %456 = vmatprep.mubr.f32.mxu0 0.0
    %457 = vmatmul.mubr.f32.gmra.mrb[0].mxu0 %v379
    %v458 = vpop.f32.mrb[0].mxu0
    %v459 = vadd.f32 0.0, %v458
    %v460 = vpop.f32.mrb[0].mxu0
    %461 = vmatprep.mubr.f32.mxu0 0.0
    %462 = vmatmul.mubr.f32.gmra.mrb[0].mxu0 %v382
    %v463 = vpop.f32.mrb[0].mxu0
    %v464 = vadd.f32 0.0, %v463
    %v465 = vpop.f32.mrb[0].mxu0
    %466 = vmatprep.mubr.f32.mxu0 0.0
    %467 = vmatmul.mubr.f32.gmra.mrb[0].mxu0 %v385
    %v468 = vpop.f32.mrb[0].mxu0
    %v469 = vadd.f32 0.0, %v468
    %v470 = vpop.f32.mrb[0].mxu0
    %471 = vdwg.mxu0
    %472 = vrot.lane.b32.xlu0 %v233, 64
    %v473 = vpop.permute.xlu0 %472
    %474 = vrot.lane.b32.xlu0 %v238, 64
    %v475 = vpop.permute.xlu0 %474
    %v478 = vmul.f32 %v454, %v473
    %v479 = vmul.f32 %v459, %v475
    %v480 = vmul.f32 %v464, %v473
    %v481 = vmul.f32 %v469, %v475
    %v482 = vadd.f32 %v478, %v479
    %v483 = vadd.f32 %v480, %v481
    %v484 = vlaneseq
    %v485 = vshrl.u32 %v484, 7
    %v486 = vsub.s32 0, %v485
    %v487 = vrot.slane %v64, %v486
    %v489 = vsel %vm143, %v482, 0
    %v492 = vsel %vm143, %v483, 0
    %494 = vmatprep.subr.mxu0 0.0
    %495 = vmatpush1.msra.mxu0 %v135
    %496 = vmatprep.subr.mxu0 0.0
    %497 = vmatpush1.msra.mxu0 %v136
    %498 = vmatprep.subr.mxu0 0.0
    %499 = vmatpush1.msra.mxu0 %v137
    %500 = vmatprep.subr.mxu0 0.0
    %501 = vmatpush1.msra.mxu0 %v138
    %502 = vmatprep.subr.mxu0 0.0
    %503 = vmatpush1.msra.mxu0 0.0
    %504 = vmatprep.subr.mxu0 0.0
    %505 = vmatpush1.msra.mxu0 0.0
    %506 = vmatprep.subr.mxu0 0.0
    %507 = vmatpush1.msra.mxu0 0.0
    %508 = vmatprep.subr.mxu0 0.0
    %509 = vmatpush1.msra.mxu0 0.0
    %510 = vmatprep.subr.mxu0 0.0
    %511 = vmatpush1.msra.mxu0 0.0
    %512 = vmatprep.subr.mxu0 0.0
    %513 = vmatpush1.msra.mxu0 0.0
    %514 = vmatprep.subr.mxu0 0.0
    %515 = vmatpush1.msra.mxu0 0.0
    %516 = vmatprep.subr.mxu0 0.0
    %517 = vmatpush1.msra.mxu0 0.0
    %518 = vmatprep.subr.mxu0 0.0
    %519 = vmatpush1.msra.mxu0 0.0
    %520 = vmatprep.subr.mxu0 0.0
    %521 = vmatpush1.msra.mxu0 0.0
    %522 = vmatprep.subr.mxu0 0.0
    %523 = vmatpush1.msra.mxu0 0.0
    %524 = vmatprep.subr.mxu0 0.0
    %525 = vmatpush1.msra.mxu0 0.0
    %526 = vmatprep.subr.mxu0 0.0
    %527 = vmatpush1.msra.mxu0 0.0
    %528 = vmatprep.subr.mxu0 0.0
    %529 = vmatpush1.msra.mxu0 0.0
    %530 = vmatprep.subr.mxu0 0.0
    %531 = vmatpush1.msra.mxu0 0.0
    %532 = vmatprep.subr.mxu0 0.0
    %533 = vmatpush1.msra.mxu0 0.0
    %534 = vmatprep.subr.mxu0 0.0
    %535 = vmatpush1.msra.mxu0 0.0
    %536 = vmatprep.subr.mxu0 0.0
    %537 = vmatpush1.msra.mxu0 0.0
    %538 = vmatprep.subr.mxu0 0.0
    %539 = vmatpush1.msra.mxu0 0.0
    %540 = vmatprep.subr.mxu0 0.0
    %541 = vmatpush1.msra.mxu0 0.0
    %542 = vmatprep.subr.mxu0 0.0
    %543 = vmatpush1.msra.mxu0 0.0
    %544 = vmatprep.subr.mxu0 0.0
    %545 = vmatpush1.msra.mxu0 0.0
    %546 = vmatprep.subr.mxu0 0.0
    %547 = vmatpush1.msra.mxu0 0.0
    %548 = vmatprep.subr.mxu0 0.0
    %549 = vmatpush1.msra.mxu0 0.0
    %550 = vmatprep.subr.mxu0 0.0
    %551 = vmatpush1.msra.mxu0 0.0
    %552 = vmatprep.subr.mxu0 0.0
    %553 = vmatpush1.msra.mxu0 0.0
    %554 = vmatprep.subr.mxu0 0.0
    %555 = vmatpush1.msra.mxu0 0.0
    %556 = vmatprep.subr.mxu0 0.0
    %557 = vmatpush1.msra.mxu0 0.0
    %558 = vmatprep.mubr.f32.mxu0 0.0
    %559 = vmatmul.mubr.f32.gmra.mrb[0].mxu0 %v489
    %v560 = vpop.f32.mrb[0].mxu0
    %v561 = vadd.f32 %v487, %v560
    %v562 = vpop.f32.mrb[0].mxu0
    %563 = vmatprep.mubr.f32.mxu0 0.0
    %564 = vmatmul.mubr.f32.gmra.mrb[0].mxu0 %v492
    %v565 = vpop.f32.mrb[0].mxu0
    %v566 = vadd.f32 %v487, %v565
    %v567 = vpop.f32.mrb[0].mxu0
    %568 = vdwg.mxu0
    %v569 = vadd.f32 %v85, %v561
    %v570 = vadd.f32 %v92, %v566
    %v571 = vld [vmem:[%s6] sm:$0xff]
    %v572 = vld [vmem:[%s6 + $0x8] sm:$0xff]
    %v573 = vld [vmem:[%s6 + $0x10] sm:$0xff]
    %v574 = vld [vmem:[%s6 + $0x18] sm:$0xff]
    %v575 = vld [vmem:[%s7] sm:$0xff]
    %v576 = vld [vmem:[%s7 + $0x8] sm:$0xff]
    %v577 = vld [vmem:[%s7 + $0x10] sm:$0xff]
    %v578 = vld [vmem:[%s7 + $0x18] sm:$0xff]
    %v579 = vlaneseq
    %v580 = vshrl.u32 %v579, 7
    %v581 = vsub.s32 0, %v580
    %v582 = vrot.slane %v63, %v581
    %v584 = vsel %vm143, %v569, 0
    %v587 = vsel %vm143, %v570, 0
    %589 = vmatprep.subr.mxu0 0.0
    %590 = vmatpush1.msra.mxu0 %v571
    %591 = vmatprep.subr.mxu0 0.0
    %592 = vmatpush1.msra.mxu0 %v572
    %593 = vmatprep.subr.mxu0 0.0
    %594 = vmatpush1.msra.mxu0 %v573
    %595 = vmatprep.subr.mxu0 0.0
    %596 = vmatpush1.msra.mxu0 %v574
    %597 = vmatprep.subr.mxu0 0.0
    %598 = vmatpush1.msra.mxu0 0.0
    %599 = vmatprep.subr.mxu0 0.0
    %600 = vmatpush1.msra.mxu0 0.0
    %601 = vmatprep.subr.mxu0 0.0
    %602 = vmatpush1.msra.mxu0 0.0
    %603 = vmatprep.subr.mxu0 0.0
    %604 = vmatpush1.msra.mxu0 0.0
    %605 = vmatprep.subr.mxu0 0.0
    %606 = vmatpush1.msra.mxu0 0.0
    %607 = vmatprep.subr.mxu0 0.0
    %608 = vmatpush1.msra.mxu0 0.0
    %609 = vmatprep.subr.mxu0 0.0
    %610 = vmatpush1.msra.mxu0 0.0
    %611 = vmatprep.subr.mxu0 0.0
    %612 = vmatpush1.msra.mxu0 0.0
    %613 = vmatprep.subr.mxu0 0.0
    %614 = vmatpush1.msra.mxu0 0.0
    %615 = vmatprep.subr.mxu0 0.0
    %616 = vmatpush1.msra.mxu0 0.0
    %617 = vmatprep.subr.mxu0 0.0
    %618 = vmatpush1.msra.mxu0 0.0
    %619 = vmatprep.subr.mxu0 0.0
    %620 = vmatpush1.msra.mxu0 0.0
    %621 = vmatprep.subr.mxu0 0.0
    %622 = vmatpush1.msra.mxu0 0.0
    %623 = vmatprep.subr.mxu0 0.0
    %624 = vmatpush1.msra.mxu0 0.0
    %625 = vmatprep.subr.mxu0 0.0
    %626 = vmatpush1.msra.mxu0 0.0
    %627 = vmatprep.subr.mxu0 0.0
    %628 = vmatpush1.msra.mxu0 0.0
    %629 = vmatprep.subr.mxu0 0.0
    %630 = vmatpush1.msra.mxu0 0.0
    %631 = vmatprep.subr.mxu0 0.0
    %632 = vmatpush1.msra.mxu0 0.0
    %633 = vmatprep.subr.mxu0 0.0
    %634 = vmatpush1.msra.mxu0 0.0
    %635 = vmatprep.subr.mxu0 0.0
    %636 = vmatpush1.msra.mxu0 0.0
    %637 = vmatprep.subr.mxu0 0.0
    %638 = vmatpush1.msra.mxu0 0.0
    %639 = vmatprep.subr.mxu0 0.0
    %640 = vmatpush1.msra.mxu0 0.0
    %641 = vmatprep.subr.mxu0 0.0
    %642 = vmatpush1.msra.mxu0 0.0
    %643 = vmatprep.subr.mxu0 0.0
    %644 = vmatpush1.msra.mxu0 0.0
    %645 = vmatprep.subr.mxu0 0.0
    %646 = vmatpush1.msra.mxu0 0.0
    %647 = vmatprep.subr.mxu0 0.0
    %648 = vmatpush1.msra.mxu0 0.0
    %649 = vmatprep.subr.mxu0 0.0
    %650 = vmatpush1.msra.mxu0 0.0
    %651 = vmatprep.subr.mxu0 0.0
    %652 = vmatpush1.msra.mxu0 0.0
    %653 = vmatprep.mubr.f32.mxu0 0.0
    %654 = vmatmul.mubr.f32.gmra.mrb[0].mxu0 %v584
    %v655 = vpop.f32.mrb[0].mxu0
    %v656 = vadd.f32 %v582, %v655
    %v657 = vpop.f32.mrb[0].mxu0
    %658 = vmatprep.mubr.f32.mxu0 0.0
    %659 = vmatmul.mubr.f32.gmra.mrb[0].mxu0 %v587
    %v660 = vpop.f32.mrb[0].mxu0
    %v661 = vadd.f32 %v582, %v660
    %v662 = vpop.f32.mrb[0].mxu0
    %663 = vdwg.mxu0
    %v664 = vmul.f32 %v656, 0.5
    %v665 = vmul.f32 %v661, 0.5
    %668 = vrot.lane.b32.xlu0 %v656, 96
    %v669 = vpop.permute.xlu0 %668
    %670 = vrot.lane.b32.xlu0 %v661, 96
    %v671 = vpop.permute.xlu0 %670
    %v674 = vmul.f32 %v664, %v669
    %v675 = vmul.f32 %v664, %v671
    %v676 = vmul.f32 %v665, %v669
    %v677 = vmul.f32 %v665, %v671
    %v679 = vsel %vm143, %v674, 0
    %v682 = vsel %vm143, %v675, 0
    %v685 = vsel %vm143, %v676, 0
    %v688 = vsel %vm143, %v677, 0
    %690 = vmatprep.subr.mxu0 0.0
    %691 = vmatpush1.msra.mxu0 %v119
    %692 = vmatprep.subr.mxu0 0.0
    %693 = vmatpush1.msra.mxu0 %v120
    %694 = vmatprep.subr.mxu0 0.0
    %695 = vmatpush1.msra.mxu0 %v121
    %696 = vmatprep.subr.mxu0 0.0
    %697 = vmatpush1.msra.mxu0 %v122
    %698 = vmatprep.subr.mxu0 0.0
    %699 = vmatpush1.msra.mxu0 0.0
    %700 = vmatprep.subr.mxu0 0.0
    %701 = vmatpush1.msra.mxu0 0.0
    %702 = vmatprep.subr.mxu0 0.0
    %703 = vmatpush1.msra.mxu0 0.0
    %704 = vmatprep.subr.mxu0 0.0
    %705 = vmatpush1.msra.mxu0 0.0
    %706 = vmatprep.subr.mxu0 0.0
    %707 = vmatpush1.msra.mxu0 0.0
    %708 = vmatprep.subr.mxu0 0.0
    %709 = vmatpush1.msra.mxu0 0.0
    %710 = vmatprep.subr.mxu0 0.0
    %711 = vmatpush1.msra.mxu0 0.0
    %712 = vmatprep.subr.mxu0 0.0
    %713 = vmatpush1.msra.mxu0 0.0
    %714 = vmatprep.subr.mxu0 0.0
    %715 = vmatpush1.msra.mxu0 0.0
    %716 = vmatprep.subr.mxu0 0.0
    %717 = vmatpush1.msra.mxu0 0.0
    %718 = vmatprep.subr.mxu0 0.0
    %719 = vmatpush1.msra.mxu0 0.0
    %720 = vmatprep.subr.mxu0 0.0
    %721 = vmatpush1.msra.mxu0 0.0
    %722 = vmatprep.subr.mxu0 0.0
    %723 = vmatpush1.msra.mxu0 0.0
    %724 = vmatprep.subr.mxu0 0.0
    %725 = vmatpush1.msra.mxu0 0.0
    %726 = vmatprep.subr.mxu0 0.0
    %727 = vmatpush1.msra.mxu0 0.0
    %728 = vmatprep.subr.mxu0 0.0
    %729 = vmatpush1.msra.mxu0 0.0
    %730 = vmatprep.subr.mxu0 0.0
    %731 = vmatpush1.msra.mxu0 0.0
    %732 = vmatprep.subr.mxu0 0.0
    %733 = vmatpush1.msra.mxu0 0.0
    %734 = vmatprep.subr.mxu0 0.0
    %735 = vmatpush1.msra.mxu0 0.0
    %736 = vmatprep.subr.mxu0 0.0
    %737 = vmatpush1.msra.mxu0 0.0
    %738 = vmatprep.subr.mxu0 0.0
    %739 = vmatpush1.msra.mxu0 0.0
    %740 = vmatprep.subr.mxu0 0.0
    %741 = vmatpush1.msra.mxu0 0.0
    %742 = vmatprep.subr.mxu0 0.0
    %743 = vmatpush1.msra.mxu0 0.0
    %744 = vmatprep.subr.mxu0 0.0
    %745 = vmatpush1.msra.mxu0 0.0
    %746 = vmatprep.subr.mxu0 0.0
    %747 = vmatpush1.msra.mxu0 0.0
    %748 = vmatprep.subr.mxu0 0.0
    %749 = vmatpush1.msra.mxu0 0.0
    %750 = vmatprep.subr.mxu0 0.0
    %751 = vmatpush1.msra.mxu0 0.0
    %752 = vmatprep.subr.mxu0 0.0
    %753 = vmatpush1.msra.mxu0 0.0
    %754 = vmatprep.mubr.f32.mxu0 0.0
    %755 = vmatmul.mubr.f32.gmra.mrb[0].mxu0 %v679
    %v756 = vpop.f32.mrb[0].mxu0
    %v757 = vadd.f32 0.0, %v756
    %v758 = vpop.f32.mrb[0].mxu0
    %759 = vmatprep.mubr.f32.mxu0 0.0
    %760 = vmatmul.mubr.f32.gmra.mrb[0].mxu0 %v682
    %v761 = vpop.f32.mrb[0].mxu0
    %v762 = vadd.f32 0.0, %v761
    %v763 = vpop.f32.mrb[0].mxu0
    %764 = vmatprep.mubr.f32.mxu0 0.0
    %765 = vmatmul.mubr.f32.gmra.mrb[0].mxu0 %v685
    %v766 = vpop.f32.mrb[0].mxu0
    %v767 = vadd.f32 0.0, %v766
    %v768 = vpop.f32.mrb[0].mxu0
    %769 = vmatprep.mubr.f32.mxu0 0.0
    %770 = vmatmul.mubr.f32.gmra.mrb[0].mxu0 %v688
    %v771 = vpop.f32.mrb[0].mxu0
    %v772 = vadd.f32 0.0, %v771
    %v773 = vpop.f32.mrb[0].mxu0
    %774 = vdwg.mxu0
    %v775 = vmax.f32 %v757, %v762
    %v776 = vmax.f32 %v767, %v772
    %v777 = vsub.f32 %v757, %v775
    %v778 = vsub.f32 %v762, %v775
    %v779 = vsub.f32 %v767, %v776
    %v780 = vsub.f32 %v772, %v776
    %v781 = vmul.f32 %v777, 1.442695
    %v782 = vpow.pop %v781
    %v783 = vmul.f32 %v778, 1.442695
    %v784 = vpow.pop %v783
    %v785 = vmul.f32 %v779, 1.442695
    %v786 = vpow.pop %v785
    %v787 = vmul.f32 %v780, 1.442695
    %v788 = vpow.pop %v787
    %v789 = vadd.f32 %v782, %v784
    %v790 = vrcp.pop %v789
    %v791 = vadd.f32 %v786, %v788
    %v792 = vrcp.pop %v791
    %v793 = vmul.f32 %v782, %v790
    %v794 = vmul.f32 %v784, %v790
    %v795 = vmul.f32 %v786, %v792
    %v796 = vmul.f32 %v788, %v792
    %v798 = vsel %vm374, %v793, 0
    %v801 = vsel %vm374, %v794, 0
    %v804 = vsel %vm374, %v795, 0
    %v807 = vsel %vm374, %v796, 0
    %809 = vmatprep.subr.mxu0 0.0
    %810 = vmatpush1.msra.mxu0 %v130
    %811 = vmatprep.subr.mxu0 0.0
    %812 = vmatpush1.msra.mxu0 0.0
    %813 = vmatprep.subr.mxu0 0.0
    %814 = vmatpush1.msra.mxu0 0.0
    %815 = vmatprep.subr.mxu0 0.0
    %816 = vmatpush1.msra.mxu0 0.0
    %817 = vmatprep.subr.mxu0 0.0
    %818 = vmatpush1.msra.mxu0 0.0
    %819 = vmatprep.subr.mxu0 0.0
    %820 = vmatpush1.msra.mxu0 0.0
    %821 = vmatprep.subr.mxu0 0.0
    %822 = vmatpush1.msra.mxu0 0.0
    %823 = vmatprep.subr.mxu0 0.0
    %824 = vmatpush1.msra.mxu0 0.0
    %825 = vmatprep.subr.mxu0 0.0
    %826 = vmatpush1.msra.mxu0 0.0
    %827 = vmatprep.subr.mxu0 0.0
    %828 = vmatpush1.msra.mxu0 0.0
    %829 = vmatprep.subr.mxu0 0.0
    %830 = vmatpush1.msra.mxu0 0.0
    %831 = vmatprep.subr.mxu0 0.0
    %832 = vmatpush1.msra.mxu0 0.0
    %833 = vmatprep.subr.mxu0 0.0
    %834 = vmatpush1.msra.mxu0 0.0
    %835 = vmatprep.subr.mxu0 0.0
    %836 = vmatpush1.msra.mxu0 0.0
    %837 = vmatprep.subr.mxu0 0.0
    %838 = vmatpush1.msra.mxu0 0.0
    %839 = vmatprep.subr.mxu0 0.0
    %840 = vmatpush1.msra.mxu0 0.0
    %841 = vmatprep.subr.mxu0 0.0
    %842 = vmatpush1.msra.mxu0 0.0
    %843 = vmatprep.subr.mxu0 0.0
    %844 = vmatpush1.msra.mxu0 0.0
    %845 = vmatprep.subr.mxu0 0.0
    %846 = vmatpush1.msra.mxu0 0.0
    %847 = vmatprep.subr.mxu0 0.0
    %848 = vmatpush1.msra.mxu0 0.0
    %849 = vmatprep.subr.mxu0 0.0
    %850 = vmatpush1.msra.mxu0 0.0
    %851 = vmatprep.subr.mxu0 0.0
    %852 = vmatpush1.msra.mxu0 0.0
    %853 = vmatprep.subr.mxu0 0.0
    %854 = vmatpush1.msra.mxu0 0.0
    %855 = vmatprep.subr.mxu0 0.0
    %856 = vmatpush1.msra.mxu0 0.0
    %857 = vmatprep.subr.mxu0 0.0
    %858 = vmatpush1.msra.mxu0 0.0
    %859 = vmatprep.subr.mxu0 0.0
    %860 = vmatpush1.msra.mxu0 0.0
    %861 = vmatprep.subr.mxu0 0.0
    %862 = vmatpush1.msra.mxu0 0.0
    %863 = vmatprep.subr.mxu0 0.0
    %864 = vmatpush1.msra.mxu0 0.0
    %865 = vmatprep.subr.mxu0 0.0
    %866 = vmatpush1.msra.mxu0 0.0
    %867 = vmatprep.subr.mxu0 0.0
    %868 = vmatpush1.msra.mxu0 0.0
    %869 = vmatprep.subr.mxu0 0.0
    %870 = vmatpush1.msra.mxu0 0.0
    %871 = vmatprep.subr.mxu0 0.0
    %872 = vmatpush1.msra.mxu0 0.0
    %873 = vmatprep.mubr.f32.mxu0 0.0
    %874 = vmatmul.mubr.f32.gmra.mrb[0].mxu0 %v798
    %v875 = vpop.f32.mrb[0].mxu0
    %v876 = vadd.f32 0.0, %v875
    %v877 = vpop.f32.mrb[0].mxu0
    %878 = vmatprep.mubr.f32.mxu0 0.0
    %879 = vmatmul.mubr.f32.gmra.mrb[0].mxu0 %v801
    %v880 = vpop.f32.mrb[0].mxu0
    %v881 = vadd.f32 0.0, %v880
    %v882 = vpop.f32.mrb[0].mxu0
    %883 = vmatprep.mubr.f32.mxu0 0.0
    %884 = vmatmul.mubr.f32.gmra.mrb[0].mxu0 %v804
    %v885 = vpop.f32.mrb[0].mxu0
    %v886 = vadd.f32 0.0, %v885
    %v887 = vpop.f32.mrb[0].mxu0
    %888 = vmatprep.mubr.f32.mxu0 0.0
    %889 = vmatmul.mubr.f32.gmra.mrb[0].mxu0 %v807
    %v890 = vpop.f32.mrb[0].mxu0
    %v891 = vadd.f32 0.0, %v890
    %v892 = vpop.f32.mrb[0].mxu0
    %893 = vdwg.mxu0
    %894 = vrot.lane.b32.xlu0 %v656, 64
    %v895 = vpop.permute.xlu0 %894
    %896 = vrot.lane.b32.xlu0 %v661, 64
    %v897 = vpop.permute.xlu0 %896
    %v900 = vmul.f32 %v876, %v895
    %v901 = vmul.f32 %v881, %v897
    %v902 = vmul.f32 %v886, %v895
    %v903 = vmul.f32 %v891, %v897
    %v904 = vadd.f32 %v900, %v901
    %v905 = vadd.f32 %v902, %v903
    %v906 = vlaneseq
    %v907 = vshrl.u32 %v906, 7
    %v908 = vsub.s32 0, %v907
    %v909 = vrot.slane %v65, %v908
    %v911 = vsel %vm143, %v904, 0
    %v914 = vsel %vm143, %v905, 0
    %916 = vmatprep.subr.mxu0 0.0
    %917 = vmatpush1.msra.mxu0 %v575
    %918 = vmatprep.subr.mxu0 0.0
    %919 = vmatpush1.msra.mxu0 %v576
    %920 = vmatprep.subr.mxu0 0.0
    %921 = vmatpush1.msra.mxu0 %v577
    %922 = vmatprep.subr.mxu0 0.0
    %923 = vmatpush1.msra.mxu0 %v578
    %924 = vmatprep.subr.mxu0 0.0
    %925 = vmatpush1.msra.mxu0 0.0
    %926 = vmatprep.subr.mxu0 0.0
    %927 = vmatpush1.msra.mxu0 0.0
    %928 = vmatprep.subr.mxu0 0.0
    %929 = vmatpush1.msra.mxu0 0.0
    %930 = vmatprep.subr.mxu0 0.0
    %931 = vmatpush1.msra.mxu0 0.0
    %932 = vmatprep.subr.mxu0 0.0
    %933 = vmatpush1.msra.mxu0 0.0
    %934 = vmatprep.subr.mxu0 0.0
    %935 = vmatpush1.msra.mxu0 0.0
    %936 = vmatprep.subr.mxu0 0.0
    %937 = vmatpush1.msra.mxu0 0.0
    %938 = vmatprep.subr.mxu0 0.0
    %939 = vmatpush1.msra.mxu0 0.0
    %940 = vmatprep.subr.mxu0 0.0
    %941 = vmatpush1.msra.mxu0 0.0
    %942 = vmatprep.subr.mxu0 0.0
    %943 = vmatpush1.msra.mxu0 0.0
    %944 = vmatprep.subr.mxu0 0.0
    %945 = vmatpush1.msra.mxu0 0.0
    %946 = vmatprep.subr.mxu0 0.0
    %947 = vmatpush1.msra.mxu0 0.0
    %948 = vmatprep.subr.mxu0 0.0
    %949 = vmatpush1.msra.mxu0 0.0
    %950 = vmatprep.subr.mxu0 0.0
    %951 = vmatpush1.msra.mxu0 0.0
    %952 = vmatprep.subr.mxu0 0.0
    %953 = vmatpush1.msra.mxu0 0.0
    %954 = vmatprep.subr.mxu0 0.0
    %955 = vmatpush1.msra.mxu0 0.0
    %956 = vmatprep.subr.mxu0 0.0
    %957 = vmatpush1.msra.mxu0 0.0
    %958 = vmatprep.subr.mxu0 0.0
    %959 = vmatpush1.msra.mxu0 0.0
    %960 = vmatprep.subr.mxu0 0.0
    %961 = vmatpush1.msra.mxu0 0.0
    %962 = vmatprep.subr.mxu0 0.0
    %963 = vmatpush1.msra.mxu0 0.0
    %964 = vmatprep.subr.mxu0 0.0
    %965 = vmatpush1.msra.mxu0 0.0
    %966 = vmatprep.subr.mxu0 0.0
    %967 = vmatpush1.msra.mxu0 0.0
    %968 = vmatprep.subr.mxu0 0.0
    %969 = vmatpush1.msra.mxu0 0.0
    %970 = vmatprep.subr.mxu0 0.0
    %971 = vmatpush1.msra.mxu0 0.0
    %972 = vmatprep.subr.mxu0 0.0
    %973 = vmatpush1.msra.mxu0 0.0
    %974 = vmatprep.subr.mxu0 0.0
    %975 = vmatpush1.msra.mxu0 0.0
    %976 = vmatprep.subr.mxu0 0.0
    %977 = vmatpush1.msra.mxu0 0.0
    %978 = vmatprep.subr.mxu0 0.0
    %979 = vmatpush1.msra.mxu0 0.0
    %980 = vmatprep.mubr.f32.mxu0 0.0
    %981 = vmatmul.mubr.f32.gmra.mrb[0].mxu0 %v911
    %v982 = vpop.f32.mrb[0].mxu0
    %v983 = vadd.f32 %v909, %v982
    %v984 = vpop.f32.mrb[0].mxu0
    %985 = vmatprep.mubr.f32.mxu0 0.0
    %986 = vmatmul.mubr.f32.gmra.mrb[0].mxu0 %v914
    %v987 = vpop.f32.mrb[0].mxu0
    %v988 = vadd.f32 %v909, %v987
    %v989 = vpop.f32.mrb[0].mxu0
    %990 = vdwg.mxu0
    %v991 = vadd.f32 %v569, %v983
    %v992 = vadd.f32 %v570, %v988
    %v993 = vsel %vm143, %v991, 0.0
    %994 = vadd.xlane.f32.xlu0 %v993
    %v995 = vpop.xlane.xlu0 %994
    %v996 = vsel %vm143, %v992, 0.0
    %997 = vadd.xlane.f32.xlu0 %v996
    %v998 = vpop.xlane.xlu0 %997
    %v999 = vrcp.pop 32.0
    %v1000 = vmul.f32 %v995, %v999
    %v1001 = vmul.f32 %v998, %v999
    %v1002 = vsub.f32 %v991, %v1000
    %v1003 = vsub.f32 %v992, %v1001
    %v1004 = vmul.f32 %v1002, %v1002
    %v1005 = vmul.f32 %v1003, %v1003
    %v1006 = vsel %vm143, %v1004, 0.0
    %1007 = vadd.xlane.f32.xlu0 %v1006
    %v1008 = vpop.xlane.xlu0 %1007
    %v1009 = vsel %vm143, %v1005, 0.0
    %1010 = vadd.xlane.f32.xlu0 %v1009
    %v1011 = vpop.xlane.xlu0 %1010
    %v1012 = vmul.f32 %v1008, %v999
    %v1013 = vmul.f32 %v1011, %v999
    %v1014 = vadd.f32 %v1012, 1e-05
    %v1015 = vadd.f32 %v1013, 1e-05
    %v1016 = vrsqrt.pop %v1014
    %v1017 = vrsqrt.pop %v1015
    %v1018 = vmul.f32 %v1002, %v1016
    %v1019 = vmul.f32 %v1003, %v1017
    %v1020 = vlaneseq
    %v1021 = vshrl.u32 %v1020, 7
    %v1022 = vsub.s32 0, %v1021
    %v1023 = vrot.slane %v66, %v1022
    %v1024 = vmul.f32 %v1018, %v1023
    %v1025 = vmul.f32 %v1019, %v1023
    %v1026 = vlaneseq
    %v1027 = vshrl.u32 %v1026, 7
    %v1028 = vsub.s32 0, %v1027
    %v1029 = vrot.slane %v67, %v1028
    %v1030 = vadd.f32 %v1024, %v1029
    %v1031 = vadd.f32 %v1025, %v1029
    %v1032 = vpack.c.bf16 %v1031, %v1030
    %v1033 = vld [vmem:[%s10] sm:$0xff]
    %v1034 = vld [vmem:[%s10 + $0x8] sm:$0xff]
    %v1035 = vld [vmem:[%s10 + $0x10] sm:$0xff]
    %v1036 = vld [vmem:[%s10 + $0x18] sm:$0xff]
    %v1037 = vld [vmem:[%s10 + $0x20] sm:$0xff]
    %v1038 = vld [vmem:[%s10 + $0x28] sm:$0xff]
    %v1039 = vld [vmem:[%s10 + $0x30] sm:$0xff]
    %v1040 = vld [vmem:[%s10 + $0x38] sm:$0xff]
    %v1041 = vld [vmem:[%s10 + $0x40] sm:$0xff]
    %v1042 = vld [vmem:[%s10 + $0x48] sm:$0xff]
    %v1043 = vld [vmem:[%s10 + $0x50] sm:$0xff]
    %v1044 = vld [vmem:[%s10 + $0x58] sm:$0xff]
    %v1045 = vld [vmem:[%s10 + $0x60] sm:$0xff]
    %v1046 = vld [vmem:[%s10 + $0x68] sm:$0xff]
    %v1047 = vld [vmem:[%s10 + $0x70] sm:$0xff]
    %v1048 = vld [vmem:[%s10 + $0x78] sm:$0xff]
    %v1049 = vld [vmem:[%s10 + $0x80] sm:$0xff]
    %v1050 = vld [vmem:[%s10 + $0x88] sm:$0xff]
    %v1051 = vld [vmem:[%s10 + $0x90] sm:$0xff]
    %v1052 = vld [vmem:[%s10 + $0x98] sm:$0xff]
    %v1053 = vld [vmem:[%s10 + $0xa0] sm:$0xff]
    %v1054 = vld [vmem:[%s10 + $0xa8] sm:$0xff]
    %v1055 = vld [vmem:[%s10 + $0xb0] sm:$0xff]
    %v1056 = vld [vmem:[%s10 + $0xb8] sm:$0xff]
    %v1057 = vld [vmem:[%s10 + $0xc0] sm:$0xff]
    %v1058 = vld [vmem:[%s10 + $0xc8] sm:$0xff]
    %v1059 = vld [vmem:[%s10 + $0xd0] sm:$0xff]
    %v1060 = vld [vmem:[%s10 + $0xd8] sm:$0xff]
    %v1061 = vld [vmem:[%s10 + $0xe0] sm:$0xff]
    %v1062 = vld [vmem:[%s10 + $0xe8] sm:$0xff]
    %v1063 = vld [vmem:[%s10 + $0xf0] sm:$0xff]
    %v1064 = vld [vmem:[%s10 + $0xf8] sm:$0xff]
    %v1065 = vld [vmem:[%s11] sm:$0xff]
    %v1066 = vld [vmem:[%s11 + $0x8] sm:$0xff]
    %v1069 = vlaneseq
    %v1070 = vshrl.u32 %v1069, 7
    %v1071 = vsub.s32 0, %v1070
    %v1072 = vrot.slane %v1065, %v1071
    %v1073 = vlaneseq
    %v1074 = vshrl.u32 %v1073, 7
    %v1075 = vsub.s32 1, %v1074
    %v1076 = vrot.slane %v1065, %v1075
    %v1077 = vlaneseq
    %v1078 = vshrl.u32 %v1077, 7
    %v1079 = vsub.s32 2, %v1078
    %v1080 = vrot.slane %v1065, %v1079
    %v1081 = vlaneseq
    %v1082 = vshrl.u32 %v1081, 7
    %v1083 = vsub.s32 3, %v1082
    %v1084 = vrot.slane %v1065, %v1083
    %v1085 = vlaneseq
    %v1086 = vshrl.u32 %v1085, 7
    %v1087 = vsub.s32 4, %v1086
    %v1088 = vrot.slane %v1065, %v1087
    %v1089 = vlaneseq
    %v1090 = vshrl.u32 %v1089, 7
    %v1091 = vsub.s32 5, %v1090
    %v1092 = vrot.slane %v1065, %v1091
    %v1093 = vlaneseq
    %v1094 = vshrl.u32 %v1093, 7
    %v1095 = vsub.s32 6, %v1094
    %v1096 = vrot.slane %v1065, %v1095
    %v1097 = vlaneseq
    %v1098 = vshrl.u32 %v1097, 7
    %v1099 = vsub.s32 7, %v1098
    %v1100 = vrot.slane %v1065, %v1099
    %v1101 = vlaneseq
    %v1102 = vshrl.u32 %v1101, 7
    %v1103 = vsub.s32 0, %v1102
    %v1104 = vrot.slane %v1066, %v1103
    %v1105 = vlaneseq
    %v1106 = vshrl.u32 %v1105, 7
    %v1107 = vsub.s32 1, %v1106
    %v1108 = vrot.slane %v1066, %v1107
    %v1109 = vlaneseq
    %v1110 = vshrl.u32 %v1109, 7
    %v1111 = vsub.s32 2, %v1110
    %v1112 = vrot.slane %v1066, %v1111
    %v1113 = vlaneseq
    %v1114 = vshrl.u32 %v1113, 7
    %v1115 = vsub.s32 3, %v1114
    %v1116 = vrot.slane %v1066, %v1115
    %v1117 = vlaneseq
    %v1118 = vshrl.u32 %v1117, 7
    %v1119 = vsub.s32 4, %v1118
    %v1120 = vrot.slane %v1066, %v1119
    %v1121 = vlaneseq
    %v1122 = vshrl.u32 %v1121, 7
    %v1123 = vsub.s32 5, %v1122
    %v1124 = vrot.slane %v1066, %v1123
    %v1125 = vlaneseq
    %v1126 = vshrl.u32 %v1125, 7
    %v1127 = vsub.s32 6, %v1126
    %v1128 = vrot.slane %v1066, %v1127
    %v1129 = vlaneseq
    %v1130 = vshrl.u32 %v1129, 7
    %v1131 = vsub.s32 7, %v1130
    %v1132 = vrot.slane %v1066, %v1131
    %v1181 = vunpack.c.l.b16 %v1033
    %v1182 = vunpack.c.h.b16 %v1033
    %v1183 = vunpack.c.l.b16 %v1034
    %v1184 = vunpack.c.h.b16 %v1034
    %v1185 = vunpack.c.l.b16 %v1035
    %v1186 = vunpack.c.h.b16 %v1035
    %v1187 = vunpack.c.l.b16 %v1036
    %v1188 = vunpack.c.h.b16 %v1036
    %v1189 = vunpack.c.l.b16 %v1037
    %v1190 = vunpack.c.h.b16 %v1037
    %v1191 = vunpack.c.l.b16 %v1038
    %v1192 = vunpack.c.h.b16 %v1038
    %v1193 = vunpack.c.l.b16 %v1039
    %v1194 = vunpack.c.h.b16 %v1039
    %v1195 = vunpack.c.l.b16 %v1040
    %v1196 = vunpack.c.h.b16 %v1040
    %v1197 = vunpack.c.l.b16 %v1041
    %v1198 = vunpack.c.h.b16 %v1041
    %v1199 = vunpack.c.l.b16 %v1042
    %v1200 = vunpack.c.h.b16 %v1042
    %v1201 = vunpack.c.l.b16 %v1043
    %v1202 = vunpack.c.h.b16 %v1043
    %v1203 = vunpack.c.l.b16 %v1044
    %v1204 = vunpack.c.h.b16 %v1044
    %v1205 = vunpack.c.l.b16 %v1045
    %v1206 = vunpack.c.h.b16 %v1045
    %v1207 = vunpack.c.l.b16 %v1046
    %v1208 = vunpack.c.h.b16 %v1046
    %v1209 = vunpack.c.l.b16 %v1047
    %v1210 = vunpack.c.h.b16 %v1047
    %v1211 = vunpack.c.l.b16 %v1048
    %v1212 = vunpack.c.h.b16 %v1048
    %v1213 = vunpack.c.l.b16 %v1049
    %v1214 = vunpack.c.h.b16 %v1049
    %v1215 = vunpack.c.l.b16 %v1050
    %v1216 = vunpack.c.h.b16 %v1050
    %v1217 = vunpack.c.l.b16 %v1051
    %v1218 = vunpack.c.h.b16 %v1051
    %v1219 = vunpack.c.l.b16 %v1052
    %v1220 = vunpack.c.h.b16 %v1052
    %v1221 = vunpack.c.l.b16 %v1053
    %v1222 = vunpack.c.h.b16 %v1053
    %v1223 = vunpack.c.l.b16 %v1054
    %v1224 = vunpack.c.h.b16 %v1054
    %v1225 = vunpack.c.l.b16 %v1055
    %v1226 = vunpack.c.h.b16 %v1055
    %v1227 = vunpack.c.l.b16 %v1056
    %v1228 = vunpack.c.h.b16 %v1056
    %v1229 = vunpack.c.l.b16 %v1057
    %v1230 = vunpack.c.h.b16 %v1057
    %v1231 = vunpack.c.l.b16 %v1058
    %v1232 = vunpack.c.h.b16 %v1058
    %v1233 = vunpack.c.l.b16 %v1059
    %v1234 = vunpack.c.h.b16 %v1059
    %v1235 = vunpack.c.l.b16 %v1060
    %v1236 = vunpack.c.h.b16 %v1060
    %v1237 = vunpack.c.l.b16 %v1061
    %v1238 = vunpack.c.h.b16 %v1061
    %v1239 = vunpack.c.l.b16 %v1062
    %v1240 = vunpack.c.h.b16 %v1062
    %v1241 = vunpack.c.l.b16 %v1063
    %v1242 = vunpack.c.h.b16 %v1063
    %v1243 = vunpack.c.l.b16 %v1064
    %v1244 = vunpack.c.h.b16 %v1064
    %v1245 = vpack.c.b16 %v1197, %v1181
    %v1246 = vpack.c.b16 %v1198, %v1182
    %v1247 = vpack.c.b16 %v1199, %v1183
    %v1248 = vpack.c.b16 %v1200, %v1184
    %v1249 = vpack.c.b16 %v1201, %v1185
    %v1250 = vpack.c.b16 %v1202, %v1186
    %v1251 = vpack.c.b16 %v1203, %v1187
    %v1252 = vpack.c.b16 %v1204, %v1188
    %v1253 = vpack.c.b16 %v1205, %v1189
    %v1254 = vpack.c.b16 %v1206, %v1190
    %v1255 = vpack.c.b16 %v1207, %v1191
    %v1256 = vpack.c.b16 %v1208, %v1192
    %v1257 = vpack.c.b16 %v1209, %v1193
    %v1258 = vpack.c.b16 %v1210, %v1194
    %v1259 = vpack.c.b16 %v1211, %v1195
    %v1260 = vpack.c.b16 %v1212, %v1196
    %v1261 = vpack.c.b16 %v1229, %v1213
    %v1262 = vpack.c.b16 %v1230, %v1214
    %v1263 = vpack.c.b16 %v1231, %v1215
    %v1264 = vpack.c.b16 %v1232, %v1216
    %v1265 = vpack.c.b16 %v1233, %v1217
    %v1266 = vpack.c.b16 %v1234, %v1218
    %v1267 = vpack.c.b16 %v1235, %v1219
    %v1268 = vpack.c.b16 %v1236, %v1220
    %v1269 = vpack.c.b16 %v1237, %v1221
    %v1270 = vpack.c.b16 %v1238, %v1222
    %v1271 = vpack.c.b16 %v1239, %v1223
    %v1272 = vpack.c.b16 %v1240, %v1224
    %v1273 = vpack.c.b16 %v1241, %v1225
    %v1274 = vpack.c.b16 %v1242, %v1226
    %v1275 = vpack.c.b16 %v1243, %v1227
    %v1276 = vpack.c.b16 %v1244, %v1228
    %v1310 = vsel %vm143, %v1032, 0
    %1312 = vmatprep.subr.bf16.mxu0 %v1246
    %1313 = vmatpush1.bf16.msra.mxu0 %v1245
    %1314 = vmatprep.subr.bf16.mxu0 %v1262
    %1315 = vmatpush1.bf16.msra.mxu0 %v1261
    %1316 = vmatprep.subr.bf16.mxu0 0
    %1317 = vmatpush1.bf16.msra.mxu0 0
    %1318 = vmatprep.subr.bf16.mxu0 0
    %1319 = vmatpush1.bf16.msra.mxu0 0
    %1320 = vmatprep.subr.bf16.mxu0 0
    %1321 = vmatpush1.bf16.msra.mxu0 0
    %1322 = vmatprep.subr.bf16.mxu0 0
    %1323 = vmatpush1.bf16.msra.mxu0 0
    %1324 = vmatprep.subr.bf16.mxu0 0
    %1325 = vmatpush1.bf16.msra.mxu0 0
    %1326 = vmatprep.subr.bf16.mxu0 0
    %1327 = vmatpush1.bf16.msra.mxu0 0
    %1328 = vmatprep.subr.bf16.mxu0 0
    %1329 = vmatpush1.bf16.msra.mxu0 0
    %1330 = vmatprep.subr.bf16.mxu0 0
    %1331 = vmatpush1.bf16.msra.mxu0 0
    %1332 = vmatprep.subr.bf16.mxu0 0
    %1333 = vmatpush1.bf16.msra.mxu0 0
    %1334 = vmatprep.subr.bf16.mxu0 0
    %1335 = vmatpush1.bf16.msra.mxu0 0
    %1336 = vmatprep.subr.bf16.mxu0 0
    %1337 = vmatpush1.bf16.msra.mxu0 0
    %1338 = vmatprep.subr.bf16.mxu0 0
    %1339 = vmatpush1.bf16.msra.mxu0 0
    %1340 = vmatprep.subr.bf16.mxu0 0
    %1341 = vmatpush1.bf16.msra.mxu0 0
    %1342 = vmatprep.subr.bf16.mxu0 0
    %1343 = vmatpush1.bf16.msra.mxu0 0
    %1344 = vmatprep.mubr.bf16.mxu0 0
    %1345 = vmatmul.mubr.bf16.gmra.mrb[0].mxu0 %v1310
    %v1346 = vpop.f32.mrb[0].mxu0
    %v1347 = vadd.f32 %v1072, %v1346
    %v1348 = vpop.f32.mrb[0].mxu0
    %v1349 = vadd.f32 %v1076, %v1348
    %v1350 = vpop.f32.mrb[0].mxu0
    %v1351 = vadd.f32 %v1072, %v1350
    %v1352 = vpop.f32.mrb[0].mxu0
    %v1353 = vadd.f32 %v1076, %v1352
    %1354 = vdwg.mxu0
    %1355 = vmatprep.subr.bf16.mxu0 %v1248
    %1356 = vmatpush1.bf16.msra.mxu0 %v1247
    %1357 = vmatprep.subr.bf16.mxu0 %v1264
    %1358 = vmatpush1.bf16.msra.mxu0 %v1263
    %1359 = vmatprep.subr.bf16.mxu0 0
    %1360 = vmatpush1.bf16.msra.mxu0 0
    %1361 = vmatprep.subr.bf16.mxu0 0
    %1362 = vmatpush1.bf16.msra.mxu0 0
    %1363 = vmatprep.subr.bf16.mxu0 0
    %1364 = vmatpush1.bf16.msra.mxu0 0
    %1365 = vmatprep.subr.bf16.mxu0 0
    %1366 = vmatpush1.bf16.msra.mxu0 0
    %1367 = vmatprep.subr.bf16.mxu0 0
    %1368 = vmatpush1.bf16.msra.mxu0 0
    %1369 = vmatprep.subr.bf16.mxu0 0
    %1370 = vmatpush1.bf16.msra.mxu0 0
    %1371 = vmatprep.subr.bf16.mxu0 0
    %1372 = vmatpush1.bf16.msra.mxu0 0
    %1373 = vmatprep.subr.bf16.mxu0 0
    %1374 = vmatpush1.bf16.msra.mxu0 0
    %1375 = vmatprep.subr.bf16.mxu0 0
    %1376 = vmatpush1.bf16.msra.mxu0 0
    %1377 = vmatprep.subr.bf16.mxu0 0
    %1378 = vmatpush1.bf16.msra.mxu0 0
    %1379 = vmatprep.subr.bf16.mxu0 0
    %1380 = vmatpush1.bf16.msra.mxu0 0
    %1381 = vmatprep.subr.bf16.mxu0 0
    %1382 = vmatpush1.bf16.msra.mxu0 0
    %1383 = vmatprep.subr.bf16.mxu0 0
    %1384 = vmatpush1.bf16.msra.mxu0 0
    %1385 = vmatprep.subr.bf16.mxu0 0
    %1386 = vmatpush1.bf16.msra.mxu0 0
    %1387 = vmatprep.mubr.bf16.mxu0 0
    %1388 = vmatmul.mubr.bf16.gmra.mrb[0].mxu0 %v1310
    %v1389 = vpop.f32.mrb[0].mxu0
    %v1390 = vadd.f32 %v1080, %v1389
    %v1391 = vpop.f32.mrb[0].mxu0
    %v1392 = vadd.f32 %v1084, %v1391
    %v1393 = vpop.f32.mrb[0].mxu0
    %v1394 = vadd.f32 %v1080, %v1393
    %v1395 = vpop.f32.mrb[0].mxu0
    %v1396 = vadd.f32 %v1084, %v1395
    %1397 = vdwg.mxu0
    %1398 = vmatprep.subr.bf16.mxu0 %v1250
    %1399 = vmatpush1.bf16.msra.mxu0 %v1249
    %1400 = vmatprep.subr.bf16.mxu0 %v1266
    %1401 = vmatpush1.bf16.msra.mxu0 %v1265
    %1402 = vmatprep.subr.bf16.mxu0 0
    %1403 = vmatpush1.bf16.msra.mxu0 0
    %1404 = vmatprep.subr.bf16.mxu0 0
    %1405 = vmatpush1.bf16.msra.mxu0 0
    %1406 = vmatprep.subr.bf16.mxu0 0
    %1407 = vmatpush1.bf16.msra.mxu0 0
    %1408 = vmatprep.subr.bf16.mxu0 0
    %1409 = vmatpush1.bf16.msra.mxu0 0
    %1410 = vmatprep.subr.bf16.mxu0 0
    %1411 = vmatpush1.bf16.msra.mxu0 0
    %1412 = vmatprep.subr.bf16.mxu0 0
    %1413 = vmatpush1.bf16.msra.mxu0 0
    %1414 = vmatprep.subr.bf16.mxu0 0
    %1415 = vmatpush1.bf16.msra.mxu0 0
    %1416 = vmatprep.subr.bf16.mxu0 0
    %1417 = vmatpush1.bf16.msra.mxu0 0
    %1418 = vmatprep.subr.bf16.mxu0 0
    %1419 = vmatpush1.bf16.msra.mxu0 0
    %1420 = vmatprep.subr.bf16.mxu0 0
    %1421 = vmatpush1.bf16.msra.mxu0 0
    %1422 = vmatprep.subr.bf16.mxu0 0
    %1423 = vmatpush1.bf16.msra.mxu0 0
    %1424 = vmatprep.subr.bf16.mxu0 0
    %1425 = vmatpush1.bf16.msra.mxu0 0
    %1426 = vmatprep.subr.bf16.mxu0 0
    %1427 = vmatpush1.bf16.msra.mxu0 0
    %1428 = vmatprep.subr.bf16.mxu0 0
    %1429 = vmatpush1.bf16.msra.mxu0 0
    %1430 = vmatprep.mubr.bf16.mxu0 0
    %1431 = vmatmul.mubr.bf16.gmra.mrb[0].mxu0 %v1310
    %v1432 = vpop.f32.mrb[0].mxu0
    %v1433 = vadd.f32 %v1088, %v1432
    %v1434 = vpop.f32.mrb[0].mxu0
    %v1435 = vadd.f32 %v1092, %v1434
    %v1436 = vpop.f32.mrb[0].mxu0
    %v1437 = vadd.f32 %v1088, %v1436
    %v1438 = vpop.f32.mrb[0].mxu0
    %v1439 = vadd.f32 %v1092, %v1438
    %1440 = vdwg.mxu0
    %1441 = vmatprep.subr.bf16.mxu0 %v1252
    %1442 = vmatpush1.bf16.msra.mxu0 %v1251
    %1443 = vmatprep.subr.bf16.mxu0 %v1268
    %1444 = vmatpush1.bf16.msra.mxu0 %v1267
    %1445 = vmatprep.subr.bf16.mxu0 0
    %1446 = vmatpush1.bf16.msra.mxu0 0
    %1447 = vmatprep.subr.bf16.mxu0 0
    %1448 = vmatpush1.bf16.msra.mxu0 0
    %1449 = vmatprep.subr.bf16.mxu0 0
    %1450 = vmatpush1.bf16.msra.mxu0 0
    %1451 = vmatprep.subr.bf16.mxu0 0
    %1452 = vmatpush1.bf16.msra.mxu0 0
    %1453 = vmatprep.subr.bf16.mxu0 0
    %1454 = vmatpush1.bf16.msra.mxu0 0
    %1455 = vmatprep.subr.bf16.mxu0 0
    %1456 = vmatpush1.bf16.msra.mxu0 0
    %1457 = vmatprep.subr.bf16.mxu0 0
    %1458 = vmatpush1.bf16.msra.mxu0 0
    %1459 = vmatprep.subr.bf16.mxu0 0
    %1460 = vmatpush1.bf16.msra.mxu0 0
    %1461 = vmatprep.subr.bf16.mxu0 0
    %1462 = vmatpush1.bf16.msra.mxu0 0
    %1463 = vmatprep.subr.bf16.mxu0 0
    %1464 = vmatpush1.bf16.msra.mxu0 0
    %1465 = vmatprep.subr.bf16.mxu0 0
    %1466 = vmatpush1.bf16.msra.mxu0 0
    %1467 = vmatprep.subr.bf16.mxu0 0
    %1468 = vmatpush1.bf16.msra.mxu0 0
    %1469 = vmatprep.subr.bf16.mxu0 0
    %1470 = vmatpush1.bf16.msra.mxu0 0
    %1471 = vmatprep.subr.bf16.mxu0 0
    %1472 = vmatpush1.bf16.msra.mxu0 0
    %1473 = vmatprep.mubr.bf16.mxu0 0
    %1474 = vmatmul.mubr.bf16.gmra.mrb[0].mxu0 %v1310
    %v1475 = vpop.f32.mrb[0].mxu0
    %v1476 = vadd.f32 %v1096, %v1475
    %v1477 = vpop.f32.mrb[0].mxu0
    %v1478 = vadd.f32 %v1100, %v1477
    %v1479 = vpop.f32.mrb[0].mxu0
    %v1480 = vadd.f32 %v1096, %v1479
    %v1481 = vpop.f32.mrb[0].mxu0
    %v1482 = vadd.f32 %v1100, %v1481
    %1483 = vdwg.mxu0
    %1484 = vmatprep.subr.bf16.mxu0 %v1254
    %1485 = vmatpush1.bf16.msra.mxu0 %v1253
    %1486 = vmatprep.subr.bf16.mxu0 %v1270
    %1487 = vmatpush1.bf16.msra.mxu0 %v1269
    %1488 = vmatprep.subr.bf16.mxu0 0
    %1489 = vmatpush1.bf16.msra.mxu0 0
    %1490 = vmatprep.subr.bf16.mxu0 0
    %1491 = vmatpush1.bf16.msra.mxu0 0
    %1492 = vmatprep.subr.bf16.mxu0 0
    %1493 = vmatpush1.bf16.msra.mxu0 0
    %1494 = vmatprep.subr.bf16.mxu0 0
    %1495 = vmatpush1.bf16.msra.mxu0 0
    %1496 = vmatprep.subr.bf16.mxu0 0
    %1497 = vmatpush1.bf16.msra.mxu0 0
    %1498 = vmatprep.subr.bf16.mxu0 0
    %1499 = vmatpush1.bf16.msra.mxu0 0
    %1500 = vmatprep.subr.bf16.mxu0 0
    %1501 = vmatpush1.bf16.msra.mxu0 0
    %1502 = vmatprep.subr.bf16.mxu0 0
    %1503 = vmatpush1.bf16.msra.mxu0 0
    %1504 = vmatprep.subr.bf16.mxu0 0
    %1505 = vmatpush1.bf16.msra.mxu0 0
    %1506 = vmatprep.subr.bf16.mxu0 0
    %1507 = vmatpush1.bf16.msra.mxu0 0
    %1508 = vmatprep.subr.bf16.mxu0 0
    %1509 = vmatpush1.bf16.msra.mxu0 0
    %1510 = vmatprep.subr.bf16.mxu0 0
    %1511 = vmatpush1.bf16.msra.mxu0 0
    %1512 = vmatprep.subr.bf16.mxu0 0
    %1513 = vmatpush1.bf16.msra.mxu0 0
    %1514 = vmatprep.subr.bf16.mxu0 0
    %1515 = vmatpush1.bf16.msra.mxu0 0
    %1516 = vmatprep.mubr.bf16.mxu0 0
    %1517 = vmatmul.mubr.bf16.gmra.mrb[0].mxu0 %v1310
    %v1518 = vpop.f32.mrb[0].mxu0
    %v1519 = vadd.f32 %v1104, %v1518
    %v1520 = vpop.f32.mrb[0].mxu0
    %v1521 = vadd.f32 %v1108, %v1520
    %v1522 = vpop.f32.mrb[0].mxu0
    %v1523 = vadd.f32 %v1104, %v1522
    %v1524 = vpop.f32.mrb[0].mxu0
    %v1525 = vadd.f32 %v1108, %v1524
    %1526 = vdwg.mxu0
    %1527 = vmatprep.subr.bf16.mxu0 %v1256
    %1528 = vmatpush1.bf16.msra.mxu0 %v1255
    %1529 = vmatprep.subr.bf16.mxu0 %v1272
    %1530 = vmatpush1.bf16.msra.mxu0 %v1271
    %1531 = vmatprep.subr.bf16.mxu0 0
    %1532 = vmatpush1.bf16.msra.mxu0 0
    %1533 = vmatprep.subr.bf16.mxu0 0
    %1534 = vmatpush1.bf16.msra.mxu0 0
    %1535 = vmatprep.subr.bf16.mxu0 0
    %1536 = vmatpush1.bf16.msra.mxu0 0
    %1537 = vmatprep.subr.bf16.mxu0 0
    %1538 = vmatpush1.bf16.msra.mxu0 0
    %1539 = vmatprep.subr.bf16.mxu0 0
    %1540 = vmatpush1.bf16.msra.mxu0 0
    %1541 = vmatprep.subr.bf16.mxu0 0
    %1542 = vmatpush1.bf16.msra.mxu0 0
    %1543 = vmatprep.subr.bf16.mxu0 0
    %1544 = vmatpush1.bf16.msra.mxu0 0
    %1545 = vmatprep.subr.bf16.mxu0 0
    %1546 = vmatpush1.bf16.msra.mxu0 0
    %1547 = vmatprep.subr.bf16.mxu0 0
    %1548 = vmatpush1.bf16.msra.mxu0 0
    %1549 = vmatprep.subr.bf16.mxu0 0
    %1550 = vmatpush1.bf16.msra.mxu0 0
    %1551 = vmatprep.subr.bf16.mxu0 0
    %1552 = vmatpush1.bf16.msra.mxu0 0
    %1553 = vmatprep.subr.bf16.mxu0 0
    %1554 = vmatpush1.bf16.msra.mxu0 0
    %1555 = vmatprep.subr.bf16.mxu0 0
    %1556 = vmatpush1.bf16.msra.mxu0 0
    %1557 = vmatprep.subr.bf16.mxu0 0
    %1558 = vmatpush1.bf16.msra.mxu0 0
    %1559 = vmatprep.mubr.bf16.mxu0 0
    %1560 = vmatmul.mubr.bf16.gmra.mrb[0].mxu0 %v1310
    %v1561 = vpop.f32.mrb[0].mxu0
    %v1562 = vadd.f32 %v1112, %v1561
    %v1563 = vpop.f32.mrb[0].mxu0
    %v1564 = vadd.f32 %v1116, %v1563
    %v1565 = vpop.f32.mrb[0].mxu0
    %v1566 = vadd.f32 %v1112, %v1565
    %v1567 = vpop.f32.mrb[0].mxu0
    %v1568 = vadd.f32 %v1116, %v1567
    %1569 = vdwg.mxu0
    %1570 = vmatprep.subr.bf16.mxu0 %v1258
    %1571 = vmatpush1.bf16.msra.mxu0 %v1257
    %1572 = vmatprep.subr.bf16.mxu0 %v1274
    %1573 = vmatpush1.bf16.msra.mxu0 %v1273
    %1574 = vmatprep.subr.bf16.mxu0 0
    %1575 = vmatpush1.bf16.msra.mxu0 0
    %1576 = vmatprep.subr.bf16.mxu0 0
    %1577 = vmatpush1.bf16.msra.mxu0 0
    %1578 = vmatprep.subr.bf16.mxu0 0
    %1579 = vmatpush1.bf16.msra.mxu0 0
    %1580 = vmatprep.subr.bf16.mxu0 0
    %1581 = vmatpush1.bf16.msra.mxu0 0
    %1582 = vmatprep.subr.bf16.mxu0 0
    %1583 = vmatpush1.bf16.msra.mxu0 0
    %1584 = vmatprep.subr.bf16.mxu0 0
    %1585 = vmatpush1.bf16.msra.mxu0 0
    %1586 = vmatprep.subr.bf16.mxu0 0
    %1587 = vmatpush1.bf16.msra.mxu0 0
    %1588 = vmatprep.subr.bf16.mxu0 0
    %1589 = vmatpush1.bf16.msra.mxu0 0
    %1590 = vmatprep.subr.bf16.mxu0 0
    %1591 = vmatpush1.bf16.msra.mxu0 0
    %1592 = vmatprep.subr.bf16.mxu0 0
    %1593 = vmatpush1.bf16.msra.mxu0 0
    %1594 = vmatprep.subr.bf16.mxu0 0
    %1595 = vmatpush1.bf16.msra.mxu0 0
    %1596 = vmatprep.subr.bf16.mxu0 0
    %1597 = vmatpush1.bf16.msra.mxu0 0
    %1598 = vmatprep.subr.bf16.mxu0 0
    %1599 = vmatpush1.bf16.msra.mxu0 0
    %1600 = vmatprep.subr.bf16.mxu0 0
    %1601 = vmatpush1.bf16.msra.mxu0 0
    %1602 = vmatprep.mubr.bf16.mxu0 0
    %1603 = vmatmul.mubr.bf16.gmra.mrb[0].mxu0 %v1310
    %v1604 = vpop.f32.mrb[0].mxu0
    %v1605 = vadd.f32 %v1120, %v1604
    %v1606 = vpop.f32.mrb[0].mxu0
    %v1607 = vadd.f32 %v1124, %v1606
    %v1608 = vpop.f32.mrb[0].mxu0
    %v1609 = vadd.f32 %v1120, %v1608
    %v1610 = vpop.f32.mrb[0].mxu0
    %v1611 = vadd.f32 %v1124, %v1610
    %1612 = vdwg.mxu0
    %1613 = vmatprep.subr.bf16.mxu0 %v1260
    %1614 = vmatpush1.bf16.msra.mxu0 %v1259
    %1615 = vmatprep.subr.bf16.mxu0 %v1276
    %1616 = vmatpush1.bf16.msra.mxu0 %v1275
    %1617 = vmatprep.subr.bf16.mxu0 0
    %1618 = vmatpush1.bf16.msra.mxu0 0
    %1619 = vmatprep.subr.bf16.mxu0 0
    %1620 = vmatpush1.bf16.msra.mxu0 0
    %1621 = vmatprep.subr.bf16.mxu0 0
    %1622 = vmatpush1.bf16.msra.mxu0 0
    %1623 = vmatprep.subr.bf16.mxu0 0
    %1624 = vmatpush1.bf16.msra.mxu0 0
    %1625 = vmatprep.subr.bf16.mxu0 0
    %1626 = vmatpush1.bf16.msra.mxu0 0
    %1627 = vmatprep.subr.bf16.mxu0 0
    %1628 = vmatpush1.bf16.msra.mxu0 0
    %1629 = vmatprep.subr.bf16.mxu0 0
    %1630 = vmatpush1.bf16.msra.mxu0 0
    %1631 = vmatprep.subr.bf16.mxu0 0
    %1632 = vmatpush1.bf16.msra.mxu0 0
    %1633 = vmatprep.subr.bf16.mxu0 0
    %1634 = vmatpush1.bf16.msra.mxu0 0
    %1635 = vmatprep.subr.bf16.mxu0 0
    %1636 = vmatpush1.bf16.msra.mxu0 0
    %1637 = vmatprep.subr.bf16.mxu0 0
    %1638 = vmatpush1.bf16.msra.mxu0 0
    %1639 = vmatprep.subr.bf16.mxu0 0
    %1640 = vmatpush1.bf16.msra.mxu0 0
    %1641 = vmatprep.subr.bf16.mxu0 0
    %1642 = vmatpush1.bf16.msra.mxu0 0
    %1643 = vmatprep.subr.bf16.mxu0 0
    %1644 = vmatpush1.bf16.msra.mxu0 0
    %1645 = vmatprep.mubr.bf16.mxu0 0
    %1646 = vmatmul.mubr.bf16.gmra.mrb[0].mxu0 %v1310
    %v1647 = vpop.f32.mrb[0].mxu0
    %v1648 = vadd.f32 %v1128, %v1647
    %v1649 = vpop.f32.mrb[0].mxu0
    %v1650 = vadd.f32 %v1132, %v1649
    %v1651 = vpop.f32.mrb[0].mxu0
    %v1652 = vadd.f32 %v1128, %v1651
    %v1653 = vpop.f32.mrb[0].mxu0
    %v1654 = vadd.f32 %v1132, %v1653
    %1655 = vdwg.mxu0
    %v1656 = vmax.f32 %v1347, 0.0
    %v1657 = vmax.f32 %v1349, 0.0
    %v1658 = vmax.f32 %v1390, 0.0
    %v1659 = vmax.f32 %v1392, 0.0
    %v1660 = vmax.f32 %v1433, 0.0
    %v1661 = vmax.f32 %v1435, 0.0
    %v1662 = vmax.f32 %v1476, 0.0
    %v1663 = vmax.f32 %v1478, 0.0
    %v1664 = vmax.f32 %v1519, 0.0
    %v1665 = vmax.f32 %v1521, 0.0
    %v1666 = vmax.f32 %v1562, 0.0
    %v1667 = vmax.f32 %v1564, 0.0
    %v1668 = vmax.f32 %v1605, 0.0
    %v1669 = vmax.f32 %v1607, 0.0
    %v1670 = vmax.f32 %v1648, 0.0
    %v1671 = vmax.f32 %v1650, 0.0
    %v1672 = vmax.f32 %v1351, 0.0
    %v1673 = vmax.f32 %v1353, 0.0
    %v1674 = vmax.f32 %v1394, 0.0
    %v1675 = vmax.f32 %v1396, 0.0
    %v1676 = vmax.f32 %v1437, 0.0
    %v1677 = vmax.f32 %v1439, 0.0
    %v1678 = vmax.f32 %v1480, 0.0
    %v1679 = vmax.f32 %v1482, 0.0
    %v1680 = vmax.f32 %v1523, 0.0
    %v1681 = vmax.f32 %v1525, 0.0
    %v1682 = vmax.f32 %v1566, 0.0
    %v1683 = vmax.f32 %v1568, 0.0
    %v1684 = vmax.f32 %v1609, 0.0
    %v1685 = vmax.f32 %v1611, 0.0
    %v1686 = vmax.f32 %v1652, 0.0
    %v1687 = vmax.f32 %v1654, 0.0
    %v1688 = vpack.c.bf16 %v1672, %v1656
    %v1689 = vpack.c.bf16 %v1673, %v1657
    %v1690 = vpack.c.bf16 %v1674, %v1658
    %v1691 = vpack.c.bf16 %v1675, %v1659
    %v1692 = vpack.c.bf16 %v1676, %v1660
    %v1693 = vpack.c.bf16 %v1677, %v1661
    %v1694 = vpack.c.bf16 %v1678, %v1662
    %v1695 = vpack.c.bf16 %v1679, %v1663
    %v1696 = vpack.c.bf16 %v1680, %v1664
    %v1697 = vpack.c.bf16 %v1681, %v1665
    %v1698 = vpack.c.bf16 %v1682, %v1666
    %v1699 = vpack.c.bf16 %v1683, %v1667
    %v1700 = vpack.c.bf16 %v1684, %v1668
    %v1701 = vpack.c.bf16 %v1685, %v1669
    %v1702 = vpack.c.bf16 %v1686, %v1670
    %v1703 = vpack.c.bf16 %v1687, %v1671
    %v1704 = vld [vmem:[%s12] sm:$0xf]
    %v1705 = vld [vmem:[%s12 + $0x4] sm:$0xf]
    %v1706 = vld [vmem:[%s12 + $0x8] sm:$0xf]
    %v1707 = vld [vmem:[%s12 + $0xc] sm:$0xf]
    %v1708 = vld [vmem:[%s12 + $0x10] sm:$0xf]
    %v1709 = vld [vmem:[%s12 + $0x14] sm:$0xf]
    %v1710 = vld [vmem:[%s12 + $0x18] sm:$0xf]
    %v1711 = vld [vmem:[%s12 + $0x1c] sm:$0xf]
    %v1712 = vld [vmem:[%s12 + $0x20] sm:$0xf]
    %v1713 = vld [vmem:[%s12 + $0x24] sm:$0xf]
    %v1714 = vld [vmem:[%s12 + $0x28] sm:$0xf]
    %v1715 = vld [vmem:[%s12 + $0x2c] sm:$0xf]
    %v1716 = vld [vmem:[%s12 + $0x30] sm:$0xf]
    %v1717 = vld [vmem:[%s12 + $0x34] sm:$0xf]
    %v1718 = vld [vmem:[%s12 + $0x38] sm:$0xf]
    %v1719 = vld [vmem:[%s12 + $0x3c] sm:$0xf]
    %v1720 = vld [vmem:[%s12 + $0x40] sm:$0xf]
    %v1721 = vld [vmem:[%s12 + $0x44] sm:$0xf]
    %v1722 = vld [vmem:[%s12 + $0x48] sm:$0xf]
    %v1723 = vld [vmem:[%s12 + $0x4c] sm:$0xf]
    %v1724 = vld [vmem:[%s12 + $0x50] sm:$0xf]
    %v1725 = vld [vmem:[%s12 + $0x54] sm:$0xf]
    %v1726 = vld [vmem:[%s12 + $0x58] sm:$0xf]
    %v1727 = vld [vmem:[%s12 + $0x5c] sm:$0xf]
    %v1728 = vld [vmem:[%s12 + $0x60] sm:$0xf]
    %v1729 = vld [vmem:[%s12 + $0x64] sm:$0xf]
    %v1730 = vld [vmem:[%s12 + $0x68] sm:$0xf]
    %v1731 = vld [vmem:[%s12 + $0x6c] sm:$0xf]
    %v1732 = vld [vmem:[%s12 + $0x70] sm:$0xf]
    %v1733 = vld [vmem:[%s12 + $0x74] sm:$0xf]
    %v1734 = vld [vmem:[%s12 + $0x78] sm:$0xf]
    %v1735 = vld [vmem:[%s12 + $0x7c] sm:$0xf]
    %v1736 = vld [vmem:[%s12 + $0x80] sm:$0xf]
    %v1737 = vld [vmem:[%s12 + $0x84] sm:$0xf]
    %v1738 = vld [vmem:[%s12 + $0x88] sm:$0xf]
    %v1739 = vld [vmem:[%s12 + $0x8c] sm:$0xf]
    %v1740 = vld [vmem:[%s12 + $0x90] sm:$0xf]
    %v1741 = vld [vmem:[%s12 + $0x94] sm:$0xf]
    %v1742 = vld [vmem:[%s12 + $0x98] sm:$0xf]
    %v1743 = vld [vmem:[%s12 + $0x9c] sm:$0xf]
    %v1744 = vld [vmem:[%s12 + $0xa0] sm:$0xf]
    %v1745 = vld [vmem:[%s12 + $0xa4] sm:$0xf]
    %v1746 = vld [vmem:[%s12 + $0xa8] sm:$0xf]
    %v1747 = vld [vmem:[%s12 + $0xac] sm:$0xf]
    %v1748 = vld [vmem:[%s12 + $0xb0] sm:$0xf]
    %v1749 = vld [vmem:[%s12 + $0xb4] sm:$0xf]
    %v1750 = vld [vmem:[%s12 + $0xb8] sm:$0xf]
    %v1751 = vld [vmem:[%s12 + $0xbc] sm:$0xf]
    %v1752 = vld [vmem:[%s12 + $0xc0] sm:$0xf]
    %v1753 = vld [vmem:[%s12 + $0xc4] sm:$0xf]
    %v1754 = vld [vmem:[%s12 + $0xc8] sm:$0xf]
    %v1755 = vld [vmem:[%s12 + $0xcc] sm:$0xf]
    %v1756 = vld [vmem:[%s12 + $0xd0] sm:$0xf]
    %v1757 = vld [vmem:[%s12 + $0xd4] sm:$0xf]
    %v1758 = vld [vmem:[%s12 + $0xd8] sm:$0xf]
    %v1759 = vld [vmem:[%s12 + $0xdc] sm:$0xf]
    %v1760 = vld [vmem:[%s12 + $0xe0] sm:$0xf]
    %v1761 = vld [vmem:[%s12 + $0xe4] sm:$0xf]
    %v1762 = vld [vmem:[%s12 + $0xe8] sm:$0xf]
    %v1763 = vld [vmem:[%s12 + $0xec] sm:$0xf]
    %v1764 = vld [vmem:[%s12 + $0xf0] sm:$0xf]
    %v1765 = vld [vmem:[%s12 + $0xf4] sm:$0xf]
    %v1766 = vld [vmem:[%s12 + $0xf8] sm:$0xf]
    %v1767 = vld [vmem:[%s12 + $0xfc] sm:$0xf]
    %v1768 = vld [vmem:[%s12 + $0x100] sm:$0xf]
    %v1769 = vld [vmem:[%s12 + $0x104] sm:$0xf]
    %v1770 = vld [vmem:[%s12 + $0x108] sm:$0xf]
    %v1771 = vld [vmem:[%s12 + $0x10c] sm:$0xf]
    %v1772 = vld [vmem:[%s12 + $0x110] sm:$0xf]
    %v1773 = vld [vmem:[%s12 + $0x114] sm:$0xf]
    %v1774 = vld [vmem:[%s12 + $0x118] sm:$0xf]
    %v1775 = vld [vmem:[%s12 + $0x11c] sm:$0xf]
    %v1776 = vld [vmem:[%s12 + $0x120] sm:$0xf]
    %v1777 = vld [vmem:[%s12 + $0x124] sm:$0xf]
    %v1778 = vld [vmem:[%s12 + $0x128] sm:$0xf]
    %v1779 = vld [vmem:[%s12 + $0x12c] sm:$0xf]
    %v1780 = vld [vmem:[%s12 + $0x130] sm:$0xf]
    %v1781 = vld [vmem:[%s12 + $0x134] sm:$0xf]
    %v1782 = vld [vmem:[%s12 + $0x138] sm:$0xf]
    %v1783 = vld [vmem:[%s12 + $0x13c] sm:$0xf]
    %v1784 = vld [vmem:[%s12 + $0x140] sm:$0xf]
    %v1785 = vld [vmem:[%s12 + $0x144] sm:$0xf]
    %v1786 = vld [vmem:[%s12 + $0x148] sm:$0xf]
    %v1787 = vld [vmem:[%s12 + $0x14c] sm:$0xf]
    %v1788 = vld [vmem:[%s12 + $0x150] sm:$0xf]
    %v1789 = vld [vmem:[%s12 + $0x154] sm:$0xf]
    %v1790 = vld [vmem:[%s12 + $0x158] sm:$0xf]
    %v1791 = vld [vmem:[%s12 + $0x15c] sm:$0xf]
    %v1792 = vld [vmem:[%s12 + $0x160] sm:$0xf]
    %v1793 = vld [vmem:[%s12 + $0x164] sm:$0xf]
    %v1794 = vld [vmem:[%s12 + $0x168] sm:$0xf]
    %v1795 = vld [vmem:[%s12 + $0x16c] sm:$0xf]
    %v1796 = vld [vmem:[%s12 + $0x170] sm:$0xf]
    %v1797 = vld [vmem:[%s12 + $0x174] sm:$0xf]
    %v1798 = vld [vmem:[%s12 + $0x178] sm:$0xf]
    %v1799 = vld [vmem:[%s12 + $0x17c] sm:$0xf]
    %v1800 = vld [vmem:[%s12 + $0x180] sm:$0xf]
    %v1801 = vld [vmem:[%s12 + $0x184] sm:$0xf]
    %v1802 = vld [vmem:[%s12 + $0x188] sm:$0xf]
    %v1803 = vld [vmem:[%s12 + $0x18c] sm:$0xf]
    %v1804 = vld [vmem:[%s12 + $0x190] sm:$0xf]
    %v1805 = vld [vmem:[%s12 + $0x194] sm:$0xf]
    %v1806 = vld [vmem:[%s12 + $0x198] sm:$0xf]
    %v1807 = vld [vmem:[%s12 + $0x19c] sm:$0xf]
    %v1808 = vld [vmem:[%s12 + $0x1a0] sm:$0xf]
    %v1809 = vld [vmem:[%s12 + $0x1a4] sm:$0xf]
    %v1810 = vld [vmem:[%s12 + $0x1a8] sm:$0xf]
    %v1811 = vld [vmem:[%s12 + $0x1ac] sm:$0xf]
    %v1812 = vld [vmem:[%s12 + $0x1b0] sm:$0xf]
    %v1813 = vld [vmem:[%s12 + $0x1b4] sm:$0xf]
    %v1814 = vld [vmem:[%s12 + $0x1b8] sm:$0xf]
    %v1815 = vld [vmem:[%s12 + $0x1bc] sm:$0xf]
    %v1816 = vld [vmem:[%s12 + $0x1c0] sm:$0xf]
    %v1817 = vld [vmem:[%s12 + $0x1c4] sm:$0xf]
    %v1818 = vld [vmem:[%s12 + $0x1c8] sm:$0xf]
    %v1819 = vld [vmem:[%s12 + $0x1cc] sm:$0xf]
    %v1820 = vld [vmem:[%s12 + $0x1d0] sm:$0xf]
    %v1821 = vld [vmem:[%s12 + $0x1d4] sm:$0xf]
    %v1822 = vld [vmem:[%s12 + $0x1d8] sm:$0xf]
    %v1823 = vld [vmem:[%s12 + $0x1dc] sm:$0xf]
    %v1824 = vld [vmem:[%s12 + $0x1e0] sm:$0xf]
    %v1825 = vld [vmem:[%s12 + $0x1e4] sm:$0xf]
    %v1826 = vld [vmem:[%s12 + $0x1e8] sm:$0xf]
    %v1827 = vld [vmem:[%s12 + $0x1ec] sm:$0xf]
    %v1828 = vld [vmem:[%s12 + $0x1f0] sm:$0xf]
    %v1829 = vld [vmem:[%s12 + $0x1f4] sm:$0xf]
    %v1830 = vld [vmem:[%s12 + $0x1f8] sm:$0xf]
    %v1831 = vld [vmem:[%s12 + $0x1fc] sm:$0xf]
    %v1832 = vld [vmem:[%s12 + $0x200] sm:$0xf]
    %v1833 = vld [vmem:[%s12 + $0x204] sm:$0xf]
    %v1834 = vld [vmem:[%s12 + $0x208] sm:$0xf]
    %v1835 = vld [vmem:[%s12 + $0x20c] sm:$0xf]
    %v1836 = vld [vmem:[%s12 + $0x210] sm:$0xf]
    %v1837 = vld [vmem:[%s12 + $0x214] sm:$0xf]
    %v1838 = vld [vmem:[%s12 + $0x218] sm:$0xf]
    %v1839 = vld [vmem:[%s12 + $0x21c] sm:$0xf]
    %v1840 = vld [vmem:[%s12 + $0x220] sm:$0xf]
    %v1841 = vld [vmem:[%s12 + $0x224] sm:$0xf]
    %v1842 = vld [vmem:[%s12 + $0x228] sm:$0xf]
    %v1843 = vld [vmem:[%s12 + $0x22c] sm:$0xf]
    %v1844 = vld [vmem:[%s12 + $0x230] sm:$0xf]
    %v1845 = vld [vmem:[%s12 + $0x234] sm:$0xf]
    %v1846 = vld [vmem:[%s12 + $0x238] sm:$0xf]
    %v1847 = vld [vmem:[%s12 + $0x23c] sm:$0xf]
    %v1848 = vld [vmem:[%s12 + $0x240] sm:$0xf]
    %v1849 = vld [vmem:[%s12 + $0x244] sm:$0xf]
    %v1850 = vld [vmem:[%s12 + $0x248] sm:$0xf]
    %v1851 = vld [vmem:[%s12 + $0x24c] sm:$0xf]
    %v1852 = vld [vmem:[%s12 + $0x250] sm:$0xf]
    %v1853 = vld [vmem:[%s12 + $0x254] sm:$0xf]
    %v1854 = vld [vmem:[%s12 + $0x258] sm:$0xf]
    %v1855 = vld [vmem:[%s12 + $0x25c] sm:$0xf]
    %v1856 = vld [vmem:[%s12 + $0x260] sm:$0xf]
    %v1857 = vld [vmem:[%s12 + $0x264] sm:$0xf]
    %v1858 = vld [vmem:[%s12 + $0x268] sm:$0xf]
    %v1859 = vld [vmem:[%s12 + $0x26c] sm:$0xf]
    %v1860 = vld [vmem:[%s12 + $0x270] sm:$0xf]
    %v1861 = vld [vmem:[%s12 + $0x274] sm:$0xf]
    %v1862 = vld [vmem:[%s12 + $0x278] sm:$0xf]
    %v1863 = vld [vmem:[%s12 + $0x27c] sm:$0xf]
    %v1864 = vld [vmem:[%s12 + $0x280] sm:$0xf]
    %v1865 = vld [vmem:[%s12 + $0x284] sm:$0xf]
    %v1866 = vld [vmem:[%s12 + $0x288] sm:$0xf]
    %v1867 = vld [vmem:[%s12 + $0x28c] sm:$0xf]
    %v1868 = vld [vmem:[%s12 + $0x290] sm:$0xf]
    %v1869 = vld [vmem:[%s12 + $0x294] sm:$0xf]
    %v1870 = vld [vmem:[%s12 + $0x298] sm:$0xf]
    %v1871 = vld [vmem:[%s12 + $0x29c] sm:$0xf]
    %v1872 = vld [vmem:[%s12 + $0x2a0] sm:$0xf]
    %v1873 = vld [vmem:[%s12 + $0x2a4] sm:$0xf]
    %v1874 = vld [vmem:[%s12 + $0x2a8] sm:$0xf]
    %v1875 = vld [vmem:[%s12 + $0x2ac] sm:$0xf]
    %v1876 = vld [vmem:[%s12 + $0x2b0] sm:$0xf]
    %v1877 = vld [vmem:[%s12 + $0x2b4] sm:$0xf]
    %v1878 = vld [vmem:[%s12 + $0x2b8] sm:$0xf]
    %v1879 = vld [vmem:[%s12 + $0x2bc] sm:$0xf]
    %v1880 = vld [vmem:[%s12 + $0x2c0] sm:$0xf]
    %v1881 = vld [vmem:[%s12 + $0x2c4] sm:$0xf]
    %v1882 = vld [vmem:[%s12 + $0x2c8] sm:$0xf]
    %v1883 = vld [vmem:[%s12 + $0x2cc] sm:$0xf]
    %v1884 = vld [vmem:[%s12 + $0x2d0] sm:$0xf]
    %v1885 = vld [vmem:[%s12 + $0x2d4] sm:$0xf]
    %v1886 = vld [vmem:[%s12 + $0x2d8] sm:$0xf]
    %v1887 = vld [vmem:[%s12 + $0x2dc] sm:$0xf]
    %v1888 = vld [vmem:[%s12 + $0x2e0] sm:$0xf]
    %v1889 = vld [vmem:[%s12 + $0x2e4] sm:$0xf]
    %v1890 = vld [vmem:[%s12 + $0x2e8] sm:$0xf]
    %v1891 = vld [vmem:[%s12 + $0x2ec] sm:$0xf]
    %v1892 = vld [vmem:[%s12 + $0x2f0] sm:$0xf]
    %v1893 = vld [vmem:[%s12 + $0x2f4] sm:$0xf]
    %v1894 = vld [vmem:[%s12 + $0x2f8] sm:$0xf]
    %v1895 = vld [vmem:[%s12 + $0x2fc] sm:$0xf]
    %v1896 = vld [vmem:[%s12 + $0x300] sm:$0xf]
    %v1897 = vld [vmem:[%s12 + $0x304] sm:$0xf]
    %v1898 = vld [vmem:[%s12 + $0x308] sm:$0xf]
    %v1899 = vld [vmem:[%s12 + $0x30c] sm:$0xf]
    %v1900 = vld [vmem:[%s12 + $0x310] sm:$0xf]
    %v1901 = vld [vmem:[%s12 + $0x314] sm:$0xf]
    %v1902 = vld [vmem:[%s12 + $0x318] sm:$0xf]
    %v1903 = vld [vmem:[%s12 + $0x31c] sm:$0xf]
    %v1904 = vld [vmem:[%s12 + $0x320] sm:$0xf]
    %v1905 = vld [vmem:[%s12 + $0x324] sm:$0xf]
    %v1906 = vld [vmem:[%s12 + $0x328] sm:$0xf]
    %v1907 = vld [vmem:[%s12 + $0x32c] sm:$0xf]
    %v1908 = vld [vmem:[%s12 + $0x330] sm:$0xf]
    %v1909 = vld [vmem:[%s12 + $0x334] sm:$0xf]
    %v1910 = vld [vmem:[%s12 + $0x338] sm:$0xf]
    %v1911 = vld [vmem:[%s12 + $0x33c] sm:$0xf]
    %v1912 = vld [vmem:[%s12 + $0x340] sm:$0xf]
    %v1913 = vld [vmem:[%s12 + $0x344] sm:$0xf]
    %v1914 = vld [vmem:[%s12 + $0x348] sm:$0xf]
    %v1915 = vld [vmem:[%s12 + $0x34c] sm:$0xf]
    %v1916 = vld [vmem:[%s12 + $0x350] sm:$0xf]
    %v1917 = vld [vmem:[%s12 + $0x354] sm:$0xf]
    %v1918 = vld [vmem:[%s12 + $0x358] sm:$0xf]
    %v1919 = vld [vmem:[%s12 + $0x35c] sm:$0xf]
    %v1920 = vld [vmem:[%s12 + $0x360] sm:$0xf]
    %v1921 = vld [vmem:[%s12 + $0x364] sm:$0xf]
    %v1922 = vld [vmem:[%s12 + $0x368] sm:$0xf]
    %v1923 = vld [vmem:[%s12 + $0x36c] sm:$0xf]
    %v1924 = vld [vmem:[%s12 + $0x370] sm:$0xf]
    %v1925 = vld [vmem:[%s12 + $0x374] sm:$0xf]
    %v1926 = vld [vmem:[%s12 + $0x378] sm:$0xf]
    %v1927 = vld [vmem:[%s12 + $0x37c] sm:$0xf]
    %v1928 = vld [vmem:[%s12 + $0x380] sm:$0xf]
    %v1929 = vld [vmem:[%s12 + $0x384] sm:$0xf]
    %v1930 = vld [vmem:[%s12 + $0x388] sm:$0xf]
    %v1931 = vld [vmem:[%s12 + $0x38c] sm:$0xf]
    %v1932 = vld [vmem:[%s12 + $0x390] sm:$0xf]
    %v1933 = vld [vmem:[%s12 + $0x394] sm:$0xf]
    %v1934 = vld [vmem:[%s12 + $0x398] sm:$0xf]
    %v1935 = vld [vmem:[%s12 + $0x39c] sm:$0xf]
    %v1936 = vld [vmem:[%s12 + $0x3a0] sm:$0xf]
    %v1937 = vld [vmem:[%s12 + $0x3a4] sm:$0xf]
    %v1938 = vld [vmem:[%s12 + $0x3a8] sm:$0xf]
    %v1939 = vld [vmem:[%s12 + $0x3ac] sm:$0xf]
    %v1940 = vld [vmem:[%s12 + $0x3b0] sm:$0xf]
    %v1941 = vld [vmem:[%s12 + $0x3b4] sm:$0xf]
    %v1942 = vld [vmem:[%s12 + $0x3b8] sm:$0xf]
    %v1943 = vld [vmem:[%s12 + $0x3bc] sm:$0xf]
    %v1944 = vld [vmem:[%s12 + $0x3c0] sm:$0xf]
    %v1945 = vld [vmem:[%s12 + $0x3c4] sm:$0xf]
    %v1946 = vld [vmem:[%s12 + $0x3c8] sm:$0xf]
    %v1947 = vld [vmem:[%s12 + $0x3cc] sm:$0xf]
    %v1948 = vld [vmem:[%s12 + $0x3d0] sm:$0xf]
    %v1949 = vld [vmem:[%s12 + $0x3d4] sm:$0xf]
    %v1950 = vld [vmem:[%s12 + $0x3d8] sm:$0xf]
    %v1951 = vld [vmem:[%s12 + $0x3dc] sm:$0xf]
    %v1952 = vld [vmem:[%s12 + $0x3e0] sm:$0xf]
    %v1953 = vld [vmem:[%s12 + $0x3e4] sm:$0xf]
    %v1954 = vld [vmem:[%s12 + $0x3e8] sm:$0xf]
    %v1955 = vld [vmem:[%s12 + $0x3ec] sm:$0xf]
    %v1956 = vld [vmem:[%s12 + $0x3f0] sm:$0xf]
    %v1957 = vld [vmem:[%s12 + $0x3f4] sm:$0xf]
    %v1958 = vld [vmem:[%s12 + $0x3f8] sm:$0xf]
    %v1959 = vld [vmem:[%s12 + $0x3fc] sm:$0xf]
    %v1960 = vlaneseq
    %v1961 = vshrl.u32 %v1960, 7
    %v1962 = vsub.s32 0, %v1961
    %v1963 = vrot.slane %v70, %v1962
    %v2220 = vunpack.c.l.b16 %v1704
    %v2221 = vunpack.c.l.b16 %v1705
    %v2222 = vunpack.c.l.b16 %v1706
    %v2223 = vunpack.c.l.b16 %v1707
    %v2224 = vunpack.c.l.b16 %v1708
    %v2225 = vunpack.c.l.b16 %v1709
    %v2226 = vunpack.c.l.b16 %v1710
    %v2227 = vunpack.c.l.b16 %v1711
    %v2228 = vunpack.c.l.b16 %v1712
    %v2229 = vunpack.c.l.b16 %v1713
    %v2230 = vunpack.c.l.b16 %v1714
    %v2231 = vunpack.c.l.b16 %v1715
    %v2232 = vunpack.c.l.b16 %v1716
    %v2233 = vunpack.c.l.b16 %v1717
    %v2234 = vunpack.c.l.b16 %v1718
    %v2235 = vunpack.c.l.b16 %v1719
    %v2236 = vunpack.c.l.b16 %v1720
    %v2237 = vunpack.c.l.b16 %v1721
    %v2238 = vunpack.c.l.b16 %v1722
    %v2239 = vunpack.c.l.b16 %v1723
    %v2240 = vunpack.c.l.b16 %v1724
    %v2241 = vunpack.c.l.b16 %v1725
    %v2242 = vunpack.c.l.b16 %v1726
    %v2243 = vunpack.c.l.b16 %v1727
    %v2244 = vunpack.c.l.b16 %v1728
    %v2245 = vunpack.c.l.b16 %v1729
    %v2246 = vunpack.c.l.b16 %v1730
    %v2247 = vunpack.c.l.b16 %v1731
    %v2248 = vunpack.c.l.b16 %v1732
    %v2249 = vunpack.c.l.b16 %v1733
    %v2250 = vunpack.c.l.b16 %v1734
    %v2251 = vunpack.c.l.b16 %v1735
    %v2252 = vunpack.c.l.b16 %v1736
    %v2253 = vunpack.c.l.b16 %v1737
    %v2254 = vunpack.c.l.b16 %v1738
    %v2255 = vunpack.c.l.b16 %v1739
    %v2256 = vunpack.c.l.b16 %v1740
    %v2257 = vunpack.c.l.b16 %v1741
    %v2258 = vunpack.c.l.b16 %v1742
    %v2259 = vunpack.c.l.b16 %v1743
    %v2260 = vunpack.c.l.b16 %v1744
    %v2261 = vunpack.c.l.b16 %v1745
    %v2262 = vunpack.c.l.b16 %v1746
    %v2263 = vunpack.c.l.b16 %v1747
    %v2264 = vunpack.c.l.b16 %v1748
    %v2265 = vunpack.c.l.b16 %v1749
    %v2266 = vunpack.c.l.b16 %v1750
    %v2267 = vunpack.c.l.b16 %v1751
    %v2268 = vunpack.c.l.b16 %v1752
    %v2269 = vunpack.c.l.b16 %v1753
    %v2270 = vunpack.c.l.b16 %v1754
    %v2271 = vunpack.c.l.b16 %v1755
    %v2272 = vunpack.c.l.b16 %v1756
    %v2273 = vunpack.c.l.b16 %v1757
    %v2274 = vunpack.c.l.b16 %v1758
    %v2275 = vunpack.c.l.b16 %v1759
    %v2276 = vunpack.c.l.b16 %v1760
    %v2277 = vunpack.c.l.b16 %v1761
    %v2278 = vunpack.c.l.b16 %v1762
    %v2279 = vunpack.c.l.b16 %v1763
    %v2280 = vunpack.c.l.b16 %v1764
    %v2281 = vunpack.c.l.b16 %v1765
    %v2282 = vunpack.c.l.b16 %v1766
    %v2283 = vunpack.c.l.b16 %v1767
    %v2284 = vunpack.c.l.b16 %v1768
    %v2285 = vunpack.c.l.b16 %v1769
    %v2286 = vunpack.c.l.b16 %v1770
    %v2287 = vunpack.c.l.b16 %v1771
    %v2288 = vunpack.c.l.b16 %v1772
    %v2289 = vunpack.c.l.b16 %v1773
    %v2290 = vunpack.c.l.b16 %v1774
    %v2291 = vunpack.c.l.b16 %v1775
    %v2292 = vunpack.c.l.b16 %v1776
    %v2293 = vunpack.c.l.b16 %v1777
    %v2294 = vunpack.c.l.b16 %v1778
    %v2295 = vunpack.c.l.b16 %v1779
    %v2296 = vunpack.c.l.b16 %v1780
    %v2297 = vunpack.c.l.b16 %v1781
    %v2298 = vunpack.c.l.b16 %v1782
    %v2299 = vunpack.c.l.b16 %v1783
    %v2300 = vunpack.c.l.b16 %v1784
    %v2301 = vunpack.c.l.b16 %v1785
    %v2302 = vunpack.c.l.b16 %v1786
    %v2303 = vunpack.c.l.b16 %v1787
    %v2304 = vunpack.c.l.b16 %v1788
    %v2305 = vunpack.c.l.b16 %v1789
    %v2306 = vunpack.c.l.b16 %v1790
    %v2307 = vunpack.c.l.b16 %v1791
    %v2308 = vunpack.c.l.b16 %v1792
    %v2309 = vunpack.c.l.b16 %v1793
    %v2310 = vunpack.c.l.b16 %v1794
    %v2311 = vunpack.c.l.b16 %v1795
    %v2312 = vunpack.c.l.b16 %v1796
    %v2313 = vunpack.c.l.b16 %v1797
    %v2314 = vunpack.c.l.b16 %v1798
    %v2315 = vunpack.c.l.b16 %v1799
    %v2316 = vunpack.c.l.b16 %v1800
    %v2317 = vunpack.c.l.b16 %v1801
    %v2318 = vunpack.c.l.b16 %v1802
    %v2319 = vunpack.c.l.b16 %v1803
    %v2320 = vunpack.c.l.b16 %v1804
    %v2321 = vunpack.c.l.b16 %v1805
    %v2322 = vunpack.c.l.b16 %v1806
    %v2323 = vunpack.c.l.b16 %v1807
    %v2324 = vunpack.c.l.b16 %v1808
    %v2325 = vunpack.c.l.b16 %v1809
    %v2326 = vunpack.c.l.b16 %v1810
    %v2327 = vunpack.c.l.b16 %v1811
    %v2328 = vunpack.c.l.b16 %v1812
    %v2329 = vunpack.c.l.b16 %v1813
    %v2330 = vunpack.c.l.b16 %v1814
    %v2331 = vunpack.c.l.b16 %v1815
    %v2332 = vunpack.c.l.b16 %v1816
    %v2333 = vunpack.c.l.b16 %v1817
    %v2334 = vunpack.c.l.b16 %v1818
    %v2335 = vunpack.c.l.b16 %v1819
    %v2336 = vunpack.c.l.b16 %v1820
    %v2337 = vunpack.c.l.b16 %v1821
    %v2338 = vunpack.c.l.b16 %v1822
    %v2339 = vunpack.c.l.b16 %v1823
    %v2340 = vunpack.c.l.b16 %v1824
    %v2341 = vunpack.c.l.b16 %v1825
    %v2342 = vunpack.c.l.b16 %v1826
    %v2343 = vunpack.c.l.b16 %v1827
    %v2344 = vunpack.c.l.b16 %v1828
    %v2345 = vunpack.c.l.b16 %v1829
    %v2346 = vunpack.c.l.b16 %v1830
    %v2347 = vunpack.c.l.b16 %v1831
    %v2348 = vunpack.c.l.b16 %v1832
    %v2349 = vunpack.c.l.b16 %v1833
    %v2350 = vunpack.c.l.b16 %v1834
    %v2351 = vunpack.c.l.b16 %v1835
    %v2352 = vunpack.c.l.b16 %v1836
    %v2353 = vunpack.c.l.b16 %v1837
    %v2354 = vunpack.c.l.b16 %v1838
    %v2355 = vunpack.c.l.b16 %v1839
    %v2356 = vunpack.c.l.b16 %v1840
    %v2357 = vunpack.c.l.b16 %v1841
    %v2358 = vunpack.c.l.b16 %v1842
    %v2359 = vunpack.c.l.b16 %v1843
    %v2360 = vunpack.c.l.b16 %v1844
    %v2361 = vunpack.c.l.b16 %v1845
    %v2362 = vunpack.c.l.b16 %v1846
    %v2363 = vunpack.c.l.b16 %v1847
    %v2364 = vunpack.c.l.b16 %v1848
    %v2365 = vunpack.c.l.b16 %v1849
    %v2366 = vunpack.c.l.b16 %v1850
    %v2367 = vunpack.c.l.b16 %v1851
    %v2368 = vunpack.c.l.b16 %v1852
    %v2369 = vunpack.c.l.b16 %v1853
    %v2370 = vunpack.c.l.b16 %v1854
    %v2371 = vunpack.c.l.b16 %v1855
    %v2372 = vunpack.c.l.b16 %v1856
    %v2373 = vunpack.c.l.b16 %v1857
    %v2374 = vunpack.c.l.b16 %v1858
    %v2375 = vunpack.c.l.b16 %v1859
    %v2376 = vunpack.c.l.b16 %v1860
    %v2377 = vunpack.c.l.b16 %v1861
    %v2378 = vunpack.c.l.b16 %v1862
    %v2379 = vunpack.c.l.b16 %v1863
    %v2380 = vunpack.c.l.b16 %v1864
    %v2381 = vunpack.c.l.b16 %v1865
    %v2382 = vunpack.c.l.b16 %v1866
    %v2383 = vunpack.c.l.b16 %v1867
    %v2384 = vunpack.c.l.b16 %v1868
    %v2385 = vunpack.c.l.b16 %v1869
    %v2386 = vunpack.c.l.b16 %v1870
    %v2387 = vunpack.c.l.b16 %v1871
    %v2388 = vunpack.c.l.b16 %v1872
    %v2389 = vunpack.c.l.b16 %v1873
    %v2390 = vunpack.c.l.b16 %v1874
    %v2391 = vunpack.c.l.b16 %v1875
    %v2392 = vunpack.c.l.b16 %v1876
    %v2393 = vunpack.c.l.b16 %v1877
    %v2394 = vunpack.c.l.b16 %v1878
    %v2395 = vunpack.c.l.b16 %v1879
    %v2396 = vunpack.c.l.b16 %v1880
    %v2397 = vunpack.c.l.b16 %v1881
    %v2398 = vunpack.c.l.b16 %v1882
    %v2399 = vunpack.c.l.b16 %v1883
    %v2400 = vunpack.c.l.b16 %v1884
    %v2401 = vunpack.c.l.b16 %v1885
    %v2402 = vunpack.c.l.b16 %v1886
    %v2403 = vunpack.c.l.b16 %v1887
    %v2404 = vunpack.c.l.b16 %v1888
    %v2405 = vunpack.c.l.b16 %v1889
    %v2406 = vunpack.c.l.b16 %v1890
    %v2407 = vunpack.c.l.b16 %v1891
    %v2408 = vunpack.c.l.b16 %v1892
    %v2409 = vunpack.c.l.b16 %v1893
    %v2410 = vunpack.c.l.b16 %v1894
    %v2411 = vunpack.c.l.b16 %v1895
    %v2412 = vunpack.c.l.b16 %v1896
    %v2413 = vunpack.c.l.b16 %v1897
    %v2414 = vunpack.c.l.b16 %v1898
    %v2415 = vunpack.c.l.b16 %v1899
    %v2416 = vunpack.c.l.b16 %v1900
    %v2417 = vunpack.c.l.b16 %v1901
    %v2418 = vunpack.c.l.b16 %v1902
    %v2419 = vunpack.c.l.b16 %v1903
    %v2420 = vunpack.c.l.b16 %v1904
    %v2421 = vunpack.c.l.b16 %v1905
    %v2422 = vunpack.c.l.b16 %v1906
    %v2423 = vunpack.c.l.b16 %v1907
    %v2424 = vunpack.c.l.b16 %v1908
    %v2425 = vunpack.c.l.b16 %v1909
    %v2426 = vunpack.c.l.b16 %v1910
    %v2427 = vunpack.c.l.b16 %v1911
    %v2428 = vunpack.c.l.b16 %v1912
    %v2429 = vunpack.c.l.b16 %v1913
    %v2430 = vunpack.c.l.b16 %v1914
    %v2431 = vunpack.c.l.b16 %v1915
    %v2432 = vunpack.c.l.b16 %v1916
    %v2433 = vunpack.c.l.b16 %v1917
    %v2434 = vunpack.c.l.b16 %v1918
    %v2435 = vunpack.c.l.b16 %v1919
    %v2436 = vunpack.c.l.b16 %v1920
    %v2437 = vunpack.c.l.b16 %v1921
    %v2438 = vunpack.c.l.b16 %v1922
    %v2439 = vunpack.c.l.b16 %v1923
    %v2440 = vunpack.c.l.b16 %v1924
    %v2441 = vunpack.c.l.b16 %v1925
    %v2442 = vunpack.c.l.b16 %v1926
    %v2443 = vunpack.c.l.b16 %v1927
    %v2444 = vunpack.c.l.b16 %v1928
    %v2445 = vunpack.c.l.b16 %v1929
    %v2446 = vunpack.c.l.b16 %v1930
    %v2447 = vunpack.c.l.b16 %v1931
    %v2448 = vunpack.c.l.b16 %v1932
    %v2449 = vunpack.c.l.b16 %v1933
    %v2450 = vunpack.c.l.b16 %v1934
    %v2451 = vunpack.c.l.b16 %v1935
    %v2452 = vunpack.c.l.b16 %v1936
    %v2453 = vunpack.c.l.b16 %v1937
    %v2454 = vunpack.c.l.b16 %v1938
    %v2455 = vunpack.c.l.b16 %v1939
    %v2456 = vunpack.c.l.b16 %v1940
    %v2457 = vunpack.c.l.b16 %v1941
    %v2458 = vunpack.c.l.b16 %v1942
    %v2459 = vunpack.c.l.b16 %v1943
    %v2460 = vunpack.c.l.b16 %v1944
    %v2461 = vunpack.c.l.b16 %v1945
    %v2462 = vunpack.c.l.b16 %v1946
    %v2463 = vunpack.c.l.b16 %v1947
    %v2464 = vunpack.c.l.b16 %v1948
    %v2465 = vunpack.c.l.b16 %v1949
    %v2466 = vunpack.c.l.b16 %v1950
    %v2467 = vunpack.c.l.b16 %v1951
    %v2468 = vunpack.c.l.b16 %v1952
    %v2469 = vunpack.c.l.b16 %v1953
    %v2470 = vunpack.c.l.b16 %v1954
    %v2471 = vunpack.c.l.b16 %v1955
    %v2472 = vunpack.c.l.b16 %v1956
    %v2473 = vunpack.c.l.b16 %v1957
    %v2474 = vunpack.c.l.b16 %v1958
    %v2475 = vunpack.c.l.b16 %v1959
    %v2476 = vpack.c.b16 %v2221, %v2220
    %v2477 = vpack.c.b16 %v2223, %v2222
    %v2478 = vpack.c.b16 %v2225, %v2224
    %v2479 = vpack.c.b16 %v2227, %v2226
    %v2480 = vpack.c.b16 %v2229, %v2228
    %v2481 = vpack.c.b16 %v2231, %v2230
    %v2482 = vpack.c.b16 %v2233, %v2232
    %v2483 = vpack.c.b16 %v2235, %v2234
    %v2484 = vpack.c.b16 %v2237, %v2236
    %v2485 = vpack.c.b16 %v2239, %v2238
    %v2486 = vpack.c.b16 %v2241, %v2240
    %v2487 = vpack.c.b16 %v2243, %v2242
    %v2488 = vpack.c.b16 %v2245, %v2244
    %v2489 = vpack.c.b16 %v2247, %v2246
    %v2490 = vpack.c.b16 %v2249, %v2248
    %v2491 = vpack.c.b16 %v2251, %v2250
    %v2492 = vpack.c.b16 %v2253, %v2252
    %v2493 = vpack.c.b16 %v2255, %v2254
    %v2494 = vpack.c.b16 %v2257, %v2256
    %v2495 = vpack.c.b16 %v2259, %v2258
    %v2496 = vpack.c.b16 %v2261, %v2260
    %v2497 = vpack.c.b16 %v2263, %v2262
    %v2498 = vpack.c.b16 %v2265, %v2264
    %v2499 = vpack.c.b16 %v2267, %v2266
    %v2500 = vpack.c.b16 %v2269, %v2268
    %v2501 = vpack.c.b16 %v2271, %v2270
    %v2502 = vpack.c.b16 %v2273, %v2272
    %v2503 = vpack.c.b16 %v2275, %v2274
    %v2504 = vpack.c.b16 %v2277, %v2276
    %v2505 = vpack.c.b16 %v2279, %v2278
    %v2506 = vpack.c.b16 %v2281, %v2280
    %v2507 = vpack.c.b16 %v2283, %v2282
    %v2508 = vpack.c.b16 %v2285, %v2284
    %v2509 = vpack.c.b16 %v2287, %v2286
    %v2510 = vpack.c.b16 %v2289, %v2288
    %v2511 = vpack.c.b16 %v2291, %v2290
    %v2512 = vpack.c.b16 %v2293, %v2292
    %v2513 = vpack.c.b16 %v2295, %v2294
    %v2514 = vpack.c.b16 %v2297, %v2296
    %v2515 = vpack.c.b16 %v2299, %v2298
    %v2516 = vpack.c.b16 %v2301, %v2300
    %v2517 = vpack.c.b16 %v2303, %v2302
    %v2518 = vpack.c.b16 %v2305, %v2304
    %v2519 = vpack.c.b16 %v2307, %v2306
    %v2520 = vpack.c.b16 %v2309, %v2308
    %v2521 = vpack.c.b16 %v2311, %v2310
    %v2522 = vpack.c.b16 %v2313, %v2312
    %v2523 = vpack.c.b16 %v2315, %v2314
    %v2524 = vpack.c.b16 %v2317, %v2316
    %v2525 = vpack.c.b16 %v2319, %v2318
    %v2526 = vpack.c.b16 %v2321, %v2320
    %v2527 = vpack.c.b16 %v2323, %v2322
    %v2528 = vpack.c.b16 %v2325, %v2324
    %v2529 = vpack.c.b16 %v2327, %v2326
    %v2530 = vpack.c.b16 %v2329, %v2328
    %v2531 = vpack.c.b16 %v2331, %v2330
    %v2532 = vpack.c.b16 %v2333, %v2332
    %v2533 = vpack.c.b16 %v2335, %v2334
    %v2534 = vpack.c.b16 %v2337, %v2336
    %v2535 = vpack.c.b16 %v2339, %v2338
    %v2536 = vpack.c.b16 %v2341, %v2340
    %v2537 = vpack.c.b16 %v2343, %v2342
    %v2538 = vpack.c.b16 %v2345, %v2344
    %v2539 = vpack.c.b16 %v2347, %v2346
    %v2540 = vpack.c.b16 %v2349, %v2348
    %v2541 = vpack.c.b16 %v2351, %v2350
    %v2542 = vpack.c.b16 %v2353, %v2352
    %v2543 = vpack.c.b16 %v2355, %v2354
    %v2544 = vpack.c.b16 %v2357, %v2356
    %v2545 = vpack.c.b16 %v2359, %v2358
    %v2546 = vpack.c.b16 %v2361, %v2360
    %v2547 = vpack.c.b16 %v2363, %v2362
    %v2548 = vpack.c.b16 %v2365, %v2364
    %v2549 = vpack.c.b16 %v2367, %v2366
    %v2550 = vpack.c.b16 %v2369, %v2368
    %v2551 = vpack.c.b16 %v2371, %v2370
    %v2552 = vpack.c.b16 %v2373, %v2372
    %v2553 = vpack.c.b16 %v2375, %v2374
    %v2554 = vpack.c.b16 %v2377, %v2376
    %v2555 = vpack.c.b16 %v2379, %v2378
    %v2556 = vpack.c.b16 %v2381, %v2380
    %v2557 = vpack.c.b16 %v2383, %v2382
    %v2558 = vpack.c.b16 %v2385, %v2384
    %v2559 = vpack.c.b16 %v2387, %v2386
    %v2560 = vpack.c.b16 %v2389, %v2388
    %v2561 = vpack.c.b16 %v2391, %v2390
    %v2562 = vpack.c.b16 %v2393, %v2392
    %v2563 = vpack.c.b16 %v2395, %v2394
    %v2564 = vpack.c.b16 %v2397, %v2396
    %v2565 = vpack.c.b16 %v2399, %v2398
    %v2566 = vpack.c.b16 %v2401, %v2400
    %v2567 = vpack.c.b16 %v2403, %v2402
    %v2568 = vpack.c.b16 %v2405, %v2404
    %v2569 = vpack.c.b16 %v2407, %v2406
    %v2570 = vpack.c.b16 %v2409, %v2408
    %v2571 = vpack.c.b16 %v2411, %v2410
    %v2572 = vpack.c.b16 %v2413, %v2412
    %v2573 = vpack.c.b16 %v2415, %v2414
    %v2574 = vpack.c.b16 %v2417, %v2416
    %v2575 = vpack.c.b16 %v2419, %v2418
    %v2576 = vpack.c.b16 %v2421, %v2420
    %v2577 = vpack.c.b16 %v2423, %v2422
    %v2578 = vpack.c.b16 %v2425, %v2424
    %v2579 = vpack.c.b16 %v2427, %v2426
    %v2580 = vpack.c.b16 %v2429, %v2428
    %v2581 = vpack.c.b16 %v2431, %v2430
    %v2582 = vpack.c.b16 %v2433, %v2432
    %v2583 = vpack.c.b16 %v2435, %v2434
    %v2584 = vpack.c.b16 %v2437, %v2436
    %v2585 = vpack.c.b16 %v2439, %v2438
    %v2586 = vpack.c.b16 %v2441, %v2440
    %v2587 = vpack.c.b16 %v2443, %v2442
    %v2588 = vpack.c.b16 %v2445, %v2444
    %v2589 = vpack.c.b16 %v2447, %v2446
    %v2590 = vpack.c.b16 %v2449, %v2448
    %v2591 = vpack.c.b16 %v2451, %v2450
    %v2592 = vpack.c.b16 %v2453, %v2452
    %v2593 = vpack.c.b16 %v2455, %v2454
    %v2594 = vpack.c.b16 %v2457, %v2456
    %v2595 = vpack.c.b16 %v2459, %v2458
    %v2596 = vpack.c.b16 %v2461, %v2460
    %v2597 = vpack.c.b16 %v2463, %v2462
    %v2598 = vpack.c.b16 %v2465, %v2464
    %v2599 = vpack.c.b16 %v2467, %v2466
    %v2600 = vpack.c.b16 %v2469, %v2468
    %v2601 = vpack.c.b16 %v2471, %v2470
    %v2602 = vpack.c.b16 %v2473, %v2472
    %v2603 = vpack.c.b16 %v2475, %v2474
    %2732 = vmatprep.subr.bf16.mxu0 0
    %2733 = vmatpush1.bf16.msra.mxu0 %v2476
    %2734 = vmatprep.subr.bf16.mxu0 0
    %2735 = vmatpush1.bf16.msra.mxu0 %v2477
    %2736 = vmatprep.subr.bf16.mxu0 0
    %2737 = vmatpush1.bf16.msra.mxu0 %v2478
    %2738 = vmatprep.subr.bf16.mxu0 0
    %2739 = vmatpush1.bf16.msra.mxu0 %v2479
    %2740 = vmatprep.subr.bf16.mxu0 0
    %2741 = vmatpush1.bf16.msra.mxu0 %v2480
    %2742 = vmatprep.subr.bf16.mxu0 0
    %2743 = vmatpush1.bf16.msra.mxu0 %v2481
    %2744 = vmatprep.subr.bf16.mxu0 0
    %2745 = vmatpush1.bf16.msra.mxu0 %v2482
    %2746 = vmatprep.subr.bf16.mxu0 0
    %2747 = vmatpush1.bf16.msra.mxu0 %v2483
    %2748 = vmatprep.subr.bf16.mxu0 0
    %2749 = vmatpush1.bf16.msra.mxu0 %v2484
    %2750 = vmatprep.subr.bf16.mxu0 0
    %2751 = vmatpush1.bf16.msra.mxu0 %v2485
    %2752 = vmatprep.subr.bf16.mxu0 0
    %2753 = vmatpush1.bf16.msra.mxu0 %v2486
    %2754 = vmatprep.subr.bf16.mxu0 0
    %2755 = vmatpush1.bf16.msra.mxu0 %v2487
    %2756 = vmatprep.subr.bf16.mxu0 0
    %2757 = vmatpush1.bf16.msra.mxu0 %v2488
    %2758 = vmatprep.subr.bf16.mxu0 0
    %2759 = vmatpush1.bf16.msra.mxu0 %v2489
    %2760 = vmatprep.subr.bf16.mxu0 0
    %2761 = vmatpush1.bf16.msra.mxu0 %v2490
    %2762 = vmatprep.subr.bf16.mxu0 0
    %2763 = vmatpush1.bf16.msra.mxu0 %v2491
    %2764 = vmatprep.mubr.bf16.mxu0 %v1689
    %2765 = vmatmul.mubr.bf16.gmra.mrb[0].mxu0 %v1688
    %v2766 = vpop.f32.mrb[0].mxu0
    %v2767 = vadd.f32 %v1963, %v2766
    %v2768 = vpop.f32.mrb[0].mxu0
    %v2769 = vpop.f32.mrb[0].mxu0
    %v2770 = vadd.f32 %v1963, %v2769
    %v2771 = vpop.f32.mrb[0].mxu0
    %2772 = vdwg.mxu0
    %2773 = vmatprep.subr.bf16.mxu0 0
    %2774 = vmatpush1.bf16.msra.mxu0 %v2492
    %2775 = vmatprep.subr.bf16.mxu0 0
    %2776 = vmatpush1.bf16.msra.mxu0 %v2493
    %2777 = vmatprep.subr.bf16.mxu0 0
    %2778 = vmatpush1.bf16.msra.mxu0 %v2494
    %2779 = vmatprep.subr.bf16.mxu0 0
    %2780 = vmatpush1.bf16.msra.mxu0 %v2495
    %2781 = vmatprep.subr.bf16.mxu0 0
    %2782 = vmatpush1.bf16.msra.mxu0 %v2496
    %2783 = vmatprep.subr.bf16.mxu0 0
    %2784 = vmatpush1.bf16.msra.mxu0 %v2497
    %2785 = vmatprep.subr.bf16.mxu0 0
    %2786 = vmatpush1.bf16.msra.mxu0 %v2498
    %2787 = vmatprep.subr.bf16.mxu0 0
    %2788 = vmatpush1.bf16.msra.mxu0 %v2499
    %2789 = vmatprep.subr.bf16.mxu0 0
    %2790 = vmatpush1.bf16.msra.mxu0 %v2500
    %2791 = vmatprep.subr.bf16.mxu0 0
    %2792 = vmatpush1.bf16.msra.mxu0 %v2501
    %2793 = vmatprep.subr.bf16.mxu0 0
    %2794 = vmatpush1.bf16.msra.mxu0 %v2502
    %2795 = vmatprep.subr.bf16.mxu0 0
    %2796 = vmatpush1.bf16.msra.mxu0 %v2503
    %2797 = vmatprep.subr.bf16.mxu0 0
    %2798 = vmatpush1.bf16.msra.mxu0 %v2504
    %2799 = vmatprep.subr.bf16.mxu0 0
    %2800 = vmatpush1.bf16.msra.mxu0 %v2505
    %2801 = vmatprep.subr.bf16.mxu0 0
    %2802 = vmatpush1.bf16.msra.mxu0 %v2506
    %2803 = vmatprep.subr.bf16.mxu0 0
    %2804 = vmatpush1.bf16.msra.mxu0 %v2507
    %2805 = vmatprep.mubr.bf16.mxu0 %v1691
    %2806 = vmatmul.mubr.bf16.gmra.mrb[0].mxu0 %v1690
    %v2807 = vpop.f32.mrb[0].mxu0
    %v2808 = vadd.f32 %v2767, %v2807
    %v2809 = vpop.f32.mrb[0].mxu0
    %v2810 = vpop.f32.mrb[0].mxu0
    %v2811 = vadd.f32 %v2770, %v2810
    %v2812 = vpop.f32.mrb[0].mxu0
    %2813 = vdwg.mxu0
    %2814 = vmatprep.subr.bf16.mxu0 0
    %2815 = vmatpush1.bf16.msra.mxu0 %v2508
    %2816 = vmatprep.subr.bf16.mxu0 0
    %2817 = vmatpush1.bf16.msra.mxu0 %v2509
    %2818 = vmatprep.subr.bf16.mxu0 0
    %2819 = vmatpush1.bf16.msra.mxu0 %v2510
    %2820 = vmatprep.subr.bf16.mxu0 0
    %2821 = vmatpush1.bf16.msra.mxu0 %v2511
    %2822 = vmatprep.subr.bf16.mxu0 0
    %2823 = vmatpush1.bf16.msra.mxu0 %v2512
    %2824 = vmatprep.subr.bf16.mxu0 0
    %2825 = vmatpush1.bf16.msra.mxu0 %v2513
    %2826 = vmatprep.subr.bf16.mxu0 0
    %2827 = vmatpush1.bf16.msra.mxu0 %v2514
    %2828 = vmatprep.subr.bf16.mxu0 0
    %2829 = vmatpush1.bf16.msra.mxu0 %v2515
    %2830 = vmatprep.subr.bf16.mxu0 0
    %2831 = vmatpush1.bf16.msra.mxu0 %v2516
    %2832 = vmatprep.subr.bf16.mxu0 0
    %2833 = vmatpush1.bf16.msra.mxu0 %v2517
    %2834 = vmatprep.subr.bf16.mxu0 0
    %2835 = vmatpush1.bf16.msra.mxu0 %v2518
    %2836 = vmatprep.subr.bf16.mxu0 0
    %2837 = vmatpush1.bf16.msra.mxu0 %v2519
    %2838 = vmatprep.subr.bf16.mxu0 0
    %2839 = vmatpush1.bf16.msra.mxu0 %v2520
    %2840 = vmatprep.subr.bf16.mxu0 0
    %2841 = vmatpush1.bf16.msra.mxu0 %v2521
    %2842 = vmatprep.subr.bf16.mxu0 0
    %2843 = vmatpush1.bf16.msra.mxu0 %v2522
    %2844 = vmatprep.subr.bf16.mxu0 0
    %2845 = vmatpush1.bf16.msra.mxu0 %v2523
    %2846 = vmatprep.mubr.bf16.mxu0 %v1693
    %2847 = vmatmul.mubr.bf16.gmra.mrb[0].mxu0 %v1692
    %v2848 = vpop.f32.mrb[0].mxu0
    %v2849 = vadd.f32 %v2808, %v2848
    %v2850 = vpop.f32.mrb[0].mxu0
    %v2851 = vpop.f32.mrb[0].mxu0
    %v2852 = vadd.f32 %v2811, %v2851
    %v2853 = vpop.f32.mrb[0].mxu0
    %2854 = vdwg.mxu0
    %2855 = vmatprep.subr.bf16.mxu0 0
    %2856 = vmatpush1.bf16.msra.mxu0 %v2524
    %2857 = vmatprep.subr.bf16.mxu0 0
    %2858 = vmatpush1.bf16.msra.mxu0 %v2525
    %2859 = vmatprep.subr.bf16.mxu0 0
    %2860 = vmatpush1.bf16.msra.mxu0 %v2526
    %2861 = vmatprep.subr.bf16.mxu0 0
    %2862 = vmatpush1.bf16.msra.mxu0 %v2527
    %2863 = vmatprep.subr.bf16.mxu0 0
    %2864 = vmatpush1.bf16.msra.mxu0 %v2528
    %2865 = vmatprep.subr.bf16.mxu0 0
    %2866 = vmatpush1.bf16.msra.mxu0 %v2529
    %2867 = vmatprep.subr.bf16.mxu0 0
    %2868 = vmatpush1.bf16.msra.mxu0 %v2530
    %2869 = vmatprep.subr.bf16.mxu0 0
    %2870 = vmatpush1.bf16.msra.mxu0 %v2531
    %2871 = vmatprep.subr.bf16.mxu0 0
    %2872 = vmatpush1.bf16.msra.mxu0 %v2532
    %2873 = vmatprep.subr.bf16.mxu0 0
    %2874 = vmatpush1.bf16.msra.mxu0 %v2533
    %2875 = vmatprep.subr.bf16.mxu0 0
    %2876 = vmatpush1.bf16.msra.mxu0 %v2534
    %2877 = vmatprep.subr.bf16.mxu0 0
    %2878 = vmatpush1.bf16.msra.mxu0 %v2535
    %2879 = vmatprep.subr.bf16.mxu0 0
    %2880 = vmatpush1.bf16.msra.mxu0 %v2536
    %2881 = vmatprep.subr.bf16.mxu0 0
    %2882 = vmatpush1.bf16.msra.mxu0 %v2537
    %2883 = vmatprep.subr.bf16.mxu0 0
    %2884 = vmatpush1.bf16.msra.mxu0 %v2538
    %2885 = vmatprep.subr.bf16.mxu0 0
    %2886 = vmatpush1.bf16.msra.mxu0 %v2539
    %2887 = vmatprep.mubr.bf16.mxu0 %v1695
    %2888 = vmatmul.mubr.bf16.gmra.mrb[0].mxu0 %v1694
    %v2889 = vpop.f32.mrb[0].mxu0
    %v2890 = vadd.f32 %v2849, %v2889
    %v2891 = vpop.f32.mrb[0].mxu0
    %v2892 = vpop.f32.mrb[0].mxu0
    %v2893 = vadd.f32 %v2852, %v2892
    %v2894 = vpop.f32.mrb[0].mxu0
    %2895 = vdwg.mxu0
    %2896 = vmatprep.subr.bf16.mxu0 0
    %2897 = vmatpush1.bf16.msra.mxu0 %v2540
    %2898 = vmatprep.subr.bf16.mxu0 0
    %2899 = vmatpush1.bf16.msra.mxu0 %v2541
    %2900 = vmatprep.subr.bf16.mxu0 0
    %2901 = vmatpush1.bf16.msra.mxu0 %v2542
    %2902 = vmatprep.subr.bf16.mxu0 0
    %2903 = vmatpush1.bf16.msra.mxu0 %v2543
    %2904 = vmatprep.subr.bf16.mxu0 0
    %2905 = vmatpush1.bf16.msra.mxu0 %v2544
    %2906 = vmatprep.subr.bf16.mxu0 0
    %2907 = vmatpush1.bf16.msra.mxu0 %v2545
    %2908 = vmatprep.subr.bf16.mxu0 0
    %2909 = vmatpush1.bf16.msra.mxu0 %v2546
    %2910 = vmatprep.subr.bf16.mxu0 0
    %2911 = vmatpush1.bf16.msra.mxu0 %v2547
    %2912 = vmatprep.subr.bf16.mxu0 0
    %2913 = vmatpush1.bf16.msra.mxu0 %v2548
    %2914 = vmatprep.subr.bf16.mxu0 0
    %2915 = vmatpush1.bf16.msra.mxu0 %v2549
    %2916 = vmatprep.subr.bf16.mxu0 0
    %2917 = vmatpush1.bf16.msra.mxu0 %v2550
    %2918 = vmatprep.subr.bf16.mxu0 0
    %2919 = vmatpush1.bf16.msra.mxu0 %v2551
    %2920 = vmatprep.subr.bf16.mxu0 0
    %2921 = vmatpush1.bf16.msra.mxu0 %v2552
    %2922 = vmatprep.subr.bf16.mxu0 0
    %2923 = vmatpush1.bf16.msra.mxu0 %v2553
    %2924 = vmatprep.subr.bf16.mxu0 0
    %2925 = vmatpush1.bf16.msra.mxu0 %v2554
    %2926 = vmatprep.subr.bf16.mxu0 0
    %2927 = vmatpush1.bf16.msra.mxu0 %v2555
    %2928 = vmatprep.mubr.bf16.mxu0 %v1697
    %2929 = vmatmul.mubr.bf16.gmra.mrb[0].mxu0 %v1696
    %v2930 = vpop.f32.mrb[0].mxu0
    %v2931 = vadd.f32 %v2890, %v2930
    %v2932 = vpop.f32.mrb[0].mxu0
    %v2933 = vpop.f32.mrb[0].mxu0
    %v2934 = vadd.f32 %v2893, %v2933
    %v2935 = vpop.f32.mrb[0].mxu0
    %2936 = vdwg.mxu0
    %2937 = vmatprep.subr.bf16.mxu0 0
    %2938 = vmatpush1.bf16.msra.mxu0 %v2556
    %2939 = vmatprep.subr.bf16.mxu0 0
    %2940 = vmatpush1.bf16.msra.mxu0 %v2557
    %2941 = vmatprep.subr.bf16.mxu0 0
    %2942 = vmatpush1.bf16.msra.mxu0 %v2558
    %2943 = vmatprep.subr.bf16.mxu0 0
    %2944 = vmatpush1.bf16.msra.mxu0 %v2559
    %2945 = vmatprep.subr.bf16.mxu0 0
    %2946 = vmatpush1.bf16.msra.mxu0 %v2560
    %2947 = vmatprep.subr.bf16.mxu0 0
    %2948 = vmatpush1.bf16.msra.mxu0 %v2561
    %2949 = vmatprep.subr.bf16.mxu0 0
    %2950 = vmatpush1.bf16.msra.mxu0 %v2562
    %2951 = vmatprep.subr.bf16.mxu0 0
    %2952 = vmatpush1.bf16.msra.mxu0 %v2563
    %2953 = vmatprep.subr.bf16.mxu0 0
    %2954 = vmatpush1.bf16.msra.mxu0 %v2564
    %2955 = vmatprep.subr.bf16.mxu0 0
    %2956 = vmatpush1.bf16.msra.mxu0 %v2565
    %2957 = vmatprep.subr.bf16.mxu0 0
    %2958 = vmatpush1.bf16.msra.mxu0 %v2566
    %2959 = vmatprep.subr.bf16.mxu0 0
    %2960 = vmatpush1.bf16.msra.mxu0 %v2567
    %2961 = vmatprep.subr.bf16.mxu0 0
    %2962 = vmatpush1.bf16.msra.mxu0 %v2568
    %2963 = vmatprep.subr.bf16.mxu0 0
    %2964 = vmatpush1.bf16.msra.mxu0 %v2569
    %2965 = vmatprep.subr.bf16.mxu0 0
    %2966 = vmatpush1.bf16.msra.mxu0 %v2570
    %2967 = vmatprep.subr.bf16.mxu0 0
    %2968 = vmatpush1.bf16.msra.mxu0 %v2571
    %2969 = vmatprep.mubr.bf16.mxu0 %v1699
    %2970 = vmatmul.mubr.bf16.gmra.mrb[0].mxu0 %v1698
    %v2971 = vpop.f32.mrb[0].mxu0
    %v2972 = vadd.f32 %v2931, %v2971
    %v2973 = vpop.f32.mrb[0].mxu0
    %v2974 = vpop.f32.mrb[0].mxu0
    %v2975 = vadd.f32 %v2934, %v2974
    %v2976 = vpop.f32.mrb[0].mxu0
    %2977 = vdwg.mxu0
    %2978 = vmatprep.subr.bf16.mxu0 0
    %2979 = vmatpush1.bf16.msra.mxu0 %v2572
    %2980 = vmatprep.subr.bf16.mxu0 0
    %2981 = vmatpush1.bf16.msra.mxu0 %v2573
    %2982 = vmatprep.subr.bf16.mxu0 0
    %2983 = vmatpush1.bf16.msra.mxu0 %v2574
    %2984 = vmatprep.subr.bf16.mxu0 0
    %2985 = vmatpush1.bf16.msra.mxu0 %v2575
    %2986 = vmatprep.subr.bf16.mxu0 0
    %2987 = vmatpush1.bf16.msra.mxu0 %v2576
    %2988 = vmatprep.subr.bf16.mxu0 0
    %2989 = vmatpush1.bf16.msra.mxu0 %v2577
    %2990 = vmatprep.subr.bf16.mxu0 0
    %2991 = vmatpush1.bf16.msra.mxu0 %v2578
    %2992 = vmatprep.subr.bf16.mxu0 0
    %2993 = vmatpush1.bf16.msra.mxu0 %v2579
    %2994 = vmatprep.subr.bf16.mxu0 0
    %2995 = vmatpush1.bf16.msra.mxu0 %v2580
    %2996 = vmatprep.subr.bf16.mxu0 0
    %2997 = vmatpush1.bf16.msra.mxu0 %v2581
    %2998 = vmatprep.subr.bf16.mxu0 0
    %2999 = vmatpush1.bf16.msra.mxu0 %v2582
    %3000 = vmatprep.subr.bf16.mxu0 0
    %3001 = vmatpush1.bf16.msra.mxu0 %v2583
    %3002 = vmatprep.subr.bf16.mxu0 0
    %3003 = vmatpush1.bf16.msra.mxu0 %v2584
    %3004 = vmatprep.subr.bf16.mxu0 0
    %3005 = vmatpush1.bf16.msra.mxu0 %v2585
    %3006 = vmatprep.subr.bf16.mxu0 0
    %3007 = vmatpush1.bf16.msra.mxu0 %v2586
    %3008 = vmatprep.subr.bf16.mxu0 0
    %3009 = vmatpush1.bf16.msra.mxu0 %v2587
    %3010 = vmatprep.mubr.bf16.mxu0 %v1701
    %3011 = vmatmul.mubr.bf16.gmra.mrb[0].mxu0 %v1700
    %v3012 = vpop.f32.mrb[0].mxu0
    %v3013 = vadd.f32 %v2972, %v3012
    %v3014 = vpop.f32.mrb[0].mxu0
    %v3015 = vpop.f32.mrb[0].mxu0
    %v3016 = vadd.f32 %v2975, %v3015
    %v3017 = vpop.f32.mrb[0].mxu0
    %3018 = vdwg.mxu0
    %3019 = vmatprep.subr.bf16.mxu0 0
    %3020 = vmatpush1.bf16.msra.mxu0 %v2588
    %3021 = vmatprep.subr.bf16.mxu0 0
    %3022 = vmatpush1.bf16.msra.mxu0 %v2589
    %3023 = vmatprep.subr.bf16.mxu0 0
    %3024 = vmatpush1.bf16.msra.mxu0 %v2590
    %3025 = vmatprep.subr.bf16.mxu0 0
    %3026 = vmatpush1.bf16.msra.mxu0 %v2591
    %3027 = vmatprep.subr.bf16.mxu0 0
    %3028 = vmatpush1.bf16.msra.mxu0 %v2592
    %3029 = vmatprep.subr.bf16.mxu0 0
    %3030 = vmatpush1.bf16.msra.mxu0 %v2593
    %3031 = vmatprep.subr.bf16.mxu0 0
    %3032 = vmatpush1.bf16.msra.mxu0 %v2594
    %3033 = vmatprep.subr.bf16.mxu0 0
    %3034 = vmatpush1.bf16.msra.mxu0 %v2595
    %3035 = vmatprep.subr.bf16.mxu0 0
    %3036 = vmatpush1.bf16.msra.mxu0 %v2596
    %3037 = vmatprep.subr.bf16.mxu0 0
    %3038 = vmatpush1.bf16.msra.mxu0 %v2597
    %3039 = vmatprep.subr.bf16.mxu0 0
    %3040 = vmatpush1.bf16.msra.mxu0 %v2598
    %3041 = vmatprep.subr.bf16.mxu0 0
    %3042 = vmatpush1.bf16.msra.mxu0 %v2599
    %3043 = vmatprep.subr.bf16.mxu0 0
    %3044 = vmatpush1.bf16.msra.mxu0 %v2600
    %3045 = vmatprep.subr.bf16.mxu0 0
    %3046 = vmatpush1.bf16.msra.mxu0 %v2601
    %3047 = vmatprep.subr.bf16.mxu0 0
    %3048 = vmatpush1.bf16.msra.mxu0 %v2602
    %3049 = vmatprep.subr.bf16.mxu0 0
    %3050 = vmatpush1.bf16.msra.mxu0 %v2603
    %3051 = vmatprep.mubr.bf16.mxu0 %v1703
    %3052 = vmatmul.mubr.bf16.gmra.mrb[0].mxu0 %v1702
    %v3053 = vpop.f32.mrb[0].mxu0
    %v3054 = vadd.f32 %v3013, %v3053
    %v3055 = vpop.f32.mrb[0].mxu0
    %v3056 = vpop.f32.mrb[0].mxu0
    %v3057 = vadd.f32 %v3016, %v3056
    %v3058 = vpop.f32.mrb[0].mxu0
    %3059 = vdwg.mxu0
    %v3060 = vadd.f32 %v1030, %v3054
    %v3061 = vadd.f32 %v1031, %v3057
    %v3062 = vsel %vm143, %v3060, 0.0
    %3063 = vadd.xlane.f32.xlu0 %v3062
    %v3064 = vpop.xlane.xlu0 %3063
    %v3065 = vsel %vm143, %v3061, 0.0
    %3066 = vadd.xlane.f32.xlu0 %v3065
    %v3067 = vpop.xlane.xlu0 %3066
    %v3068 = vmul.f32 %v3064, %v999
    %v3069 = vmul.f32 %v3067, %v999
    %v3070 = vsub.f32 %v3060, %v3068
    %v3071 = vsub.f32 %v3061, %v3069
    %v3072 = vmul.f32 %v3070, %v3070
    %v3073 = vmul.f32 %v3071, %v3071
    %v3074 = vsel %vm143, %v3072, 0.0
    %3075 = vadd.xlane.f32.xlu0 %v3074
    %v3076 = vpop.xlane.xlu0 %3075
    %v3077 = vsel %vm143, %v3073, 0.0
    %3078 = vadd.xlane.f32.xlu0 %v3077
    %v3079 = vpop.xlane.xlu0 %3078
    %v3080 = vmul.f32 %v3076, %v999
    %v3081 = vmul.f32 %v3079, %v999
    %v3082 = vadd.f32 %v3080, 1e-05
    %v3083 = vadd.f32 %v3081, 1e-05
    %v3084 = vrsqrt.pop %v3082
    %v3085 = vrsqrt.pop %v3083
    %v3086 = vmul.f32 %v3070, %v3084
    %v3087 = vmul.f32 %v3071, %v3085
    %v3088 = vlaneseq
    %v3089 = vshrl.u32 %v3088, 7
    %v3090 = vsub.s32 0, %v3089
    %v3091 = vrot.slane %v68, %v3090
    %v3092 = vmul.f32 %v3086, %v3091
    %v3093 = vmul.f32 %v3087, %v3091
    %v3094 = vlaneseq
    %v3095 = vshrl.u32 %v3094, 7
    %v3096 = vsub.s32 0, %v3095
    %v3097 = vrot.slane %v69, %v3096
    %v3098 = vadd.f32 %v3092, %v3097
    %v3099 = vadd.f32 %v3093, %v3097
    %v3100 = vld [vmem:[%s13] sm:$0xff]
    %v3101 = vld [vmem:[%s13 + $0x8] sm:$0xff]
    %v3102 = vld [vmem:[%s13 + $0x10] sm:$0xff]
    %v3103 = vld [vmem:[%s13 + $0x18] sm:$0xff]
    %v3104 = vlaneseq
    %v3105 = vshrl.u32 %v3104, 7
    %v3106 = vsub.s32 0, %v3105
    %v3107 = vrot.slane %v71, %v3106
    %v3109 = vsel %vm143, %v3098, 0
    %v3112 = vsel %vm143, %v3099, 0
    %3114 = vmatprep.subr.mxu0 0.0
    %3115 = vmatpush1.msra.mxu0 %v3100
    %3116 = vmatprep.subr.mxu0 0.0
    %3117 = vmatpush1.msra.mxu0 %v3101
    %3118 = vmatprep.subr.mxu0 0.0
    %3119 = vmatpush1.msra.mxu0 %v3102
    %3120 = vmatprep.subr.mxu0 0.0
    %3121 = vmatpush1.msra.mxu0 %v3103
    %3122 = vmatprep.subr.mxu0 0.0
    %3123 = vmatpush1.msra.mxu0 0.0
    %3124 = vmatprep.subr.mxu0 0.0
    %3125 = vmatpush1.msra.mxu0 0.0
    %3126 = vmatprep.subr.mxu0 0.0
    %3127 = vmatpush1.msra.mxu0 0.0
    %3128 = vmatprep.subr.mxu0 0.0
    %3129 = vmatpush1.msra.mxu0 0.0
    %3130 = vmatprep.subr.mxu0 0.0
    %3131 = vmatpush1.msra.mxu0 0.0
    %3132 = vmatprep.subr.mxu0 0.0
    %3133 = vmatpush1.msra.mxu0 0.0
    %3134 = vmatprep.subr.mxu0 0.0
    %3135 = vmatpush1.msra.mxu0 0.0
    %3136 = vmatprep.subr.mxu0 0.0
    %3137 = vmatpush1.msra.mxu0 0.0
    %3138 = vmatprep.subr.mxu0 0.0
    %3139 = vmatpush1.msra.mxu0 0.0
    %3140 = vmatprep.subr.mxu0 0.0
    %3141 = vmatpush1.msra.mxu0 0.0
    %3142 = vmatprep.subr.mxu0 0.0
    %3143 = vmatpush1.msra.mxu0 0.0
    %3144 = vmatprep.subr.mxu0 0.0
    %3145 = vmatpush1.msra.mxu0 0.0
    %3146 = vmatprep.subr.mxu0 0.0
    %3147 = vmatpush1.msra.mxu0 0.0
    %3148 = vmatprep.subr.mxu0 0.0
    %3149 = vmatpush1.msra.mxu0 0.0
    %3150 = vmatprep.subr.mxu0 0.0
    %3151 = vmatpush1.msra.mxu0 0.0
    %3152 = vmatprep.subr.mxu0 0.0
    %3153 = vmatpush1.msra.mxu0 0.0
    %3154 = vmatprep.subr.mxu0 0.0
    %3155 = vmatpush1.msra.mxu0 0.0
    %3156 = vmatprep.subr.mxu0 0.0
    %3157 = vmatpush1.msra.mxu0 0.0
    %3158 = vmatprep.subr.mxu0 0.0
    %3159 = vmatpush1.msra.mxu0 0.0
    %3160 = vmatprep.subr.mxu0 0.0
    %3161 = vmatpush1.msra.mxu0 0.0
    %3162 = vmatprep.subr.mxu0 0.0
    %3163 = vmatpush1.msra.mxu0 0.0
    %3164 = vmatprep.subr.mxu0 0.0
    %3165 = vmatpush1.msra.mxu0 0.0
    %3166 = vmatprep.subr.mxu0 0.0
    %3167 = vmatpush1.msra.mxu0 0.0
    %3168 = vmatprep.subr.mxu0 0.0
    %3169 = vmatpush1.msra.mxu0 0.0
    %3170 = vmatprep.subr.mxu0 0.0
    %3171 = vmatpush1.msra.mxu0 0.0
    %3172 = vmatprep.subr.mxu0 0.0
    %3173 = vmatpush1.msra.mxu0 0.0
    %3174 = vmatprep.subr.mxu0 0.0
    %3175 = vmatpush1.msra.mxu0 0.0
    %3176 = vmatprep.subr.mxu0 0.0
    %3177 = vmatpush1.msra.mxu0 0.0
    %3178 = vmatprep.mubr.f32.mxu0 0.0
    %3179 = vmatmul.mubr.f32.gmra.mrb[0].mxu0 %v3109
    %v3180 = vpop.f32.mrb[0].mxu0
    %v3181 = vadd.f32 %v3107, %v3180
    %v3182 = vpop.f32.mrb[0].mxu0
    %3183 = vmatprep.mubr.f32.mxu0 0.0
    %3184 = vmatmul.mubr.f32.gmra.mrb[0].mxu0 %v3112
    %v3185 = vpop.f32.mrb[0].mxu0
    %v3186 = vadd.f32 %v3107, %v3185
    %v3187 = vpop.f32.mrb[0].mxu0
    %3188 = vdwg.mxu0
    %3189 = vst.msk [vmem:[#allocation5] sm:$0xff] %vm143, %v3181
    %3190 = vst.msk [vmem:[#allocation5 + $0x8] sm:$0xff] %vm143, %v3186
    // Predicated region
    $region62: #{text_diffusion_forward.1} parent=1 // pred_check
      _
    $region63: #{text_diffusion_forward.1} parent=1 // pred_check_branch
      %3192 = sbr.rel (0) target = $region65
    $region64: #{text_diffusion_forward.1} parent=1 // pred_region
      %s3194 = ssub.s32 256, 256
      %3195 = vsyncadd [#allocation3], %s3194
      %s3196 = sshll.u32 [#allocation5], 4
      %s3197 = int_to_ptr.vmem [resolvable:$true] %s3196
      %3202 = dma.vmem_to_hbm [thread:$0]  %s3197, 256, %s14, [#allocation3], 128, 128, 8
    $region65: #{text_diffusion_forward.1} parent=1 // pred_fallthru
      _
    // Predicated region
    $region66: #{text_diffusion_forward.1} parent=1 // pred_check
      _
    $region67: #{text_diffusion_forward.1} parent=1 // pred_check_branch
      %3204 = sbr.rel (0) target = $region69
    $region68: #{text_diffusion_forward.1} parent=1 // pred_region
      %3205 = dma.done [#allocation3], 256
    $region69: #{text_diffusion_forward.1} parent=1 // pred_fallthru
      _
    %3206 = vsyncpa [#allocation3], 1
    %3207 = vsyncpa [#allocation4], 1

</llo_original>
